<compile_context>
chip_gen: v7x
topology: tpu7x:2x2x1
jax: 0.10.0
libtpu: 0.0.40
codegen_flags: <defaults>
</compile_context>

<pallas_src>
import math

import jax
import jax.numpy as jnp
from jax import lax
from jax.experimental import pallas as pl
from jax.experimental.pallas import tpu as pltpu


_V_CHUNK = 1024            # one-hot contraction chunk (multiple of 8 and 128)
_MAX_PREFETCH_IDS = 65536  # cap scalar-prefetch ids per pallas_call (SMEM is small)


def _round_up(x, m):
    return (x + m - 1) // m * m


def _sublane(dtype):
    # minimum second-minor tile extent per dtype: f32 -> 8, bf16 -> 16, int8 -> 32
    return {4: 8, 2: 16, 1: 32}.get(jnp.dtype(dtype).itemsize, 8)


def _vmem_info():
    """Returns (physical VMEM bytes per TensorCore, usable budget)."""
    phys = 0
    try:
        phys = int(pltpu.get_tpu_info().vmem_capacity_bytes)
    except Exception:
        phys = 0
    if not phys:
        kind = ""
        try:
            kind = jax.devices()[0].device_kind.lower()
        except Exception:
            pass
        # v7x has 64 MiB/TC; v5e/v6e (and older) have 128 MiB.
        phys = (64 << 20) if "7" in kind else (128 << 20)
    return phys, (phys * 3) // 4       # leave headroom for compiler scratch


# ----------------------------------------------------------------------------
# Fast path: table resident in VMEM, one-hot MXU gather, dense (T, D) stores.
# ----------------------------------------------------------------------------
def _embed_onehot_kernel(ids_ref, w_ref, out_ref):
    """ids_ref: (1, T, 1) int32 block.  w_ref: full (V, D) table, VMEM-resident
    (constant block index).  out_ref: dense (T, D) output slab."""
    T = out_ref.shape[0]
    V, D = w_ref.shape
    ids = ids_ref[0]                                   # (T, 1) int32
    # f32 matmuls take the exact-precision path so gathered rows come out clean;
    # bf16 stays on the native (fast) MXU path.
    prec = (lax.Precision.HIGHEST if w_ref.dtype == jnp.float32
            else lax.Precision.DEFAULT)

    def one_hot_dot(off, width, acc):
        w_blk = w_ref[pl.ds(off, width), :]            # (width, D)
        col = lax.broadcasted_iota(jnp.int32, (T, width), 1) + off
        oh = (col == ids).astype(w_blk.dtype)          # (T, width) one-hot
        return acc + jnp.dot(oh, w_blk, precision=prec,
                             preferred_element_type=jnp.float32)

    acc = jnp.zeros((T, D), jnp.float32)
    n_full = V // _V_CHUNK
    rem = V - n_full * _V_CHUNK
    if n_full > 0:
        def body(c, a):
            off = pl.multiple_of(c * _V_CHUNK, _V_CHUNK)
            return one_hot_dot(off, _V_CHUNK, a)
        acc = lax.fori_loop(0, n_full, body, acc)
    if rem > 0:                                        # ragged tail chunk (static)
        acc = one_hot_dot(n_full * _V_CHUNK, rem, acc)

    out_ref[...] = acc.astype(out_ref.dtype)           # one dense full-tile store


# ----------------------------------------------------------------------------
# Fallback path: table too large for VMEM -> row DMAs straight from HBM into
# the output block, drained by a single aggregated byte-counted wait.
# ----------------------------------------------------------------------------
def _embed_hbm_gather_kernel(ids_ref, w_hbm, out_ref, sem):
    """ids_ref: all token ids (SMEM scalar prefetch).  w_hbm: (V, D) table in HBM
    (memory_space=pl.ANY).  out_ref: (T, D) output slab (direct DMA target)."""
    T = out_ref.shape[0]
    base = pl.program_id(0) * T

    def issue(j, carry):
        tok = ids_ref[base + j]                        # scalar id from SMEM
        pltpu.make_async_copy(w_hbm.at[pl.ds(tok, 1), :],
                              out_ref.at[pl.ds(j, 1), :],
                              sem).start()
        return carry

    lax.fori_loop(0, T, issue, 0, unroll=8)
    # All T row DMAs signal `sem` with D*itemsize bytes each; one wait sized like
    # the full (T, D) tile drains them all (DMA semaphores are byte-counted).
    pltpu.make_async_copy(out_ref, out_ref, sem).wait()


# ----------------------------------------------------------------------------
# pallas_call builders
# ----------------------------------------------------------------------------
def _resident_call(n_tiles, T, V, D, dtype, vmem_limit, single_buffer_table):
    if single_buffer_table:
        w_spec = pl.BlockSpec((V, D), lambda i: (0, 0),
                              pipeline_mode=pl.Buffered(1))
    else:
        w_spec = pl.BlockSpec((V, D), lambda i: (0, 0))
    return pl.pallas_call(
        _embed_onehot_kernel,
        out_shape=jax.ShapeDtypeStruct((n_tiles * T, D), dtype),
        grid=(n_tiles,),
        in_specs=[pl.BlockSpec((1, T, 1), lambda i: (i, 0, 0)), w_spec],
        out_specs=pl.BlockSpec((T, D), lambda i: (i, 0)),
        compiler_params=pltpu.CompilerParams(
            dimension_semantics=("parallel",),
            vmem_limit_bytes=vmem_limit),
    )


def _hbm_call(n_tiles, T, V, D, dtype, vmem_limit):
    return pl.pallas_call(
        _embed_hbm_gather_kernel,
        out_shape=jax.ShapeDtypeStruct((n_tiles * T, D), dtype),
        grid_spec=pltpu.PrefetchScalarGridSpec(
            num_scalar_prefetch=1,                       # ids land in SMEM
            grid=(n_tiles,),
            in_specs=[pl.BlockSpec(memory_space=pl.ANY)],  # table stays in HBM
            out_specs=pl.BlockSpec((T, D), lambda i, ids_s: (i, 0)),
            scratch_shapes=[pltpu.SemaphoreType.DMA(())],
        ),
        compiler_params=pltpu.CompilerParams(
            dimension_semantics=("parallel",),           # stateless per step
            vmem_limit_bytes=vmem_limit),
    )


# ----------------------------------------------------------------------------
# Wrapper
# ----------------------------------------------------------------------------
def vocab_parallel_embedding(ids, weight, *, tile_tokens=256,
                             vmem_budget_bytes=None, force_hbm_gather=False):
    """Pallas TPU embedding lookup (== F.embedding(ids, weight)).

    ids:    integer array of any shape, values in [0, V)
    weight: (V, D) embedding table (float32 or bfloat16)
    returns ids.shape + (D,) array of weight.dtype
    """
    V, D = weight.shape
    out_shape = tuple(ids.shape) + (D,)
    flat_ids = jnp.clip(ids.reshape(-1).astype(jnp.int32), 0, V - 1)
    n_tok = flat_ids.shape[0]
    if n_tok == 0:
        return jnp.zeros(out_shape, weight.dtype)

    itemsize = jnp.dtype(weight.dtype).itemsize
    sub = _sublane(weight.dtype)
    lane_d = _round_up(D, 128)

    phys, budget = _vmem_info()
    if vmem_budget_bytes is not None:
        budget = int(vmem_budget_bytes)

    # Token tile: sublane aligned; keep each (T, D) output slab small enough
    # (<= ~4 MiB on v7x, <= ~8 MiB on v5e/v6e) so table residency wins.
    slab_cap = (4 << 20) if phys <= (64 << 20) else (8 << 20)
    t_cap = max(sub, (slab_cap // (lane_d * itemsize)) // sub * sub)
    T = max(sub, min(_round_up(tile_tokens, sub), t_cap, _round_up(n_tok, sub)))

    n_pad = _round_up(n_tok, T)
    flat_pad = flat_ids
    if n_pad != n_tok:            # pad with id 0 (a valid row); sliced off below
        flat_pad = jnp.concatenate(
            [flat_ids, jnp.zeros((n_pad - n_tok,), jnp.int32)])
    n_tiles = n_pad // T

    table_bytes = _round_up(V, sub) * lane_d * itemsize
    out_bytes = T * lane_d * itemsize                        # one output slab
    work_bytes = T * _V_CHUNK * itemsize + T * lane_d * 4 + (2 << 20)
    need_single = table_bytes + 2 * out_bytes + work_bytes   # Buffered(1) table
    need_double = need_single + table_bytes                  # default 2x table

    out_flat = None
    if not force_hbm_gather and need_single <= budget:
        ids3 = flat_pad.reshape(n_tiles, T, 1)
        vmem_limit = int(min(phys, max(32 << 20, need_single + (16 << 20))))
        try:
            out_flat = _resident_call(n_tiles, T, V, D, weight.dtype,
                                      vmem_limit, True)(ids3, weight)
        except Exception:
            out_flat = None       # pl.Buffered(1) unsupported here -> fall back
        if out_flat is None and need_double <= budget:
            vmem_limit = int(min(phys, max(32 << 20, need_double + (16 << 20))))
            out_flat = _resident_call(n_tiles, T, V, D, weight.dtype,
                                      vmem_limit, False)(ids3, weight)

    if out_flat is None:
        # Table too large for VMEM (or forced): gather rows straight from HBM.
        vmem_limit = int(min(phys, max(32 << 20, 4 * out_bytes + (8 << 20))))
        max_tok = max(T, (_MAX_PREFETCH_IDS // T) * T)  # bound SMEM ids per call
        parts = []
        for s in range(0, n_pad, max_tok):
            chunk = flat_pad[s:s + max_tok]
            ct = chunk.shape[0] // T
            parts.append(
                _hbm_call(ct, T, V, D, weight.dtype, vmem_limit)(chunk, weight))
        out_flat = parts[0] if len(parts) == 1 else jnp.concatenate(parts, axis=0)

    if n_pad != n_tok:
        out_flat = out_flat[:n_tok]
    return out_flat.reshape(out_shape)
    # TODO(synk): the multi-partition VocabParallelEmbedding variant (mask ids
    # outside [vocab_start, vocab_end) to zero rows + all-reduce) is not needed
    # for the single-partition module being translated.


def init_vocab_parallel_embedding_weight(key, num_embeddings, embedding_dim,
                                         dtype=jnp.float32):
    # Matches _initialize_affine_weight_cpu with init.xavier_normal_ on a single
    # partition: std = sqrt(2 / (fan_in + fan_out)).
    std = math.sqrt(2.0 / (num_embeddings + embedding_dim))
    w = std * jax.random.normal(key, (num_embeddings, embedding_dim), jnp.float32)
    return w.astype(dtype)


if __name__ == "__main__":
    key = jax.random.PRNGKey(0)
    k_w, k_ids, k_w2, k_ids2 = jax.random.split(key, 4)

    # Small shapes consistent with the module: vocab=512, hidden=128, batch=2, seq=8
    V, D = 512, 128
    B, S = 2, 8
    weight = init_vocab_parallel_embedding_weight(k_w, V, D)
    ids = jax.random.randint(k_ids, (B, S), 0, V, dtype=jnp.int32)

    out = jax.block_until_ready(vocab_parallel_embedding(ids, weight))
    ref = jnp.take(weight, ids, axis=0)
    assert out.shape == (B, S, D) and out.dtype == weight.dtype
    assert bool(jnp.allclose(out, ref))

    # multi-tile grid + token padding (26 tokens, tile 8) on the resident path
    ids_b = jax.random.randint(jax.random.PRNGKey(1), (2, 13), 0, V, dtype=jnp.int32)
    out_b = jax.block_until_ready(
        vocab_parallel_embedding(ids_b, weight, tile_tokens=8))
    assert bool(jnp.allclose(out_b, jnp.take(weight, ids_b, axis=0)))

    # chunked one-hot path (V > _V_CHUNK -> fori_loop over V chunks + ragged tail)
    V2 = 2560
    weight2 = init_vocab_parallel_embedding_weight(k_w2, V2, D)
    ids_c = jax.random.randint(k_ids2, (2, 8), 0, V2, dtype=jnp.int32)
    out_c = jax.block_until_ready(vocab_parallel_embedding(ids_c, weight2))
    assert bool(jnp.allclose(out_c, jnp.take(weight2, ids_c, axis=0)))

    # HBM row-gather fallback path (forced); rows are exact copies
    out_h = jax.block_until_ready(
        vocab_parallel_embedding(ids_b, weight, tile_tokens=8,
                                 force_hbm_gather=True))
    assert bool(jnp.allclose(out_h, jnp.take(weight, ids_b, axis=0)))

    print("KERNEL_OK")
</pallas_src>

<mosaic_0001>
module attributes {stable_mosaic.version = 11 : i64} {
  func.func @_embed_onehot_kernel(%arg0: i32, %arg1: memref<1x16x1xi32, #tpu.memory_space<vmem>>, %arg2: memref<512x128xf32, #tpu.memory_space<vmem>>, %arg3: memref<16x128xf32, #tpu.memory_space<vmem>>) attributes {dimension_semantics = [#tpu.dimension_semantics<parallel>], iteration_bounds = array<i64: 1>, scalar_prefetch = 0 : i64, scratch_operands = 0 : i64, tpu.core_type = #tpu.core_type<tc>, window_params = [{transform_indices = @transform_0, window_bounds = array<i64: 1, 16, 1>}, {pipeline_mode = #tpu.pipeline_mode<synchronous>, transform_indices = @transform_1, window_bounds = array<i64: 512, 128>}, {transform_indices = @transform_2, window_bounds = array<i64: 16, 128>}]} {
    %c0 = arith.constant 0 : index
    %c0_0 = arith.constant 0 : index
    %c0_1 = arith.constant 0 : index
    %0 = vector.load %arg1[%c0, %c0_0, %c0_1] : memref<1x16x1xi32, #tpu.memory_space<vmem>>, vector<1x16x1xi32>
    %1 = vector.shape_cast %0 : vector<1x16x1xi32> to vector<16x1xi32>
    %cst = arith.constant 0.000000e+00 : f32
    %2 = vector.broadcast %cst : f32 to vector<16x128xf32>
    %c0_2 = arith.constant 0 : index
    %c0_3 = arith.constant 0 : index
    %3 = vector.load %arg2[%c0_2, %c0_3] : memref<512x128xf32, #tpu.memory_space<vmem>>, vector<512x128xf32>
    %4 = tpu.iota {dimensions = array<i32: 1>} : vector<16x512xi32>
    %c0_i32 = arith.constant 0 : i32
    %5 = vector.broadcast %c0_i32 : i32 to vector<16x512xi32>
    %6 = arith.addi %4, %5 : vector<16x512xi32>
    %7 = vector.broadcast %1 : vector<16x1xi32> to vector<16x512xi32>
    %8 = arith.cmpi eq, %6, %7 : vector<16x512xi32>
    %9 = arith.extui %8 : vector<16x512xi1> to vector<16x512xi32>
    %10 = arith.sitofp %9 : vector<16x512xi32> to vector<16x512xf32>
    %cst_4 = arith.constant dense<0.000000e+00> : vector<16x128xf32>
    %11 = tpu.matmul %10, %3, %cst_4 {dimension_numbers = #tpu.dot_dimension_numbers<[1], [0], [0], [1], [0, 0, 1, 1], [], []>, precision = #tpu.contract_precision<fp32>} : vector<16x512xf32>, vector<512x128xf32>, vector<16x128xf32> -> vector<16x128xf32>
    %12 = arith.addf %2, %11 : vector<16x128xf32>
    %c0_5 = arith.constant 0 : index
    %c0_6 = arith.constant 0 : index
    %13 = vector.load %arg3[%c0_5, %c0_6] : memref<16x128xf32, #tpu.memory_space<vmem>>, vector<16x128xf32>
    tpu.vector_store %arg3[%c0_5, %c0_6], %12 {strides = array<i32>} : memref<16x128xf32, #tpu.memory_space<vmem>>, vector<16x128xf32>,
    return
  }
  func.func @transform_0(%arg0: i32) -> (i32, i32, i32) {
    %c0_i32 = arith.constant 0 : i32
    %c0_i32_0 = arith.constant 0 : i32
    %c0_i32_1 = arith.constant 0 : i32
    return %arg0, %c0_i32, %c0_i32_0 : i32, i32, i32
  }
  func.func @transform_1(%arg0: i32) -> (i32, i32) {
    %c0_i32 = arith.constant 0 : i32
    %c0_i32_0 = arith.constant 0 : i32
    %c0_i32_1 = arith.constant 0 : i32
    return %c0_i32, %c0_i32_0 : i32, i32
  }
  func.func @transform_2(%arg0: i32) -> (i32, i32) {
    %c0_i32 = arith.constant 0 : i32
    %c0_i32_0 = arith.constant 0 : i32
    return %arg0, %c0_i32 : i32, i32
  }
}

module attributes {stable_mosaic.version = 11 : i64} {
  func.func @_embed_onehot_kernel(%arg0: i32, %arg1: memref<1x16x1xi32, #tpu.memory_space<vmem>>, %arg2: memref<512x128xf32, #tpu.memory_space<vmem>>, %arg3: memref<16x128xf32, #tpu.memory_space<vmem>>) attributes {dimension_semantics = [#tpu.dimension_semantics<parallel>], iteration_bounds = array<i64: 1>, scalar_prefetch = 0 : i64, scratch_operands = 0 : i64, tpu.core_type = #tpu.core_type<tc>, window_params = [{transform_indices = @transform_0, window_bounds = array<i64: 1, 16, 1>}, {pipeline_mode = #tpu.pipeline_mode<synchronous>, transform_indices = @transform_1, window_bounds = array<i64: 512, 128>}, {transform_indices = @transform_2, window_bounds = array<i64: 16, 128>}]} {
    %c0 = arith.constant 0 : index
    %c0_0 = arith.constant 0 : index
    %c0_1 = arith.constant 0 : index
    %0 = vector.load %arg1[%c0, %c0_0, %c0_1] : memref<1x16x1xi32, #tpu.memory_space<vmem>>, vector<1x16x1xi32>
    %1 = vector.shape_cast %0 : vector<1x16x1xi32> to vector<16x1xi32>
    %cst = arith.constant 0.000000e+00 : f32
    %2 = vector.broadcast %cst : f32 to vector<16x128xf32>
    %c0_2 = arith.constant 0 : index
    %c0_3 = arith.constant 0 : index
    %3 = vector.load %arg2[%c0_2, %c0_3] : memref<512x128xf32, #tpu.memory_space<vmem>>, vector<512x128xf32>
    %4 = tpu.iota {dimensions = array<i32: 1>} : vector<16x512xi32>
    %c0_i32 = arith.constant 0 : i32
    %5 = vector.broadcast %c0_i32 : i32 to vector<16x512xi32>
    %6 = arith.addi %4, %5 : vector<16x512xi32>
    %7 = vector.broadcast %1 : vector<16x1xi32> to vector<16x512xi32>
    %8 = arith.cmpi eq, %6, %7 : vector<16x512xi32>
    %9 = arith.extui %8 : vector<16x512xi1> to vector<16x512xi32>
    %10 = arith.sitofp %9 : vector<16x512xi32> to vector<16x512xf32>
    %cst_4 = arith.constant dense<0.000000e+00> : vector<16x128xf32>
    %11 = tpu.matmul %10, %3, %cst_4 {dimension_numbers = #tpu.dot_dimension_numbers<[1], [0], [0], [1], [0, 0, 1, 1], [], []>, precision = #tpu.contract_precision<fp32>} : vector<16x512xf32>, vector<512x128xf32>, vector<16x128xf32> -> vector<16x128xf32>
    %12 = arith.addf %2, %11 : vector<16x128xf32>
    %c0_5 = arith.constant 0 : index
    %c0_6 = arith.constant 0 : index
    %13 = vector.load %arg3[%c0_5, %c0_6] : memref<16x128xf32, #tpu.memory_space<vmem>>, vector<16x128xf32>
    tpu.vector_store %arg3[%c0_5, %c0_6], %12 {strides = array<i32>} : memref<16x128xf32, #tpu.memory_space<vmem>>, vector<16x128xf32>,
    return
  }
  func.func @transform_0(%arg0: i32) -> (i32, i32, i32) {
    %c0_i32 = arith.constant 0 : i32
    %c0_i32_0 = arith.constant 0 : i32
    %c0_i32_1 = arith.constant 0 : i32
    return %arg0, %c0_i32, %c0_i32_0 : i32, i32, i32
  }
  func.func @transform_1(%arg0: i32) -> (i32, i32) {
    %c0_i32 = arith.constant 0 : i32
    %c0_i32_0 = arith.constant 0 : i32
    %c0_i32_1 = arith.constant 0 : i32
    return %c0_i32, %c0_i32_0 : i32, i32
  }
  func.func @transform_2(%arg0: i32) -> (i32, i32) {
    %c0_i32 = arith.constant 0 : i32
    %c0_i32_0 = arith.constant 0 : i32
    return %arg0, %c0_i32 : i32, i32
  }
}

</mosaic_0001>

<llo_original>
// kernel: tpu_custom_call.1
$region0: #{tpu_custom_call.1}
  #allocation0 [shape = 'u32[]', space=smem, size = 0x4, offset = 0x4, fixed_abs, tag = 'smem constant byte address 0x4 - core index']
  #allocation1 [shape = 'u32[144,128]{1,0:T(1,128)}', space=vmem, size = 0x12000, scoped, tag = 'internal scratch']
  %s0 = inlined_call_operand.vmem [shape: s32[1,16,1], index: 0, kind: input, shape index: {}]
  %s1 = inlined_call_operand.hbm [shape: f32[512,128], index: 1, kind: input, shape index: {}]
  %s2 = inlined_call_operand.hbm [shape: f32[16,128], index: 2, kind: output, shape index: {}]
  %s3 = sld [smem:[#allocation0]]
  $region22: #{tpu_custom_call.1} parent=0
    _
  %s5 = ssub.s32 1, %s3
  %s6 = scalar_select 0, %s5, %s3
  $region1: #{tpu_custom_call.1} parent=0
    #allocation2 [shape = 'u8[262144]{0}', space=vmem, size = 0x40000, scoped, tag = 'input window, operand 1, single buffered']
    #allocation3 [shape = 's32[1]{0}', space=sflag, size = 0x4, scoped, tag = 'scoped memory for tpu_custom_call.1']
    #allocation4 [shape = 's32[1]{0}', space=sflag, size = 0x4, scoped, tag = 'scoped memory for tpu_custom_call.1']
    #allocation5 [shape = 'u8[8192]{0}', space=vmem, size = 0x2000, scoped, tag = 'output window, operand 0, single buffered']
    %7 = vsyncpa [#allocation3], 0
    %8 = vsyncpa [#allocation4], 0
    // Predicated region
    $region2: #{tpu_custom_call.1} parent=1 // pred_check
      _
    $region3: #{tpu_custom_call.1} parent=1 // pred_check_branch
      %10 = sbr.rel (0) target = $region5
    $region4: #{tpu_custom_call.1} parent=1 // pred_region
      _
    $region5: #{tpu_custom_call.1} parent=1 // pred_fallthru
      _
    // Predicated region
    $region6: #{tpu_custom_call.1} parent=1 // pred_check
      _
    $region7: #{tpu_custom_call.1} parent=1 // pred_check_branch
      %12 = sbr.rel (0) target = $region9
    $region8: #{tpu_custom_call.1} parent=1 // pred_region
      %s14 = ssub.s32 8192, 8192
      %15 = vsyncadd [#allocation3], %s14
      %s16 = sshll.u32 [#allocation2], 4
      %s17 = int_to_ptr.vmem [resolvable:$true] %s16
      %22 = dma.hbm_to_vmem [thread:$0]  %s1, 8192, %s17, [#allocation3], 128, 128, 8
    $region9: #{tpu_custom_call.1} parent=1 // pred_fallthru
      _
    // Predicated region
    $region10: #{tpu_custom_call.1} parent=1 // pred_check
      _
    $region11: #{tpu_custom_call.1} parent=1 // pred_check_branch
      %24 = sbr.rel (0) target = $region13
    $region12: #{tpu_custom_call.1} parent=1 // pred_region
      %25 = dma.done [#allocation3], 8192
    $region13: #{tpu_custom_call.1} parent=1 // pred_fallthru
      _
    %v26 = vld [vmem:[%s0] sm:$0xff]
    %v27 = vld [vmem:[%s0 + $0x8] sm:$0xff]
    %v28 = vld [vmem:[#allocation2] sm:$0xff]
    %v29 = vld [vmem:[#allocation2 + $0x8] sm:$0xff]
    %v30 = vld [vmem:[#allocation2 + $0x10] sm:$0xff]
    %v31 = vld [vmem:[#allocation2 + $0x18] sm:$0xff]
    %v32 = vld [vmem:[#allocation2 + $0x20] sm:$0xff]
    %v33 = vld [vmem:[#allocation2 + $0x28] sm:$0xff]
    %v34 = vld [vmem:[#allocation2 + $0x30] sm:$0xff]
    %v35 = vld [vmem:[#allocation2 + $0x38] sm:$0xff]
    %v36 = vld [vmem:[#allocation2 + $0x40] sm:$0xff]
    %v37 = vld [vmem:[#allocation2 + $0x48] sm:$0xff]
    %v38 = vld [vmem:[#allocation2 + $0x50] sm:$0xff]
    %v39 = vld [vmem:[#allocation2 + $0x58] sm:$0xff]
    %v40 = vld [vmem:[#allocation2 + $0x60] sm:$0xff]
    %v41 = vld [vmem:[#allocation2 + $0x68] sm:$0xff]
    %v42 = vld [vmem:[#allocation2 + $0x70] sm:$0xff]
    %v43 = vld [vmem:[#allocation2 + $0x78] sm:$0xff]
    %v44 = vld [vmem:[#allocation2 + $0x80] sm:$0xff]
    %v45 = vld [vmem:[#allocation2 + $0x88] sm:$0xff]
    %v46 = vld [vmem:[#allocation2 + $0x90] sm:$0xff]
    %v47 = vld [vmem:[#allocation2 + $0x98] sm:$0xff]
    %v48 = vld [vmem:[#allocation2 + $0xa0] sm:$0xff]
    %v49 = vld [vmem:[#allocation2 + $0xa8] sm:$0xff]
    %v50 = vld [vmem:[#allocation2 + $0xb0] sm:$0xff]
    %v51 = vld [vmem:[#allocation2 + $0xb8] sm:$0xff]
    %v52 = vld [vmem:[#allocation2 + $0xc0] sm:$0xff]
    %v53 = vld [vmem:[#allocation2 + $0xc8] sm:$0xff]
    %v54 = vld [vmem:[#allocation2 + $0xd0] sm:$0xff]
    %v55 = vld [vmem:[#allocation2 + $0xd8] sm:$0xff]
    %v56 = vld [vmem:[#allocation2 + $0xe0] sm:$0xff]
    %v57 = vld [vmem:[#allocation2 + $0xe8] sm:$0xff]
    %v58 = vld [vmem:[#allocation2 + $0xf0] sm:$0xff]
    %v59 = vld [vmem:[#allocation2 + $0xf8] sm:$0xff]
    %v60 = vld [vmem:[#allocation2 + $0x100] sm:$0xff]
    %v61 = vld [vmem:[#allocation2 + $0x108] sm:$0xff]
    %v62 = vld [vmem:[#allocation2 + $0x110] sm:$0xff]
    %v63 = vld [vmem:[#allocation2 + $0x118] sm:$0xff]
    %v64 = vld [vmem:[#allocation2 + $0x120] sm:$0xff]
    %v65 = vld [vmem:[#allocation2 + $0x128] sm:$0xff]
    %v66 = vld [vmem:[#allocation2 + $0x130] sm:$0xff]
    %v67 = vld [vmem:[#allocation2 + $0x138] sm:$0xff]
    %v68 = vld [vmem:[#allocation2 + $0x140] sm:$0xff]
    %v69 = vld [vmem:[#allocation2 + $0x148] sm:$0xff]
    %v70 = vld [vmem:[#allocation2 + $0x150] sm:$0xff]
    %v71 = vld [vmem:[#allocation2 + $0x158] sm:$0xff]
    %v72 = vld [vmem:[#allocation2 + $0x160] sm:$0xff]
    %v73 = vld [vmem:[#allocation2 + $0x168] sm:$0xff]
    %v74 = vld [vmem:[#allocation2 + $0x170] sm:$0xff]
    %v75 = vld [vmem:[#allocation2 + $0x178] sm:$0xff]
    %v76 = vld [vmem:[#allocation2 + $0x180] sm:$0xff]
    %v77 = vld [vmem:[#allocation2 + $0x188] sm:$0xff]
    %v78 = vld [vmem:[#allocation2 + $0x190] sm:$0xff]
    %v79 = vld [vmem:[#allocation2 + $0x198] sm:$0xff]
    %v80 = vld [vmem:[#allocation2 + $0x1a0] sm:$0xff]
    %v81 = vld [vmem:[#allocation2 + $0x1a8] sm:$0xff]
    %v82 = vld [vmem:[#allocation2 + $0x1b0] sm:$0xff]
    %v83 = vld [vmem:[#allocation2 + $0x1b8] sm:$0xff]
    %v84 = vld [vmem:[#allocation2 + $0x1c0] sm:$0xff]
    %v85 = vld [vmem:[#allocation2 + $0x1c8] sm:$0xff]
    %v86 = vld [vmem:[#allocation2 + $0x1d0] sm:$0xff]
    %v87 = vld [vmem:[#allocation2 + $0x1d8] sm:$0xff]
    %v88 = vld [vmem:[#allocation2 + $0x1e0] sm:$0xff]
    %v89 = vld [vmem:[#allocation2 + $0x1e8] sm:$0xff]
    %v90 = vld [vmem:[#allocation2 + $0x1f0] sm:$0xff]
    %v91 = vld [vmem:[#allocation2 + $0x1f8] sm:$0xff]
    %v92 = vlaneseq
    %v93 = vand.u32 %v92, 127
    %v94 = vadd.s32 %v93, 128
    %v95 = vadd.s32 %v93, 256
    %v96 = vadd.s32 %v93, 384
    %97 = vset.pattern.permute.xlu0 0
    %98 = vperm.xlu0 %97, %v26
    %v99 = vpop.permute.xlu0 %98
    %100 = vset.pattern.permute.xlu0 0
    %101 = vperm.xlu0 %100, %v27
    %v102 = vpop.permute.xlu0 %101
    %vm103 = vcmp.eq.s32.totalorder %v93, %v99
    %vm104 = vcmp.eq.s32.totalorder %v94, %v99
    %vm105 = vcmp.eq.s32.totalorder %v95, %v99
    %vm106 = vcmp.eq.s32.totalorder %v96, %v99
    %vm107 = vcmp.eq.s32.totalorder %v93, %v102
    %vm108 = vcmp.eq.s32.totalorder %v94, %v102
    %vm109 = vcmp.eq.s32.totalorder %v95, %v102
    %vm110 = vcmp.eq.s32.totalorder %v96, %v102
    %v111 = vsel %vm103, 1, 0
    %v112 = vsel %vm104, 1, 0
    %v113 = vsel %vm105, 1, 0
    %v114 = vsel %vm106, 1, 0
    %v115 = vsel %vm107, 1, 0
    %v116 = vsel %vm108, 1, 0
    %v117 = vsel %vm109, 1, 0
    %v118 = vsel %vm110, 1, 0
    %v119 = vcvt.s32.f32 %v111
    %v120 = vcvt.s32.f32 %v112
    %v121 = vcvt.s32.f32 %v113
    %v122 = vcvt.s32.f32 %v114
    %v123 = vcvt.s32.f32 %v115
    %v124 = vcvt.s32.f32 %v116
    %v125 = vcvt.s32.f32 %v117
    %v126 = vcvt.s32.f32 %v118
    %127 = vmatprep.subr.mxu0 0.0
    %v128 = vand.u32 %v28, 4294901760
    %129 = vmatpush1.msra.mxu0 %v128
    %130 = vmatprep.subr.mxu0 0.0
    %v131 = vand.u32 %v29, 4294901760
    %132 = vmatpush1.msra.mxu0 %v131
    %133 = vmatprep.subr.mxu0 0.0
    %v134 = vand.u32 %v30, 4294901760
    %135 = vmatpush1.msra.mxu0 %v134
    %136 = vmatprep.subr.mxu0 0.0
    %v137 = vand.u32 %v31, 4294901760
    %138 = vmatpush1.msra.mxu0 %v137
    %139 = vmatprep.subr.mxu0 0.0
    %v140 = vand.u32 %v32, 4294901760
    %141 = vmatpush1.msra.mxu0 %v140
    %142 = vmatprep.subr.mxu0 0.0
    %v143 = vand.u32 %v33, 4294901760
    %144 = vmatpush1.msra.mxu0 %v143
    %145 = vmatprep.subr.mxu0 0.0
    %v146 = vand.u32 %v34, 4294901760
    %147 = vmatpush1.msra.mxu0 %v146
    %148 = vmatprep.subr.mxu0 0.0
    %v149 = vand.u32 %v35, 4294901760
    %150 = vmatpush1.msra.mxu0 %v149
    %151 = vmatprep.subr.mxu0 0.0
    %v152 = vand.u32 %v36, 4294901760
    %153 = vmatpush1.msra.mxu0 %v152
    %154 = vmatprep.subr.mxu0 0.0
    %v155 = vand.u32 %v37, 4294901760
    %156 = vmatpush1.msra.mxu0 %v155
    %157 = vmatprep.subr.mxu0 0.0
    %v158 = vand.u32 %v38, 4294901760
    %159 = vmatpush1.msra.mxu0 %v158
    %160 = vmatprep.subr.mxu0 0.0
    %v161 = vand.u32 %v39, 4294901760
    %162 = vmatpush1.msra.mxu0 %v161
    %163 = vmatprep.subr.mxu0 0.0
    %v164 = vand.u32 %v40, 4294901760
    %165 = vmatpush1.msra.mxu0 %v164
    %166 = vmatprep.subr.mxu0 0.0
    %v167 = vand.u32 %v41, 4294901760
    %168 = vmatpush1.msra.mxu0 %v167
    %169 = vmatprep.subr.mxu0 0.0
    %v170 = vand.u32 %v42, 4294901760
    %171 = vmatpush1.msra.mxu0 %v170
    %172 = vmatprep.subr.mxu0 0.0
    %v173 = vand.u32 %v43, 4294901760
    %174 = vmatpush1.msra.mxu0 %v173
    %175 = vmatprep.subr.mxu0 0.0
    %v176 = vand.u32 %v44, 4294901760
    %177 = vmatpush1.msra.mxu0 %v176
    %178 = vmatprep.subr.mxu0 0.0
    %v179 = vand.u32 %v45, 4294901760
    %180 = vmatpush1.msra.mxu0 %v179
    %181 = vmatprep.subr.mxu0 0.0
    %v182 = vand.u32 %v46, 4294901760
    %183 = vmatpush1.msra.mxu0 %v182
    %184 = vmatprep.subr.mxu0 0.0
    %v185 = vand.u32 %v47, 4294901760
    %186 = vmatpush1.msra.mxu0 %v185
    %187 = vmatprep.subr.mxu0 0.0
    %v188 = vand.u32 %v48, 4294901760
    %189 = vmatpush1.msra.mxu0 %v188
    %190 = vmatprep.subr.mxu0 0.0
    %v191 = vand.u32 %v49, 4294901760
    %192 = vmatpush1.msra.mxu0 %v191
    %193 = vmatprep.subr.mxu0 0.0
    %v194 = vand.u32 %v50, 4294901760
    %195 = vmatpush1.msra.mxu0 %v194
    %196 = vmatprep.subr.mxu0 0.0
    %v197 = vand.u32 %v51, 4294901760
    %198 = vmatpush1.msra.mxu0 %v197
    %199 = vmatprep.subr.mxu0 0.0
    %v200 = vand.u32 %v52, 4294901760
    %201 = vmatpush1.msra.mxu0 %v200
    %202 = vmatprep.subr.mxu0 0.0
    %v203 = vand.u32 %v53, 4294901760
    %204 = vmatpush1.msra.mxu0 %v203
    %205 = vmatprep.subr.mxu0 0.0
    %v206 = vand.u32 %v54, 4294901760
    %207 = vmatpush1.msra.mxu0 %v206
    %208 = vmatprep.subr.mxu0 0.0
    %v209 = vand.u32 %v55, 4294901760
    %210 = vmatpush1.msra.mxu0 %v209
    %211 = vmatprep.subr.mxu0 0.0
    %v212 = vand.u32 %v56, 4294901760
    %213 = vmatpush1.msra.mxu0 %v212
    %214 = vmatprep.subr.mxu0 0.0
    %v215 = vand.u32 %v57, 4294901760
    %216 = vmatpush1.msra.mxu0 %v215
    %217 = vmatprep.subr.mxu0 0.0
    %v218 = vand.u32 %v58, 4294901760
    %219 = vmatpush1.msra.mxu0 %v218
    %220 = vmatprep.subr.mxu0 0.0
    %v221 = vand.u32 %v59, 4294901760
    %222 = vmatpush1.msra.mxu0 %v221
    %v223 = vand.u32 %v120, 4294901760
    %v224 = vsub.f32 %v120, %v223
    %v225 = vand.u32 %v224, 4294901760
    %v226 = vsub.f32 %v224, %v225
    %v227 = vand.u32 %v226, 4294901760
    %228 = vmatprep.mubr.f32.mxu0 %v227
    %v229 = vand.u32 %v119, 4294901760
    %v230 = vsub.f32 %v119, %v229
    %v231 = vand.u32 %v230, 4294901760
    %v232 = vsub.f32 %v230, %v231
    %v233 = vand.u32 %v232, 4294901760
    %234 = vmatmul.mubr.f32.gmra.mrb[0].mxu0 %v233
    %v235 = vpop.f32.mrb[0].mxu0
    %v236 = vadd.f32 0.0, %v235
    %v237 = vpop.f32.mrb[0].mxu0
    %v238 = vand.u32 %v124, 4294901760
    %v239 = vsub.f32 %v124, %v238
    %v240 = vand.u32 %v239, 4294901760
    %v241 = vsub.f32 %v239, %v240
    %v242 = vand.u32 %v241, 4294901760
    %243 = vmatprep.mubr.f32.mxu0 %v242
    %v244 = vand.u32 %v123, 4294901760
    %v245 = vsub.f32 %v123, %v244
    %v246 = vand.u32 %v245, 4294901760
    %v247 = vsub.f32 %v245, %v246
    %v248 = vand.u32 %v247, 4294901760
    %249 = vmatmul.mubr.f32.gmra.mrb[0].mxu0 %v248
    %v250 = vpop.f32.mrb[0].mxu0
    %v251 = vadd.f32 0.0, %v250
    %v252 = vpop.f32.mrb[0].mxu0
    %253 = vdwg.mxu0
    %254 = vmatprep.subr.mxu0 0.0
    %v255 = vand.u32 %v28, 4294901760
    %v256 = vsub.f32 %v28, %v255
    %v257 = vand.u32 %v256, 4294901760
    %v258 = vsub.f32 %v256, %v257
    %v259 = vand.u32 %v258, 4294901760
    %260 = vmatpush1.msra.mxu0 %v259
    %261 = vmatprep.subr.mxu0 0.0
    %v262 = vand.u32 %v29, 4294901760
    %v263 = vsub.f32 %v29, %v262
    %v264 = vand.u32 %v263, 4294901760
    %v265 = vsub.f32 %v263, %v264
    %v266 = vand.u32 %v265, 4294901760
    %267 = vmatpush1.msra.mxu0 %v266
    %268 = vmatprep.subr.mxu0 0.0
    %v269 = vand.u32 %v30, 4294901760
    %v270 = vsub.f32 %v30, %v269
    %v271 = vand.u32 %v270, 4294901760
    %v272 = vsub.f32 %v270, %v271
    %v273 = vand.u32 %v272, 4294901760
    %274 = vmatpush1.msra.mxu0 %v273
    %275 = vmatprep.subr.mxu0 0.0
    %v276 = vand.u32 %v31, 4294901760
    %v277 = vsub.f32 %v31, %v276
    %v278 = vand.u32 %v277, 4294901760
    %v279 = vsub.f32 %v277, %v278
    %v280 = vand.u32 %v279, 4294901760
    %281 = vmatpush1.msra.mxu0 %v280
    %282 = vmatprep.subr.mxu0 0.0
    %v283 = vand.u32 %v32, 4294901760
    %v284 = vsub.f32 %v32, %v283
    %v285 = vand.u32 %v284, 4294901760
    %v286 = vsub.f32 %v284, %v285
    %v287 = vand.u32 %v286, 4294901760
    %288 = vmatpush1.msra.mxu0 %v287
    %289 = vmatprep.subr.mxu0 0.0
    %v290 = vand.u32 %v33, 4294901760
    %v291 = vsub.f32 %v33, %v290
    %v292 = vand.u32 %v291, 4294901760
    %v293 = vsub.f32 %v291, %v292
    %v294 = vand.u32 %v293, 4294901760
    %295 = vmatpush1.msra.mxu0 %v294
    %296 = vmatprep.subr.mxu0 0.0
    %v297 = vand.u32 %v34, 4294901760
    %v298 = vsub.f32 %v34, %v297
    %v299 = vand.u32 %v298, 4294901760
    %v300 = vsub.f32 %v298, %v299
    %v301 = vand.u32 %v300, 4294901760
    %302 = vmatpush1.msra.mxu0 %v301
    %303 = vmatprep.subr.mxu0 0.0
    %v304 = vand.u32 %v35, 4294901760
    %v305 = vsub.f32 %v35, %v304
    %v306 = vand.u32 %v305, 4294901760
    %v307 = vsub.f32 %v305, %v306
    %v308 = vand.u32 %v307, 4294901760
    %309 = vmatpush1.msra.mxu0 %v308
    %310 = vmatprep.subr.mxu0 0.0
    %v311 = vand.u32 %v36, 4294901760
    %v312 = vsub.f32 %v36, %v311
    %v313 = vand.u32 %v312, 4294901760
    %v314 = vsub.f32 %v312, %v313
    %v315 = vand.u32 %v314, 4294901760
    %316 = vmatpush1.msra.mxu0 %v315
    %317 = vmatprep.subr.mxu0 0.0
    %v318 = vand.u32 %v37, 4294901760
    %v319 = vsub.f32 %v37, %v318
    %v320 = vand.u32 %v319, 4294901760
    %v321 = vsub.f32 %v319, %v320
    %v322 = vand.u32 %v321, 4294901760
    %323 = vmatpush1.msra.mxu0 %v322
    %324 = vmatprep.subr.mxu0 0.0
    %v325 = vand.u32 %v38, 4294901760
    %v326 = vsub.f32 %v38, %v325
    %v327 = vand.u32 %v326, 4294901760
    %v328 = vsub.f32 %v326, %v327
    %v329 = vand.u32 %v328, 4294901760
    %330 = vmatpush1.msra.mxu0 %v329
    %331 = vmatprep.subr.mxu0 0.0
    %v332 = vand.u32 %v39, 4294901760
    %v333 = vsub.f32 %v39, %v332
    %v334 = vand.u32 %v333, 4294901760
    %v335 = vsub.f32 %v333, %v334
    %v336 = vand.u32 %v335, 4294901760
    %337 = vmatpush1.msra.mxu0 %v336
    %338 = vmatprep.subr.mxu0 0.0
    %v339 = vand.u32 %v40, 4294901760
    %v340 = vsub.f32 %v40, %v339
    %v341 = vand.u32 %v340, 4294901760
    %v342 = vsub.f32 %v340, %v341
    %v343 = vand.u32 %v342, 4294901760
    %344 = vmatpush1.msra.mxu0 %v343
    %345 = vmatprep.subr.mxu0 0.0
    %v346 = vand.u32 %v41, 4294901760
    %v347 = vsub.f32 %v41, %v346
    %v348 = vand.u32 %v347, 4294901760
    %v349 = vsub.f32 %v347, %v348
    %v350 = vand.u32 %v349, 4294901760
    %351 = vmatpush1.msra.mxu0 %v350
    %352 = vmatprep.subr.mxu0 0.0
    %v353 = vand.u32 %v42, 4294901760
    %v354 = vsub.f32 %v42, %v353
    %v355 = vand.u32 %v354, 4294901760
    %v356 = vsub.f32 %v354, %v355
    %v357 = vand.u32 %v356, 4294901760
    %358 = vmatpush1.msra.mxu0 %v357
    %359 = vmatprep.subr.mxu0 0.0
    %v360 = vand.u32 %v43, 4294901760
    %v361 = vsub.f32 %v43, %v360
    %v362 = vand.u32 %v361, 4294901760
    %v363 = vsub.f32 %v361, %v362
    %v364 = vand.u32 %v363, 4294901760
    %365 = vmatpush1.msra.mxu0 %v364
    %366 = vmatprep.subr.mxu0 0.0
    %v367 = vand.u32 %v44, 4294901760
    %v368 = vsub.f32 %v44, %v367
    %v369 = vand.u32 %v368, 4294901760
    %v370 = vsub.f32 %v368, %v369
    %v371 = vand.u32 %v370, 4294901760
    %372 = vmatpush1.msra.mxu0 %v371
    %373 = vmatprep.subr.mxu0 0.0
    %v374 = vand.u32 %v45, 4294901760
    %v375 = vsub.f32 %v45, %v374
    %v376 = vand.u32 %v375, 4294901760
    %v377 = vsub.f32 %v375, %v376
    %v378 = vand.u32 %v377, 4294901760
    %379 = vmatpush1.msra.mxu0 %v378
    %380 = vmatprep.subr.mxu0 0.0
    %v381 = vand.u32 %v46, 4294901760
    %v382 = vsub.f32 %v46, %v381
    %v383 = vand.u32 %v382, 4294901760
    %v384 = vsub.f32 %v382, %v383
    %v385 = vand.u32 %v384, 4294901760
    %386 = vmatpush1.msra.mxu0 %v385
    %387 = vmatprep.subr.mxu0 0.0
    %v388 = vand.u32 %v47, 4294901760
    %v389 = vsub.f32 %v47, %v388
    %v390 = vand.u32 %v389, 4294901760
    %v391 = vsub.f32 %v389, %v390
    %v392 = vand.u32 %v391, 4294901760
    %393 = vmatpush1.msra.mxu0 %v392
    %394 = vmatprep.subr.mxu0 0.0
    %v395 = vand.u32 %v48, 4294901760
    %v396 = vsub.f32 %v48, %v395
    %v397 = vand.u32 %v396, 4294901760
    %v398 = vsub.f32 %v396, %v397
    %v399 = vand.u32 %v398, 4294901760
    %400 = vmatpush1.msra.mxu0 %v399
    %401 = vmatprep.subr.mxu0 0.0
    %v402 = vand.u32 %v49, 4294901760
    %v403 = vsub.f32 %v49, %v402
    %v404 = vand.u32 %v403, 4294901760
    %v405 = vsub.f32 %v403, %v404
    %v406 = vand.u32 %v405, 4294901760
    %407 = vmatpush1.msra.mxu0 %v406
    %408 = vmatprep.subr.mxu0 0.0
    %v409 = vand.u32 %v50, 4294901760
    %v410 = vsub.f32 %v50, %v409
    %v411 = vand.u32 %v410, 4294901760
    %v412 = vsub.f32 %v410, %v411
    %v413 = vand.u32 %v412, 4294901760
    %414 = vmatpush1.msra.mxu0 %v413
    %415 = vmatprep.subr.mxu0 0.0
    %v416 = vand.u32 %v51, 4294901760
    %v417 = vsub.f32 %v51, %v416
    %v418 = vand.u32 %v417, 4294901760
    %v419 = vsub.f32 %v417, %v418
    %v420 = vand.u32 %v419, 4294901760
    %421 = vmatpush1.msra.mxu0 %v420
    %422 = vmatprep.subr.mxu0 0.0
    %v423 = vand.u32 %v52, 4294901760
    %v424 = vsub.f32 %v52, %v423
    %v425 = vand.u32 %v424, 4294901760
    %v426 = vsub.f32 %v424, %v425
    %v427 = vand.u32 %v426, 4294901760
    %428 = vmatpush1.msra.mxu0 %v427
    %429 = vmatprep.subr.mxu0 0.0
    %v430 = vand.u32 %v53, 4294901760
    %v431 = vsub.f32 %v53, %v430
    %v432 = vand.u32 %v431, 4294901760
    %v433 = vsub.f32 %v431, %v432
    %v434 = vand.u32 %v433, 4294901760
    %435 = vmatpush1.msra.mxu0 %v434
    %436 = vmatprep.subr.mxu0 0.0
    %v437 = vand.u32 %v54, 4294901760
    %v438 = vsub.f32 %v54, %v437
    %v439 = vand.u32 %v438, 4294901760
    %v440 = vsub.f32 %v438, %v439
    %v441 = vand.u32 %v440, 4294901760
    %442 = vmatpush1.msra.mxu0 %v441
    %443 = vmatprep.subr.mxu0 0.0
    %v444 = vand.u32 %v55, 4294901760
    %v445 = vsub.f32 %v55, %v444
    %v446 = vand.u32 %v445, 4294901760
    %v447 = vsub.f32 %v445, %v446
    %v448 = vand.u32 %v447, 4294901760
    %449 = vmatpush1.msra.mxu0 %v448
    %450 = vmatprep.subr.mxu0 0.0
    %v451 = vand.u32 %v56, 4294901760
    %v452 = vsub.f32 %v56, %v451
    %v453 = vand.u32 %v452, 4294901760
    %v454 = vsub.f32 %v452, %v453
    %v455 = vand.u32 %v454, 4294901760
    %456 = vmatpush1.msra.mxu0 %v455
    %457 = vmatprep.subr.mxu0 0.0
    %v458 = vand.u32 %v57, 4294901760
    %v459 = vsub.f32 %v57, %v458
    %v460 = vand.u32 %v459, 4294901760
    %v461 = vsub.f32 %v459, %v460
    %v462 = vand.u32 %v461, 4294901760
    %463 = vmatpush1.msra.mxu0 %v462
    %464 = vmatprep.subr.mxu0 0.0
    %v465 = vand.u32 %v58, 4294901760
    %v466 = vsub.f32 %v58, %v465
    %v467 = vand.u32 %v466, 4294901760
    %v468 = vsub.f32 %v466, %v467
    %v469 = vand.u32 %v468, 4294901760
    %470 = vmatpush1.msra.mxu0 %v469
    %471 = vmatprep.subr.mxu0 0.0
    %v472 = vand.u32 %v59, 4294901760
    %v473 = vsub.f32 %v59, %v472
    %v474 = vand.u32 %v473, 4294901760
    %v475 = vsub.f32 %v473, %v474
    %v476 = vand.u32 %v475, 4294901760
    %477 = vmatpush1.msra.mxu0 %v476
    %v478 = vand.u32 %v120, 4294901760
    %479 = vmatprep.mubr.f32.mxu0 %v478
    %v480 = vand.u32 %v119, 4294901760
    %481 = vmatmul.mubr.f32.gmra.mrb[0].mxu0 %v480
    %v482 = vpop.f32.mrb[0].mxu0
    %v483 = vadd.f32 %v236, %v482
    %v484 = vpop.f32.mrb[0].mxu0
    %v485 = vand.u32 %v124, 4294901760
    %486 = vmatprep.mubr.f32.mxu0 %v485
    %v487 = vand.u32 %v123, 4294901760
    %488 = vmatmul.mubr.f32.gmra.mrb[0].mxu0 %v487
    %v489 = vpop.f32.mrb[0].mxu0
    %v490 = vadd.f32 %v251, %v489
    %v491 = vpop.f32.mrb[0].mxu0
    %492 = vdwg.mxu0
    %493 = vmatprep.subr.mxu0 0.0
    %v494 = vand.u32 %v28, 4294901760
    %v495 = vsub.f32 %v28, %v494
    %496 = vmatpush1.msra.mxu0 %v495
    %497 = vmatprep.subr.mxu0 0.0
    %v498 = vand.u32 %v29, 4294901760
    %v499 = vsub.f32 %v29, %v498
    %500 = vmatpush1.msra.mxu0 %v499
    %501 = vmatprep.subr.mxu0 0.0
    %v502 = vand.u32 %v30, 4294901760
    %v503 = vsub.f32 %v30, %v502
    %504 = vmatpush1.msra.mxu0 %v503
    %505 = vmatprep.subr.mxu0 0.0
    %v506 = vand.u32 %v31, 4294901760
    %v507 = vsub.f32 %v31, %v506
    %508 = vmatpush1.msra.mxu0 %v507
    %509 = vmatprep.subr.mxu0 0.0
    %v510 = vand.u32 %v32, 4294901760
    %v511 = vsub.f32 %v32, %v510
    %512 = vmatpush1.msra.mxu0 %v511
    %513 = vmatprep.subr.mxu0 0.0
    %v514 = vand.u32 %v33, 4294901760
    %v515 = vsub.f32 %v33, %v514
    %516 = vmatpush1.msra.mxu0 %v515
    %517 = vmatprep.subr.mxu0 0.0
    %v518 = vand.u32 %v34, 4294901760
    %v519 = vsub.f32 %v34, %v518
    %520 = vmatpush1.msra.mxu0 %v519
    %521 = vmatprep.subr.mxu0 0.0
    %v522 = vand.u32 %v35, 4294901760
    %v523 = vsub.f32 %v35, %v522
    %524 = vmatpush1.msra.mxu0 %v523
    %525 = vmatprep.subr.mxu0 0.0
    %v526 = vand.u32 %v36, 4294901760
    %v527 = vsub.f32 %v36, %v526
    %528 = vmatpush1.msra.mxu0 %v527
    %529 = vmatprep.subr.mxu0 0.0
    %v530 = vand.u32 %v37, 4294901760
    %v531 = vsub.f32 %v37, %v530
    %532 = vmatpush1.msra.mxu0 %v531
    %533 = vmatprep.subr.mxu0 0.0
    %v534 = vand.u32 %v38, 4294901760
    %v535 = vsub.f32 %v38, %v534
    %536 = vmatpush1.msra.mxu0 %v535
    %537 = vmatprep.subr.mxu0 0.0
    %v538 = vand.u32 %v39, 4294901760
    %v539 = vsub.f32 %v39, %v538
    %540 = vmatpush1.msra.mxu0 %v539
    %541 = vmatprep.subr.mxu0 0.0
    %v542 = vand.u32 %v40, 4294901760
    %v543 = vsub.f32 %v40, %v542
    %544 = vmatpush1.msra.mxu0 %v543
    %545 = vmatprep.subr.mxu0 0.0
    %v546 = vand.u32 %v41, 4294901760
    %v547 = vsub.f32 %v41, %v546
    %548 = vmatpush1.msra.mxu0 %v547
    %549 = vmatprep.subr.mxu0 0.0
    %v550 = vand.u32 %v42, 4294901760
    %v551 = vsub.f32 %v42, %v550
    %552 = vmatpush1.msra.mxu0 %v551
    %553 = vmatprep.subr.mxu0 0.0
    %v554 = vand.u32 %v43, 4294901760
    %v555 = vsub.f32 %v43, %v554
    %556 = vmatpush1.msra.mxu0 %v555
    %557 = vmatprep.subr.mxu0 0.0
    %v558 = vand.u32 %v44, 4294901760
    %v559 = vsub.f32 %v44, %v558
    %560 = vmatpush1.msra.mxu0 %v559
    %561 = vmatprep.subr.mxu0 0.0
    %v562 = vand.u32 %v45, 4294901760
    %v563 = vsub.f32 %v45, %v562
    %564 = vmatpush1.msra.mxu0 %v563
    %565 = vmatprep.subr.mxu0 0.0
    %v566 = vand.u32 %v46, 4294901760
    %v567 = vsub.f32 %v46, %v566
    %568 = vmatpush1.msra.mxu0 %v567
    %569 = vmatprep.subr.mxu0 0.0
    %v570 = vand.u32 %v47, 4294901760
    %v571 = vsub.f32 %v47, %v570
    %572 = vmatpush1.msra.mxu0 %v571
    %573 = vmatprep.subr.mxu0 0.0
    %v574 = vand.u32 %v48, 4294901760
    %v575 = vsub.f32 %v48, %v574
    %576 = vmatpush1.msra.mxu0 %v575
    %577 = vmatprep.subr.mxu0 0.0
    %v578 = vand.u32 %v49, 4294901760
    %v579 = vsub.f32 %v49, %v578
    %580 = vmatpush1.msra.mxu0 %v579
    %581 = vmatprep.subr.mxu0 0.0
    %v582 = vand.u32 %v50, 4294901760
    %v583 = vsub.f32 %v50, %v582
    %584 = vmatpush1.msra.mxu0 %v583
    %585 = vmatprep.subr.mxu0 0.0
    %v586 = vand.u32 %v51, 4294901760
    %v587 = vsub.f32 %v51, %v586
    %588 = vmatpush1.msra.mxu0 %v587
    %589 = vmatprep.subr.mxu0 0.0
    %v590 = vand.u32 %v52, 4294901760
    %v591 = vsub.f32 %v52, %v590
    %592 = vmatpush1.msra.mxu0 %v591
    %593 = vmatprep.subr.mxu0 0.0
    %v594 = vand.u32 %v53, 4294901760
    %v595 = vsub.f32 %v53, %v594
    %596 = vmatpush1.msra.mxu0 %v595
    %597 = vmatprep.subr.mxu0 0.0
    %v598 = vand.u32 %v54, 4294901760
    %v599 = vsub.f32 %v54, %v598
    %600 = vmatpush1.msra.mxu0 %v599
    %601 = vmatprep.subr.mxu0 0.0
    %v602 = vand.u32 %v55, 4294901760
    %v603 = vsub.f32 %v55, %v602
    %604 = vmatpush1.msra.mxu0 %v603
    %605 = vmatprep.subr.mxu0 0.0
    %v606 = vand.u32 %v56, 4294901760
    %v607 = vsub.f32 %v56, %v606
    %608 = vmatpush1.msra.mxu0 %v607
    %609 = vmatprep.subr.mxu0 0.0
    %v610 = vand.u32 %v57, 4294901760
    %v611 = vsub.f32 %v57, %v610
    %612 = vmatpush1.msra.mxu0 %v611
    %613 = vmatprep.subr.mxu0 0.0
    %v614 = vand.u32 %v58, 4294901760
    %v615 = vsub.f32 %v58, %v614
    %616 = vmatpush1.msra.mxu0 %v615
    %617 = vmatprep.subr.mxu0 0.0
    %v618 = vand.u32 %v59, 4294901760
    %v619 = vsub.f32 %v59, %v618
    %620 = vmatpush1.msra.mxu0 %v619
    %v621 = vand.u32 %v120, 4294901760
    %v622 = vsub.f32 %v120, %v621
    %623 = vmatprep.mubr.f32.mxu0 %v622
    %v624 = vand.u32 %v119, 4294901760
    %v625 = vsub.f32 %v119, %v624
    %626 = vmatmul.mubr.f32.gmra.mrb[0].mxu0 %v625
    %v627 = vpop.f32.mrb[0].mxu0
    %v628 = vadd.f32 %v483, %v627
    %v629 = vpop.f32.mrb[0].mxu0
    %v630 = vand.u32 %v124, 4294901760
    %v631 = vsub.f32 %v124, %v630
    %632 = vmatprep.mubr.f32.mxu0 %v631
    %v633 = vand.u32 %v123, 4294901760
    %v634 = vsub.f32 %v123, %v633
    %635 = vmatmul.mubr.f32.gmra.mrb[0].mxu0 %v634
    %v636 = vpop.f32.mrb[0].mxu0
    %v637 = vadd.f32 %v490, %v636
    %v638 = vpop.f32.mrb[0].mxu0
    %639 = vdwg.mxu0
    %640 = vmatprep.subr.mxu0 0.0
    %v641 = vand.u32 %v28, 4294901760
    %642 = vmatpush1.msra.mxu0 %v641
    %643 = vmatprep.subr.mxu0 0.0
    %v644 = vand.u32 %v29, 4294901760
    %645 = vmatpush1.msra.mxu0 %v644
    %646 = vmatprep.subr.mxu0 0.0
    %v647 = vand.u32 %v30, 4294901760
    %648 = vmatpush1.msra.mxu0 %v647
    %649 = vmatprep.subr.mxu0 0.0
    %v650 = vand.u32 %v31, 4294901760
    %651 = vmatpush1.msra.mxu0 %v650
    %652 = vmatprep.subr.mxu0 0.0
    %v653 = vand.u32 %v32, 4294901760
    %654 = vmatpush1.msra.mxu0 %v653
    %655 = vmatprep.subr.mxu0 0.0
    %v656 = vand.u32 %v33, 4294901760
    %657 = vmatpush1.msra.mxu0 %v656
    %658 = vmatprep.subr.mxu0 0.0
    %v659 = vand.u32 %v34, 4294901760
    %660 = vmatpush1.msra.mxu0 %v659
    %661 = vmatprep.subr.mxu0 0.0
    %v662 = vand.u32 %v35, 4294901760
    %663 = vmatpush1.msra.mxu0 %v662
    %664 = vmatprep.subr.mxu0 0.0
    %v665 = vand.u32 %v36, 4294901760
    %666 = vmatpush1.msra.mxu0 %v665
    %667 = vmatprep.subr.mxu0 0.0
    %v668 = vand.u32 %v37, 4294901760
    %669 = vmatpush1.msra.mxu0 %v668
    %670 = vmatprep.subr.mxu0 0.0
    %v671 = vand.u32 %v38, 4294901760
    %672 = vmatpush1.msra.mxu0 %v671
    %673 = vmatprep.subr.mxu0 0.0
    %v674 = vand.u32 %v39, 4294901760
    %675 = vmatpush1.msra.mxu0 %v674
    %676 = vmatprep.subr.mxu0 0.0
    %v677 = vand.u32 %v40, 4294901760
    %678 = vmatpush1.msra.mxu0 %v677
    %679 = vmatprep.subr.mxu0 0.0
    %v680 = vand.u32 %v41, 4294901760
    %681 = vmatpush1.msra.mxu0 %v680
    %682 = vmatprep.subr.mxu0 0.0
    %v683 = vand.u32 %v42, 4294901760
    %684 = vmatpush1.msra.mxu0 %v683
    %685 = vmatprep.subr.mxu0 0.0
    %v686 = vand.u32 %v43, 4294901760
    %687 = vmatpush1.msra.mxu0 %v686
    %688 = vmatprep.subr.mxu0 0.0
    %v689 = vand.u32 %v44, 4294901760
    %690 = vmatpush1.msra.mxu0 %v689
    %691 = vmatprep.subr.mxu0 0.0
    %v692 = vand.u32 %v45, 4294901760
    %693 = vmatpush1.msra.mxu0 %v692
    %694 = vmatprep.subr.mxu0 0.0
    %v695 = vand.u32 %v46, 4294901760
    %696 = vmatpush1.msra.mxu0 %v695
    %697 = vmatprep.subr.mxu0 0.0
    %v698 = vand.u32 %v47, 4294901760
    %699 = vmatpush1.msra.mxu0 %v698
    %700 = vmatprep.subr.mxu0 0.0
    %v701 = vand.u32 %v48, 4294901760
    %702 = vmatpush1.msra.mxu0 %v701
    %703 = vmatprep.subr.mxu0 0.0
    %v704 = vand.u32 %v49, 4294901760
    %705 = vmatpush1.msra.mxu0 %v704
    %706 = vmatprep.subr.mxu0 0.0
    %v707 = vand.u32 %v50, 4294901760
    %708 = vmatpush1.msra.mxu0 %v707
    %709 = vmatprep.subr.mxu0 0.0
    %v710 = vand.u32 %v51, 4294901760
    %711 = vmatpush1.msra.mxu0 %v710
    %712 = vmatprep.subr.mxu0 0.0
    %v713 = vand.u32 %v52, 4294901760
    %714 = vmatpush1.msra.mxu0 %v713
    %715 = vmatprep.subr.mxu0 0.0
    %v716 = vand.u32 %v53, 4294901760
    %717 = vmatpush1.msra.mxu0 %v716
    %718 = vmatprep.subr.mxu0 0.0
    %v719 = vand.u32 %v54, 4294901760
    %720 = vmatpush1.msra.mxu0 %v719
    %721 = vmatprep.subr.mxu0 0.0
    %v722 = vand.u32 %v55, 4294901760
    %723 = vmatpush1.msra.mxu0 %v722
    %724 = vmatprep.subr.mxu0 0.0
    %v725 = vand.u32 %v56, 4294901760
    %726 = vmatpush1.msra.mxu0 %v725
    %727 = vmatprep.subr.mxu0 0.0
    %v728 = vand.u32 %v57, 4294901760
    %729 = vmatpush1.msra.mxu0 %v728
    %730 = vmatprep.subr.mxu0 0.0
    %v731 = vand.u32 %v58, 4294901760
    %732 = vmatpush1.msra.mxu0 %v731
    %733 = vmatprep.subr.mxu0 0.0
    %v734 = vand.u32 %v59, 4294901760
    %735 = vmatpush1.msra.mxu0 %v734
    %v736 = vand.u32 %v120, 4294901760
    %v737 = vsub.f32 %v120, %v736
    %v738 = vand.u32 %v737, 4294901760
    %739 = vmatprep.mubr.f32.mxu0 %v738
    %v740 = vand.u32 %v119, 4294901760
    %v741 = vsub.f32 %v119, %v740
    %v742 = vand.u32 %v741, 4294901760
    %743 = vmatmul.mubr.f32.gmra.mrb[0].mxu0 %v742
    %v744 = vpop.f32.mrb[0].mxu0
    %v745 = vadd.f32 %v628, %v744
    %v746 = vpop.f32.mrb[0].mxu0
    %v747 = vand.u32 %v124, 4294901760
    %v748 = vsub.f32 %v124, %v747
    %v749 = vand.u32 %v748, 4294901760
    %750 = vmatprep.mubr.f32.mxu0 %v749
    %v751 = vand.u32 %v123, 4294901760
    %v752 = vsub.f32 %v123, %v751
    %v753 = vand.u32 %v752, 4294901760
    %754 = vmatmul.mubr.f32.gmra.mrb[0].mxu0 %v753
    %v755 = vpop.f32.mrb[0].mxu0
    %v756 = vadd.f32 %v637, %v755
    %v757 = vpop.f32.mrb[0].mxu0
    %758 = vdwg.mxu0
    %759 = vmatprep.subr.mxu0 0.0
    %v760 = vand.u32 %v28, 4294901760
    %v761 = vsub.f32 %v28, %v760
    %v762 = vand.u32 %v761, 4294901760
    %763 = vmatpush1.msra.mxu0 %v762
    %764 = vmatprep.subr.mxu0 0.0
    %v765 = vand.u32 %v29, 4294901760
    %v766 = vsub.f32 %v29, %v765
    %v767 = vand.u32 %v766, 4294901760
    %768 = vmatpush1.msra.mxu0 %v767
    %769 = vmatprep.subr.mxu0 0.0
    %v770 = vand.u32 %v30, 4294901760
    %v771 = vsub.f32 %v30, %v770
    %v772 = vand.u32 %v771, 4294901760
    %773 = vmatpush1.msra.mxu0 %v772
    %774 = vmatprep.subr.mxu0 0.0
    %v775 = vand.u32 %v31, 4294901760
    %v776 = vsub.f32 %v31, %v775
    %v777 = vand.u32 %v776, 4294901760
    %778 = vmatpush1.msra.mxu0 %v777
    %779 = vmatprep.subr.mxu0 0.0
    %v780 = vand.u32 %v32, 4294901760
    %v781 = vsub.f32 %v32, %v780
    %v782 = vand.u32 %v781, 4294901760
    %783 = vmatpush1.msra.mxu0 %v782
    %784 = vmatprep.subr.mxu0 0.0
    %v785 = vand.u32 %v33, 4294901760
    %v786 = vsub.f32 %v33, %v785
    %v787 = vand.u32 %v786, 4294901760
    %788 = vmatpush1.msra.mxu0 %v787
    %789 = vmatprep.subr.mxu0 0.0
    %v790 = vand.u32 %v34, 4294901760
    %v791 = vsub.f32 %v34, %v790
    %v792 = vand.u32 %v791, 4294901760
    %793 = vmatpush1.msra.mxu0 %v792
    %794 = vmatprep.subr.mxu0 0.0
    %v795 = vand.u32 %v35, 4294901760
    %v796 = vsub.f32 %v35, %v795
    %v797 = vand.u32 %v796, 4294901760
    %798 = vmatpush1.msra.mxu0 %v797
    %799 = vmatprep.subr.mxu0 0.0
    %v800 = vand.u32 %v36, 4294901760
    %v801 = vsub.f32 %v36, %v800
    %v802 = vand.u32 %v801, 4294901760
    %803 = vmatpush1.msra.mxu0 %v802
    %804 = vmatprep.subr.mxu0 0.0
    %v805 = vand.u32 %v37, 4294901760
    %v806 = vsub.f32 %v37, %v805
    %v807 = vand.u32 %v806, 4294901760
    %808 = vmatpush1.msra.mxu0 %v807
    %809 = vmatprep.subr.mxu0 0.0
    %v810 = vand.u32 %v38, 4294901760
    %v811 = vsub.f32 %v38, %v810
    %v812 = vand.u32 %v811, 4294901760
    %813 = vmatpush1.msra.mxu0 %v812
    %814 = vmatprep.subr.mxu0 0.0
    %v815 = vand.u32 %v39, 4294901760
    %v816 = vsub.f32 %v39, %v815
    %v817 = vand.u32 %v816, 4294901760
    %818 = vmatpush1.msra.mxu0 %v817
    %819 = vmatprep.subr.mxu0 0.0
    %v820 = vand.u32 %v40, 4294901760
    %v821 = vsub.f32 %v40, %v820
    %v822 = vand.u32 %v821, 4294901760
    %823 = vmatpush1.msra.mxu0 %v822
    %824 = vmatprep.subr.mxu0 0.0
    %v825 = vand.u32 %v41, 4294901760
    %v826 = vsub.f32 %v41, %v825
    %v827 = vand.u32 %v826, 4294901760
    %828 = vmatpush1.msra.mxu0 %v827
    %829 = vmatprep.subr.mxu0 0.0
    %v830 = vand.u32 %v42, 4294901760
    %v831 = vsub.f32 %v42, %v830
    %v832 = vand.u32 %v831, 4294901760
    %833 = vmatpush1.msra.mxu0 %v832
    %834 = vmatprep.subr.mxu0 0.0
    %v835 = vand.u32 %v43, 4294901760
    %v836 = vsub.f32 %v43, %v835
    %v837 = vand.u32 %v836, 4294901760
    %838 = vmatpush1.msra.mxu0 %v837
    %839 = vmatprep.subr.mxu0 0.0
    %v840 = vand.u32 %v44, 4294901760
    %v841 = vsub.f32 %v44, %v840
    %v842 = vand.u32 %v841, 4294901760
    %843 = vmatpush1.msra.mxu0 %v842
    %844 = vmatprep.subr.mxu0 0.0
    %v845 = vand.u32 %v45, 4294901760
    %v846 = vsub.f32 %v45, %v845
    %v847 = vand.u32 %v846, 4294901760
    %848 = vmatpush1.msra.mxu0 %v847
    %849 = vmatprep.subr.mxu0 0.0
    %v850 = vand.u32 %v46, 4294901760
    %v851 = vsub.f32 %v46, %v850
    %v852 = vand.u32 %v851, 4294901760
    %853 = vmatpush1.msra.mxu0 %v852
    %854 = vmatprep.subr.mxu0 0.0
    %v855 = vand.u32 %v47, 4294901760
    %v856 = vsub.f32 %v47, %v855
    %v857 = vand.u32 %v856, 4294901760
    %858 = vmatpush1.msra.mxu0 %v857
    %859 = vmatprep.subr.mxu0 0.0
    %v860 = vand.u32 %v48, 4294901760
    %v861 = vsub.f32 %v48, %v860
    %v862 = vand.u32 %v861, 4294901760
    %863 = vmatpush1.msra.mxu0 %v862
    %864 = vmatprep.subr.mxu0 0.0
    %v865 = vand.u32 %v49, 4294901760
    %v866 = vsub.f32 %v49, %v865
    %v867 = vand.u32 %v866, 4294901760
    %868 = vmatpush1.msra.mxu0 %v867
    %869 = vmatprep.subr.mxu0 0.0
    %v870 = vand.u32 %v50, 4294901760
    %v871 = vsub.f32 %v50, %v870
    %v872 = vand.u32 %v871, 4294901760
    %873 = vmatpush1.msra.mxu0 %v872
    %874 = vmatprep.subr.mxu0 0.0
    %v875 = vand.u32 %v51, 4294901760
    %v876 = vsub.f32 %v51, %v875
    %v877 = vand.u32 %v876, 4294901760
    %878 = vmatpush1.msra.mxu0 %v877
    %879 = vmatprep.subr.mxu0 0.0
    %v880 = vand.u32 %v52, 4294901760
    %v881 = vsub.f32 %v52, %v880
    %v882 = vand.u32 %v881, 4294901760
    %883 = vmatpush1.msra.mxu0 %v882
    %884 = vmatprep.subr.mxu0 0.0
    %v885 = vand.u32 %v53, 4294901760
    %v886 = vsub.f32 %v53, %v885
    %v887 = vand.u32 %v886, 4294901760
    %888 = vmatpush1.msra.mxu0 %v887
    %889 = vmatprep.subr.mxu0 0.0
    %v890 = vand.u32 %v54, 4294901760
    %v891 = vsub.f32 %v54, %v890
    %v892 = vand.u32 %v891, 4294901760
    %893 = vmatpush1.msra.mxu0 %v892
    %894 = vmatprep.subr.mxu0 0.0
    %v895 = vand.u32 %v55, 4294901760
    %v896 = vsub.f32 %v55, %v895
    %v897 = vand.u32 %v896, 4294901760
    %898 = vmatpush1.msra.mxu0 %v897
    %899 = vmatprep.subr.mxu0 0.0
    %v900 = vand.u32 %v56, 4294901760
    %v901 = vsub.f32 %v56, %v900
    %v902 = vand.u32 %v901, 4294901760
    %903 = vmatpush1.msra.mxu0 %v902
    %904 = vmatprep.subr.mxu0 0.0
    %v905 = vand.u32 %v57, 4294901760
    %v906 = vsub.f32 %v57, %v905
    %v907 = vand.u32 %v906, 4294901760
    %908 = vmatpush1.msra.mxu0 %v907
    %909 = vmatprep.subr.mxu0 0.0
    %v910 = vand.u32 %v58, 4294901760
    %v911 = vsub.f32 %v58, %v910
    %v912 = vand.u32 %v911, 4294901760
    %913 = vmatpush1.msra.mxu0 %v912
    %914 = vmatprep.subr.mxu0 0.0
    %v915 = vand.u32 %v59, 4294901760
    %v916 = vsub.f32 %v59, %v915
    %v917 = vand.u32 %v916, 4294901760
    %918 = vmatpush1.msra.mxu0 %v917
    %v919 = vand.u32 %v120, 4294901760
    %920 = vmatprep.mubr.f32.mxu0 %v919
    %v921 = vand.u32 %v119, 4294901760
    %922 = vmatmul.mubr.f32.gmra.mrb[0].mxu0 %v921
    %v923 = vpop.f32.mrb[0].mxu0
    %v924 = vadd.f32 %v745, %v923
    %v925 = vpop.f32.mrb[0].mxu0
    %v926 = vand.u32 %v124, 4294901760
    %927 = vmatprep.mubr.f32.mxu0 %v926
    %v928 = vand.u32 %v123, 4294901760
    %929 = vmatmul.mubr.f32.gmra.mrb[0].mxu0 %v928
    %v930 = vpop.f32.mrb[0].mxu0
    %v931 = vadd.f32 %v756, %v930
    %v932 = vpop.f32.mrb[0].mxu0
    %933 = vdwg.mxu0
    %934 = vmatprep.subr.mxu0 0.0
    %v935 = vand.u32 %v28, 4294901760
    %936 = vmatpush1.msra.mxu0 %v935
    %937 = vmatprep.subr.mxu0 0.0
    %v938 = vand.u32 %v29, 4294901760
    %939 = vmatpush1.msra.mxu0 %v938
    %940 = vmatprep.subr.mxu0 0.0
    %v941 = vand.u32 %v30, 4294901760
    %942 = vmatpush1.msra.mxu0 %v941
    %943 = vmatprep.subr.mxu0 0.0
    %v944 = vand.u32 %v31, 4294901760
    %945 = vmatpush1.msra.mxu0 %v944
    %946 = vmatprep.subr.mxu0 0.0
    %v947 = vand.u32 %v32, 4294901760
    %948 = vmatpush1.msra.mxu0 %v947
    %949 = vmatprep.subr.mxu0 0.0
    %v950 = vand.u32 %v33, 4294901760
    %951 = vmatpush1.msra.mxu0 %v950
    %952 = vmatprep.subr.mxu0 0.0
    %v953 = vand.u32 %v34, 4294901760
    %954 = vmatpush1.msra.mxu0 %v953
    %955 = vmatprep.subr.mxu0 0.0
    %v956 = vand.u32 %v35, 4294901760
    %957 = vmatpush1.msra.mxu0 %v956
    %958 = vmatprep.subr.mxu0 0.0
    %v959 = vand.u32 %v36, 4294901760
    %960 = vmatpush1.msra.mxu0 %v959
    %961 = vmatprep.subr.mxu0 0.0
    %v962 = vand.u32 %v37, 4294901760
    %963 = vmatpush1.msra.mxu0 %v962
    %964 = vmatprep.subr.mxu0 0.0
    %v965 = vand.u32 %v38, 4294901760
    %966 = vmatpush1.msra.mxu0 %v965
    %967 = vmatprep.subr.mxu0 0.0
    %v968 = vand.u32 %v39, 4294901760
    %969 = vmatpush1.msra.mxu0 %v968
    %970 = vmatprep.subr.mxu0 0.0
    %v971 = vand.u32 %v40, 4294901760
    %972 = vmatpush1.msra.mxu0 %v971
    %973 = vmatprep.subr.mxu0 0.0
    %v974 = vand.u32 %v41, 4294901760
    %975 = vmatpush1.msra.mxu0 %v974
    %976 = vmatprep.subr.mxu0 0.0
    %v977 = vand.u32 %v42, 4294901760
    %978 = vmatpush1.msra.mxu0 %v977
    %979 = vmatprep.subr.mxu0 0.0
    %v980 = vand.u32 %v43, 4294901760
    %981 = vmatpush1.msra.mxu0 %v980
    %982 = vmatprep.subr.mxu0 0.0
    %v983 = vand.u32 %v44, 4294901760
    %984 = vmatpush1.msra.mxu0 %v983
    %985 = vmatprep.subr.mxu0 0.0
    %v986 = vand.u32 %v45, 4294901760
    %987 = vmatpush1.msra.mxu0 %v986
    %988 = vmatprep.subr.mxu0 0.0
    %v989 = vand.u32 %v46, 4294901760
    %990 = vmatpush1.msra.mxu0 %v989
    %991 = vmatprep.subr.mxu0 0.0
    %v992 = vand.u32 %v47, 4294901760
    %993 = vmatpush1.msra.mxu0 %v992
    %994 = vmatprep.subr.mxu0 0.0
    %v995 = vand.u32 %v48, 4294901760
    %996 = vmatpush1.msra.mxu0 %v995
    %997 = vmatprep.subr.mxu0 0.0
    %v998 = vand.u32 %v49, 4294901760
    %999 = vmatpush1.msra.mxu0 %v998
    %1000 = vmatprep.subr.mxu0 0.0
    %v1001 = vand.u32 %v50, 4294901760
    %1002 = vmatpush1.msra.mxu0 %v1001
    %1003 = vmatprep.subr.mxu0 0.0
    %v1004 = vand.u32 %v51, 4294901760
    %1005 = vmatpush1.msra.mxu0 %v1004
    %1006 = vmatprep.subr.mxu0 0.0
    %v1007 = vand.u32 %v52, 4294901760
    %1008 = vmatpush1.msra.mxu0 %v1007
    %1009 = vmatprep.subr.mxu0 0.0
    %v1010 = vand.u32 %v53, 4294901760
    %1011 = vmatpush1.msra.mxu0 %v1010
    %1012 = vmatprep.subr.mxu0 0.0
    %v1013 = vand.u32 %v54, 4294901760
    %1014 = vmatpush1.msra.mxu0 %v1013
    %1015 = vmatprep.subr.mxu0 0.0
    %v1016 = vand.u32 %v55, 4294901760
    %1017 = vmatpush1.msra.mxu0 %v1016
    %1018 = vmatprep.subr.mxu0 0.0
    %v1019 = vand.u32 %v56, 4294901760
    %1020 = vmatpush1.msra.mxu0 %v1019
    %1021 = vmatprep.subr.mxu0 0.0
    %v1022 = vand.u32 %v57, 4294901760
    %1023 = vmatpush1.msra.mxu0 %v1022
    %1024 = vmatprep.subr.mxu0 0.0
    %v1025 = vand.u32 %v58, 4294901760
    %1026 = vmatpush1.msra.mxu0 %v1025
    %1027 = vmatprep.subr.mxu0 0.0
    %v1028 = vand.u32 %v59, 4294901760
    %1029 = vmatpush1.msra.mxu0 %v1028
    %v1030 = vand.u32 %v120, 4294901760
    %1031 = vmatprep.mubr.f32.mxu0 %v1030
    %v1032 = vand.u32 %v119, 4294901760
    %1033 = vmatmul.mubr.f32.gmra.mrb[0].mxu0 %v1032
    %v1034 = vpop.f32.mrb[0].mxu0
    %v1035 = vadd.f32 %v924, %v1034
    %v1036 = vpop.f32.mrb[0].mxu0
    %v1037 = vand.u32 %v124, 4294901760
    %1038 = vmatprep.mubr.f32.mxu0 %v1037
    %v1039 = vand.u32 %v123, 4294901760
    %1040 = vmatmul.mubr.f32.gmra.mrb[0].mxu0 %v1039
    %v1041 = vpop.f32.mrb[0].mxu0
    %v1042 = vadd.f32 %v931, %v1041
    %v1043 = vpop.f32.mrb[0].mxu0
    %1044 = vdwg.mxu0
    %1045 = vmatprep.subr.mxu0 0.0
    %v1046 = vand.u32 %v60, 4294901760
    %1047 = vmatpush1.msra.mxu0 %v1046
    %1048 = vmatprep.subr.mxu0 0.0
    %v1049 = vand.u32 %v61, 4294901760
    %1050 = vmatpush1.msra.mxu0 %v1049
    %1051 = vmatprep.subr.mxu0 0.0
    %v1052 = vand.u32 %v62, 4294901760
    %1053 = vmatpush1.msra.mxu0 %v1052
    %1054 = vmatprep.subr.mxu0 0.0
    %v1055 = vand.u32 %v63, 4294901760
    %1056 = vmatpush1.msra.mxu0 %v1055
    %1057 = vmatprep.subr.mxu0 0.0
    %v1058 = vand.u32 %v64, 4294901760
    %1059 = vmatpush1.msra.mxu0 %v1058
    %1060 = vmatprep.subr.mxu0 0.0
    %v1061 = vand.u32 %v65, 4294901760
    %1062 = vmatpush1.msra.mxu0 %v1061
    %1063 = vmatprep.subr.mxu0 0.0
    %v1064 = vand.u32 %v66, 4294901760
    %1065 = vmatpush1.msra.mxu0 %v1064
    %1066 = vmatprep.subr.mxu0 0.0
    %v1067 = vand.u32 %v67, 4294901760
    %1068 = vmatpush1.msra.mxu0 %v1067
    %1069 = vmatprep.subr.mxu0 0.0
    %v1070 = vand.u32 %v68, 4294901760
    %1071 = vmatpush1.msra.mxu0 %v1070
    %1072 = vmatprep.subr.mxu0 0.0
    %v1073 = vand.u32 %v69, 4294901760
    %1074 = vmatpush1.msra.mxu0 %v1073
    %1075 = vmatprep.subr.mxu0 0.0
    %v1076 = vand.u32 %v70, 4294901760
    %1077 = vmatpush1.msra.mxu0 %v1076
    %1078 = vmatprep.subr.mxu0 0.0
    %v1079 = vand.u32 %v71, 4294901760
    %1080 = vmatpush1.msra.mxu0 %v1079
    %1081 = vmatprep.subr.mxu0 0.0
    %v1082 = vand.u32 %v72, 4294901760
    %1083 = vmatpush1.msra.mxu0 %v1082
    %1084 = vmatprep.subr.mxu0 0.0
    %v1085 = vand.u32 %v73, 4294901760
    %1086 = vmatpush1.msra.mxu0 %v1085
    %1087 = vmatprep.subr.mxu0 0.0
    %v1088 = vand.u32 %v74, 4294901760
    %1089 = vmatpush1.msra.mxu0 %v1088
    %1090 = vmatprep.subr.mxu0 0.0
    %v1091 = vand.u32 %v75, 4294901760
    %1092 = vmatpush1.msra.mxu0 %v1091
    %1093 = vmatprep.subr.mxu0 0.0
    %v1094 = vand.u32 %v76, 4294901760
    %1095 = vmatpush1.msra.mxu0 %v1094
    %1096 = vmatprep.subr.mxu0 0.0
    %v1097 = vand.u32 %v77, 4294901760
    %1098 = vmatpush1.msra.mxu0 %v1097
    %1099 = vmatprep.subr.mxu0 0.0
    %v1100 = vand.u32 %v78, 4294901760
    %1101 = vmatpush1.msra.mxu0 %v1100
    %1102 = vmatprep.subr.mxu0 0.0
    %v1103 = vand.u32 %v79, 4294901760
    %1104 = vmatpush1.msra.mxu0 %v1103
    %1105 = vmatprep.subr.mxu0 0.0
    %v1106 = vand.u32 %v80, 4294901760
    %1107 = vmatpush1.msra.mxu0 %v1106
    %1108 = vmatprep.subr.mxu0 0.0
    %v1109 = vand.u32 %v81, 4294901760
    %1110 = vmatpush1.msra.mxu0 %v1109
    %1111 = vmatprep.subr.mxu0 0.0
    %v1112 = vand.u32 %v82, 4294901760
    %1113 = vmatpush1.msra.mxu0 %v1112
    %1114 = vmatprep.subr.mxu0 0.0
    %v1115 = vand.u32 %v83, 4294901760
    %1116 = vmatpush1.msra.mxu0 %v1115
    %1117 = vmatprep.subr.mxu0 0.0
    %v1118 = vand.u32 %v84, 4294901760
    %1119 = vmatpush1.msra.mxu0 %v1118
    %1120 = vmatprep.subr.mxu0 0.0
    %v1121 = vand.u32 %v85, 4294901760
    %1122 = vmatpush1.msra.mxu0 %v1121
    %1123 = vmatprep.subr.mxu0 0.0
    %v1124 = vand.u32 %v86, 4294901760
    %1125 = vmatpush1.msra.mxu0 %v1124
    %1126 = vmatprep.subr.mxu0 0.0
    %v1127 = vand.u32 %v87, 4294901760
    %1128 = vmatpush1.msra.mxu0 %v1127
    %1129 = vmatprep.subr.mxu0 0.0
    %v1130 = vand.u32 %v88, 4294901760
    %1131 = vmatpush1.msra.mxu0 %v1130
    %1132 = vmatprep.subr.mxu0 0.0
    %v1133 = vand.u32 %v89, 4294901760
    %1134 = vmatpush1.msra.mxu0 %v1133
    %1135 = vmatprep.subr.mxu0 0.0
    %v1136 = vand.u32 %v90, 4294901760
    %1137 = vmatpush1.msra.mxu0 %v1136
    %1138 = vmatprep.subr.mxu0 0.0
    %v1139 = vand.u32 %v91, 4294901760
    %1140 = vmatpush1.msra.mxu0 %v1139
    %v1141 = vand.u32 %v122, 4294901760
    %v1142 = vsub.f32 %v122, %v1141
    %v1143 = vand.u32 %v1142, 4294901760
    %v1144 = vsub.f32 %v1142, %v1143
    %v1145 = vand.u32 %v1144, 4294901760
    %1146 = vmatprep.mubr.f32.mxu0 %v1145
    %v1147 = vand.u32 %v121, 4294901760
    %v1148 = vsub.f32 %v121, %v1147
    %v1149 = vand.u32 %v1148, 4294901760
    %v1150 = vsub.f32 %v1148, %v1149
    %v1151 = vand.u32 %v1150, 4294901760
    %1152 = vmatmul.mubr.f32.gmra.mrb[0].mxu0 %v1151
    %v1153 = vpop.f32.mrb[0].mxu0
    %v1154 = vadd.f32 %v1035, %v1153
    %v1155 = vpop.f32.mrb[0].mxu0
    %v1156 = vand.u32 %v126, 4294901760
    %v1157 = vsub.f32 %v126, %v1156
    %v1158 = vand.u32 %v1157, 4294901760
    %v1159 = vsub.f32 %v1157, %v1158
    %v1160 = vand.u32 %v1159, 4294901760
    %1161 = vmatprep.mubr.f32.mxu0 %v1160
    %v1162 = vand.u32 %v125, 4294901760
    %v1163 = vsub.f32 %v125, %v1162
    %v1164 = vand.u32 %v1163, 4294901760
    %v1165 = vsub.f32 %v1163, %v1164
    %v1166 = vand.u32 %v1165, 4294901760
    %1167 = vmatmul.mubr.f32.gmra.mrb[0].mxu0 %v1166
    %v1168 = vpop.f32.mrb[0].mxu0
    %v1169 = vadd.f32 %v1042, %v1168
    %v1170 = vpop.f32.mrb[0].mxu0
    %1171 = vdwg.mxu0
    %1172 = vmatprep.subr.mxu0 0.0
    %v1173 = vand.u32 %v60, 4294901760
    %v1174 = vsub.f32 %v60, %v1173
    %v1175 = vand.u32 %v1174, 4294901760
    %v1176 = vsub.f32 %v1174, %v1175
    %v1177 = vand.u32 %v1176, 4294901760
    %1178 = vmatpush1.msra.mxu0 %v1177
    %1179 = vmatprep.subr.mxu0 0.0
    %v1180 = vand.u32 %v61, 4294901760
    %v1181 = vsub.f32 %v61, %v1180
    %v1182 = vand.u32 %v1181, 4294901760
    %v1183 = vsub.f32 %v1181, %v1182
    %v1184 = vand.u32 %v1183, 4294901760
    %1185 = vmatpush1.msra.mxu0 %v1184
    %1186 = vmatprep.subr.mxu0 0.0
    %v1187 = vand.u32 %v62, 4294901760
    %v1188 = vsub.f32 %v62, %v1187
    %v1189 = vand.u32 %v1188, 4294901760
    %v1190 = vsub.f32 %v1188, %v1189
    %v1191 = vand.u32 %v1190, 4294901760
    %1192 = vmatpush1.msra.mxu0 %v1191
    %1193 = vmatprep.subr.mxu0 0.0
    %v1194 = vand.u32 %v63, 4294901760
    %v1195 = vsub.f32 %v63, %v1194
    %v1196 = vand.u32 %v1195, 4294901760
    %v1197 = vsub.f32 %v1195, %v1196
    %v1198 = vand.u32 %v1197, 4294901760
    %1199 = vmatpush1.msra.mxu0 %v1198
    %1200 = vmatprep.subr.mxu0 0.0
    %v1201 = vand.u32 %v64, 4294901760
    %v1202 = vsub.f32 %v64, %v1201
    %v1203 = vand.u32 %v1202, 4294901760
    %v1204 = vsub.f32 %v1202, %v1203
    %v1205 = vand.u32 %v1204, 4294901760
    %1206 = vmatpush1.msra.mxu0 %v1205
    %1207 = vmatprep.subr.mxu0 0.0
    %v1208 = vand.u32 %v65, 4294901760
    %v1209 = vsub.f32 %v65, %v1208
    %v1210 = vand.u32 %v1209, 4294901760
    %v1211 = vsub.f32 %v1209, %v1210
    %v1212 = vand.u32 %v1211, 4294901760
    %1213 = vmatpush1.msra.mxu0 %v1212
    %1214 = vmatprep.subr.mxu0 0.0
    %v1215 = vand.u32 %v66, 4294901760
    %v1216 = vsub.f32 %v66, %v1215
    %v1217 = vand.u32 %v1216, 4294901760
    %v1218 = vsub.f32 %v1216, %v1217
    %v1219 = vand.u32 %v1218, 4294901760
    %1220 = vmatpush1.msra.mxu0 %v1219
    %1221 = vmatprep.subr.mxu0 0.0
    %v1222 = vand.u32 %v67, 4294901760
    %v1223 = vsub.f32 %v67, %v1222
    %v1224 = vand.u32 %v1223, 4294901760
    %v1225 = vsub.f32 %v1223, %v1224
    %v1226 = vand.u32 %v1225, 4294901760
    %1227 = vmatpush1.msra.mxu0 %v1226
    %1228 = vmatprep.subr.mxu0 0.0
    %v1229 = vand.u32 %v68, 4294901760
    %v1230 = vsub.f32 %v68, %v1229
    %v1231 = vand.u32 %v1230, 4294901760
    %v1232 = vsub.f32 %v1230, %v1231
    %v1233 = vand.u32 %v1232, 4294901760
    %1234 = vmatpush1.msra.mxu0 %v1233
    %1235 = vmatprep.subr.mxu0 0.0
    %v1236 = vand.u32 %v69, 4294901760
    %v1237 = vsub.f32 %v69, %v1236
    %v1238 = vand.u32 %v1237, 4294901760
    %v1239 = vsub.f32 %v1237, %v1238
    %v1240 = vand.u32 %v1239, 4294901760
    %1241 = vmatpush1.msra.mxu0 %v1240
    %1242 = vmatprep.subr.mxu0 0.0
    %v1243 = vand.u32 %v70, 4294901760
    %v1244 = vsub.f32 %v70, %v1243
    %v1245 = vand.u32 %v1244, 4294901760
    %v1246 = vsub.f32 %v1244, %v1245
    %v1247 = vand.u32 %v1246, 4294901760
    %1248 = vmatpush1.msra.mxu0 %v1247
    %1249 = vmatprep.subr.mxu0 0.0
    %v1250 = vand.u32 %v71, 4294901760
    %v1251 = vsub.f32 %v71, %v1250
    %v1252 = vand.u32 %v1251, 4294901760
    %v1253 = vsub.f32 %v1251, %v1252
    %v1254 = vand.u32 %v1253, 4294901760
    %1255 = vmatpush1.msra.mxu0 %v1254
    %1256 = vmatprep.subr.mxu0 0.0
    %v1257 = vand.u32 %v72, 4294901760
    %v1258 = vsub.f32 %v72, %v1257
    %v1259 = vand.u32 %v1258, 4294901760
    %v1260 = vsub.f32 %v1258, %v1259
    %v1261 = vand.u32 %v1260, 4294901760
    %1262 = vmatpush1.msra.mxu0 %v1261
    %1263 = vmatprep.subr.mxu0 0.0
    %v1264 = vand.u32 %v73, 4294901760
    %v1265 = vsub.f32 %v73, %v1264
    %v1266 = vand.u32 %v1265, 4294901760
    %v1267 = vsub.f32 %v1265, %v1266
    %v1268 = vand.u32 %v1267, 4294901760
    %1269 = vmatpush1.msra.mxu0 %v1268
    %1270 = vmatprep.subr.mxu0 0.0
    %v1271 = vand.u32 %v74, 4294901760
    %v1272 = vsub.f32 %v74, %v1271
    %v1273 = vand.u32 %v1272, 4294901760
    %v1274 = vsub.f32 %v1272, %v1273
    %v1275 = vand.u32 %v1274, 4294901760
    %1276 = vmatpush1.msra.mxu0 %v1275
    %1277 = vmatprep.subr.mxu0 0.0
    %v1278 = vand.u32 %v75, 4294901760
    %v1279 = vsub.f32 %v75, %v1278
    %v1280 = vand.u32 %v1279, 4294901760
    %v1281 = vsub.f32 %v1279, %v1280
    %v1282 = vand.u32 %v1281, 4294901760
    %1283 = vmatpush1.msra.mxu0 %v1282
    %1284 = vmatprep.subr.mxu0 0.0
    %v1285 = vand.u32 %v76, 4294901760
    %v1286 = vsub.f32 %v76, %v1285
    %v1287 = vand.u32 %v1286, 4294901760
    %v1288 = vsub.f32 %v1286, %v1287
    %v1289 = vand.u32 %v1288, 4294901760
    %1290 = vmatpush1.msra.mxu0 %v1289
    %1291 = vmatprep.subr.mxu0 0.0
    %v1292 = vand.u32 %v77, 4294901760
    %v1293 = vsub.f32 %v77, %v1292
    %v1294 = vand.u32 %v1293, 4294901760
    %v1295 = vsub.f32 %v1293, %v1294
    %v1296 = vand.u32 %v1295, 4294901760
    %1297 = vmatpush1.msra.mxu0 %v1296
    %1298 = vmatprep.subr.mxu0 0.0
    %v1299 = vand.u32 %v78, 4294901760
    %v1300 = vsub.f32 %v78, %v1299
    %v1301 = vand.u32 %v1300, 4294901760
    %v1302 = vsub.f32 %v1300, %v1301
    %v1303 = vand.u32 %v1302, 4294901760
    %1304 = vmatpush1.msra.mxu0 %v1303
    %1305 = vmatprep.subr.mxu0 0.0
    %v1306 = vand.u32 %v79, 4294901760
    %v1307 = vsub.f32 %v79, %v1306
    %v1308 = vand.u32 %v1307, 4294901760
    %v1309 = vsub.f32 %v1307, %v1308
    %v1310 = vand.u32 %v1309, 4294901760
    %1311 = vmatpush1.msra.mxu0 %v1310
    %1312 = vmatprep.subr.mxu0 0.0
    %v1313 = vand.u32 %v80, 4294901760
    %v1314 = vsub.f32 %v80, %v1313
    %v1315 = vand.u32 %v1314, 4294901760
    %v1316 = vsub.f32 %v1314, %v1315
    %v1317 = vand.u32 %v1316, 4294901760
    %1318 = vmatpush1.msra.mxu0 %v1317
    %1319 = vmatprep.subr.mxu0 0.0
    %v1320 = vand.u32 %v81, 4294901760
    %v1321 = vsub.f32 %v81, %v1320
    %v1322 = vand.u32 %v1321, 4294901760
    %v1323 = vsub.f32 %v1321, %v1322
    %v1324 = vand.u32 %v1323, 4294901760
    %1325 = vmatpush1.msra.mxu0 %v1324
    %1326 = vmatprep.subr.mxu0 0.0
    %v1327 = vand.u32 %v82, 4294901760
    %v1328 = vsub.f32 %v82, %v1327
    %v1329 = vand.u32 %v1328, 4294901760
    %v1330 = vsub.f32 %v1328, %v1329
    %v1331 = vand.u32 %v1330, 4294901760
    %1332 = vmatpush1.msra.mxu0 %v1331
    %1333 = vmatprep.subr.mxu0 0.0
    %v1334 = vand.u32 %v83, 4294901760
    %v1335 = vsub.f32 %v83, %v1334
    %v1336 = vand.u32 %v1335, 4294901760
    %v1337 = vsub.f32 %v1335, %v1336
    %v1338 = vand.u32 %v1337, 4294901760
    %1339 = vmatpush1.msra.mxu0 %v1338
    %1340 = vmatprep.subr.mxu0 0.0
    %v1341 = vand.u32 %v84, 4294901760
    %v1342 = vsub.f32 %v84, %v1341
    %v1343 = vand.u32 %v1342, 4294901760
    %v1344 = vsub.f32 %v1342, %v1343
    %v1345 = vand.u32 %v1344, 4294901760
    %1346 = vmatpush1.msra.mxu0 %v1345
    %1347 = vmatprep.subr.mxu0 0.0
    %v1348 = vand.u32 %v85, 4294901760
    %v1349 = vsub.f32 %v85, %v1348
    %v1350 = vand.u32 %v1349, 4294901760
    %v1351 = vsub.f32 %v1349, %v1350
    %v1352 = vand.u32 %v1351, 4294901760
    %1353 = vmatpush1.msra.mxu0 %v1352
    %1354 = vmatprep.subr.mxu0 0.0
    %v1355 = vand.u32 %v86, 4294901760
    %v1356 = vsub.f32 %v86, %v1355
    %v1357 = vand.u32 %v1356, 4294901760
    %v1358 = vsub.f32 %v1356, %v1357
    %v1359 = vand.u32 %v1358, 4294901760
    %1360 = vmatpush1.msra.mxu0 %v1359
    %1361 = vmatprep.subr.mxu0 0.0
    %v1362 = vand.u32 %v87, 4294901760
    %v1363 = vsub.f32 %v87, %v1362
    %v1364 = vand.u32 %v1363, 4294901760
    %v1365 = vsub.f32 %v1363, %v1364
    %v1366 = vand.u32 %v1365, 4294901760
    %1367 = vmatpush1.msra.mxu0 %v1366
    %1368 = vmatprep.subr.mxu0 0.0
    %v1369 = vand.u32 %v88, 4294901760
    %v1370 = vsub.f32 %v88, %v1369
    %v1371 = vand.u32 %v1370, 4294901760
    %v1372 = vsub.f32 %v1370, %v1371
    %v1373 = vand.u32 %v1372, 4294901760
    %1374 = vmatpush1.msra.mxu0 %v1373
    %1375 = vmatprep.subr.mxu0 0.0
    %v1376 = vand.u32 %v89, 4294901760
    %v1377 = vsub.f32 %v89, %v1376
    %v1378 = vand.u32 %v1377, 4294901760
    %v1379 = vsub.f32 %v1377, %v1378
    %v1380 = vand.u32 %v1379, 4294901760
    %1381 = vmatpush1.msra.mxu0 %v1380
    %1382 = vmatprep.subr.mxu0 0.0
    %v1383 = vand.u32 %v90, 4294901760
    %v1384 = vsub.f32 %v90, %v1383
    %v1385 = vand.u32 %v1384, 4294901760
    %v1386 = vsub.f32 %v1384, %v1385
    %v1387 = vand.u32 %v1386, 4294901760
    %1388 = vmatpush1.msra.mxu0 %v1387
    %1389 = vmatprep.subr.mxu0 0.0
    %v1390 = vand.u32 %v91, 4294901760
    %v1391 = vsub.f32 %v91, %v1390
    %v1392 = vand.u32 %v1391, 4294901760
    %v1393 = vsub.f32 %v1391, %v1392
    %v1394 = vand.u32 %v1393, 4294901760
    %1395 = vmatpush1.msra.mxu0 %v1394
    %v1396 = vand.u32 %v122, 4294901760
    %1397 = vmatprep.mubr.f32.mxu0 %v1396
    %v1398 = vand.u32 %v121, 4294901760
    %1399 = vmatmul.mubr.f32.gmra.mrb[0].mxu0 %v1398
    %v1400 = vpop.f32.mrb[0].mxu0
    %v1401 = vadd.f32 %v1154, %v1400
    %v1402 = vpop.f32.mrb[0].mxu0
    %v1403 = vand.u32 %v126, 4294901760
    %1404 = vmatprep.mubr.f32.mxu0 %v1403
    %v1405 = vand.u32 %v125, 4294901760
    %1406 = vmatmul.mubr.f32.gmra.mrb[0].mxu0 %v1405
    %v1407 = vpop.f32.mrb[0].mxu0
    %v1408 = vadd.f32 %v1169, %v1407
    %v1409 = vpop.f32.mrb[0].mxu0
    %1410 = vdwg.mxu0
    %1411 = vmatprep.subr.mxu0 0.0
    %v1412 = vand.u32 %v60, 4294901760
    %v1413 = vsub.f32 %v60, %v1412
    %1414 = vmatpush1.msra.mxu0 %v1413
    %1415 = vmatprep.subr.mxu0 0.0
    %v1416 = vand.u32 %v61, 4294901760
    %v1417 = vsub.f32 %v61, %v1416
    %1418 = vmatpush1.msra.mxu0 %v1417
    %1419 = vmatprep.subr.mxu0 0.0
    %v1420 = vand.u32 %v62, 4294901760
    %v1421 = vsub.f32 %v62, %v1420
    %1422 = vmatpush1.msra.mxu0 %v1421
    %1423 = vmatprep.subr.mxu0 0.0
    %v1424 = vand.u32 %v63, 4294901760
    %v1425 = vsub.f32 %v63, %v1424
    %1426 = vmatpush1.msra.mxu0 %v1425
    %1427 = vmatprep.subr.mxu0 0.0
    %v1428 = vand.u32 %v64, 4294901760
    %v1429 = vsub.f32 %v64, %v1428
    %1430 = vmatpush1.msra.mxu0 %v1429
    %1431 = vmatprep.subr.mxu0 0.0
    %v1432 = vand.u32 %v65, 4294901760
    %v1433 = vsub.f32 %v65, %v1432
    %1434 = vmatpush1.msra.mxu0 %v1433
    %1435 = vmatprep.subr.mxu0 0.0
    %v1436 = vand.u32 %v66, 4294901760
    %v1437 = vsub.f32 %v66, %v1436
    %1438 = vmatpush1.msra.mxu0 %v1437
    %1439 = vmatprep.subr.mxu0 0.0
    %v1440 = vand.u32 %v67, 4294901760
    %v1441 = vsub.f32 %v67, %v1440
    %1442 = vmatpush1.msra.mxu0 %v1441
    %1443 = vmatprep.subr.mxu0 0.0
    %v1444 = vand.u32 %v68, 4294901760
    %v1445 = vsub.f32 %v68, %v1444
    %1446 = vmatpush1.msra.mxu0 %v1445
    %1447 = vmatprep.subr.mxu0 0.0
    %v1448 = vand.u32 %v69, 4294901760
    %v1449 = vsub.f32 %v69, %v1448
    %1450 = vmatpush1.msra.mxu0 %v1449
    %1451 = vmatprep.subr.mxu0 0.0
    %v1452 = vand.u32 %v70, 4294901760
    %v1453 = vsub.f32 %v70, %v1452
    %1454 = vmatpush1.msra.mxu0 %v1453
    %1455 = vmatprep.subr.mxu0 0.0
    %v1456 = vand.u32 %v71, 4294901760
    %v1457 = vsub.f32 %v71, %v1456
    %1458 = vmatpush1.msra.mxu0 %v1457
    %1459 = vmatprep.subr.mxu0 0.0
    %v1460 = vand.u32 %v72, 4294901760
    %v1461 = vsub.f32 %v72, %v1460
    %1462 = vmatpush1.msra.mxu0 %v1461
    %1463 = vmatprep.subr.mxu0 0.0
    %v1464 = vand.u32 %v73, 4294901760
    %v1465 = vsub.f32 %v73, %v1464
    %1466 = vmatpush1.msra.mxu0 %v1465
    %1467 = vmatprep.subr.mxu0 0.0
    %v1468 = vand.u32 %v74, 4294901760
    %v1469 = vsub.f32 %v74, %v1468
    %1470 = vmatpush1.msra.mxu0 %v1469
    %1471 = vmatprep.subr.mxu0 0.0
    %v1472 = vand.u32 %v75, 4294901760
    %v1473 = vsub.f32 %v75, %v1472
    %1474 = vmatpush1.msra.mxu0 %v1473
    %1475 = vmatprep.subr.mxu0 0.0
    %v1476 = vand.u32 %v76, 4294901760
    %v1477 = vsub.f32 %v76, %v1476
    %1478 = vmatpush1.msra.mxu0 %v1477
    %1479 = vmatprep.subr.mxu0 0.0
    %v1480 = vand.u32 %v77, 4294901760
    %v1481 = vsub.f32 %v77, %v1480
    %1482 = vmatpush1.msra.mxu0 %v1481
    %1483 = vmatprep.subr.mxu0 0.0
    %v1484 = vand.u32 %v78, 4294901760
    %v1485 = vsub.f32 %v78, %v1484
    %1486 = vmatpush1.msra.mxu0 %v1485
    %1487 = vmatprep.subr.mxu0 0.0
    %v1488 = vand.u32 %v79, 4294901760
    %v1489 = vsub.f32 %v79, %v1488
    %1490 = vmatpush1.msra.mxu0 %v1489
    %1491 = vmatprep.subr.mxu0 0.0
    %v1492 = vand.u32 %v80, 4294901760
    %v1493 = vsub.f32 %v80, %v1492
    %1494 = vmatpush1.msra.mxu0 %v1493
    %1495 = vmatprep.subr.mxu0 0.0
    %v1496 = vand.u32 %v81, 4294901760
    %v1497 = vsub.f32 %v81, %v1496
    %1498 = vmatpush1.msra.mxu0 %v1497
    %1499 = vmatprep.subr.mxu0 0.0
    %v1500 = vand.u32 %v82, 4294901760
    %v1501 = vsub.f32 %v82, %v1500
    %1502 = vmatpush1.msra.mxu0 %v1501
    %1503 = vmatprep.subr.mxu0 0.0
    %v1504 = vand.u32 %v83, 4294901760
    %v1505 = vsub.f32 %v83, %v1504
    %1506 = vmatpush1.msra.mxu0 %v1505
    %1507 = vmatprep.subr.mxu0 0.0
    %v1508 = vand.u32 %v84, 4294901760
    %v1509 = vsub.f32 %v84, %v1508
    %1510 = vmatpush1.msra.mxu0 %v1509
    %1511 = vmatprep.subr.mxu0 0.0
    %v1512 = vand.u32 %v85, 4294901760
    %v1513 = vsub.f32 %v85, %v1512
    %1514 = vmatpush1.msra.mxu0 %v1513
    %1515 = vmatprep.subr.mxu0 0.0
    %v1516 = vand.u32 %v86, 4294901760
    %v1517 = vsub.f32 %v86, %v1516
    %1518 = vmatpush1.msra.mxu0 %v1517
    %1519 = vmatprep.subr.mxu0 0.0
    %v1520 = vand.u32 %v87, 4294901760
    %v1521 = vsub.f32 %v87, %v1520
    %1522 = vmatpush1.msra.mxu0 %v1521
    %1523 = vmatprep.subr.mxu0 0.0
    %v1524 = vand.u32 %v88, 4294901760
    %v1525 = vsub.f32 %v88, %v1524
    %1526 = vmatpush1.msra.mxu0 %v1525
    %1527 = vmatprep.subr.mxu0 0.0
    %v1528 = vand.u32 %v89, 4294901760
    %v1529 = vsub.f32 %v89, %v1528
    %1530 = vmatpush1.msra.mxu0 %v1529
    %1531 = vmatprep.subr.mxu0 0.0
    %v1532 = vand.u32 %v90, 4294901760
    %v1533 = vsub.f32 %v90, %v1532
    %1534 = vmatpush1.msra.mxu0 %v1533
    %1535 = vmatprep.subr.mxu0 0.0
    %v1536 = vand.u32 %v91, 4294901760
    %v1537 = vsub.f32 %v91, %v1536
    %1538 = vmatpush1.msra.mxu0 %v1537
    %v1539 = vand.u32 %v122, 4294901760
    %v1540 = vsub.f32 %v122, %v1539
    %1541 = vmatprep.mubr.f32.mxu0 %v1540
    %v1542 = vand.u32 %v121, 4294901760
    %v1543 = vsub.f32 %v121, %v1542
    %1544 = vmatmul.mubr.f32.gmra.mrb[0].mxu0 %v1543
    %v1545 = vpop.f32.mrb[0].mxu0
    %v1546 = vadd.f32 %v1401, %v1545
    %v1547 = vpop.f32.mrb[0].mxu0
    %v1548 = vand.u32 %v126, 4294901760
    %v1549 = vsub.f32 %v126, %v1548
    %1550 = vmatprep.mubr.f32.mxu0 %v1549
    %v1551 = vand.u32 %v125, 4294901760
    %v1552 = vsub.f32 %v125, %v1551
    %1553 = vmatmul.mubr.f32.gmra.mrb[0].mxu0 %v1552
    %v1554 = vpop.f32.mrb[0].mxu0
    %v1555 = vadd.f32 %v1408, %v1554
    %v1556 = vpop.f32.mrb[0].mxu0
    %1557 = vdwg.mxu0
    %1558 = vmatprep.subr.mxu0 0.0
    %v1559 = vand.u32 %v60, 4294901760
    %1560 = vmatpush1.msra.mxu0 %v1559
    %1561 = vmatprep.subr.mxu0 0.0
    %v1562 = vand.u32 %v61, 4294901760
    %1563 = vmatpush1.msra.mxu0 %v1562
    %1564 = vmatprep.subr.mxu0 0.0
    %v1565 = vand.u32 %v62, 4294901760
    %1566 = vmatpush1.msra.mxu0 %v1565
    %1567 = vmatprep.subr.mxu0 0.0
    %v1568 = vand.u32 %v63, 4294901760
    %1569 = vmatpush1.msra.mxu0 %v1568
    %1570 = vmatprep.subr.mxu0 0.0
    %v1571 = vand.u32 %v64, 4294901760
    %1572 = vmatpush1.msra.mxu0 %v1571
    %1573 = vmatprep.subr.mxu0 0.0
    %v1574 = vand.u32 %v65, 4294901760
    %1575 = vmatpush1.msra.mxu0 %v1574
    %1576 = vmatprep.subr.mxu0 0.0
    %v1577 = vand.u32 %v66, 4294901760
    %1578 = vmatpush1.msra.mxu0 %v1577
    %1579 = vmatprep.subr.mxu0 0.0
    %v1580 = vand.u32 %v67, 4294901760
    %1581 = vmatpush1.msra.mxu0 %v1580
    %1582 = vmatprep.subr.mxu0 0.0
    %v1583 = vand.u32 %v68, 4294901760
    %1584 = vmatpush1.msra.mxu0 %v1583
    %1585 = vmatprep.subr.mxu0 0.0
    %v1586 = vand.u32 %v69, 4294901760
    %1587 = vmatpush1.msra.mxu0 %v1586
    %1588 = vmatprep.subr.mxu0 0.0
    %v1589 = vand.u32 %v70, 4294901760
    %1590 = vmatpush1.msra.mxu0 %v1589
    %1591 = vmatprep.subr.mxu0 0.0
    %v1592 = vand.u32 %v71, 4294901760
    %1593 = vmatpush1.msra.mxu0 %v1592
    %1594 = vmatprep.subr.mxu0 0.0
    %v1595 = vand.u32 %v72, 4294901760
    %1596 = vmatpush1.msra.mxu0 %v1595
    %1597 = vmatprep.subr.mxu0 0.0
    %v1598 = vand.u32 %v73, 4294901760
    %1599 = vmatpush1.msra.mxu0 %v1598
    %1600 = vmatprep.subr.mxu0 0.0
    %v1601 = vand.u32 %v74, 4294901760
    %1602 = vmatpush1.msra.mxu0 %v1601
    %1603 = vmatprep.subr.mxu0 0.0
    %v1604 = vand.u32 %v75, 4294901760
    %1605 = vmatpush1.msra.mxu0 %v1604
    %1606 = vmatprep.subr.mxu0 0.0
    %v1607 = vand.u32 %v76, 4294901760
    %1608 = vmatpush1.msra.mxu0 %v1607
    %1609 = vmatprep.subr.mxu0 0.0
    %v1610 = vand.u32 %v77, 4294901760
    %1611 = vmatpush1.msra.mxu0 %v1610
    %1612 = vmatprep.subr.mxu0 0.0
    %v1613 = vand.u32 %v78, 4294901760
    %1614 = vmatpush1.msra.mxu0 %v1613
    %1615 = vmatprep.subr.mxu0 0.0
    %v1616 = vand.u32 %v79, 4294901760
    %1617 = vmatpush1.msra.mxu0 %v1616
    %1618 = vmatprep.subr.mxu0 0.0
    %v1619 = vand.u32 %v80, 4294901760
    %1620 = vmatpush1.msra.mxu0 %v1619
    %1621 = vmatprep.subr.mxu0 0.0
    %v1622 = vand.u32 %v81, 4294901760
    %1623 = vmatpush1.msra.mxu0 %v1622
    %1624 = vmatprep.subr.mxu0 0.0
    %v1625 = vand.u32 %v82, 4294901760
    %1626 = vmatpush1.msra.mxu0 %v1625
    %1627 = vmatprep.subr.mxu0 0.0
    %v1628 = vand.u32 %v83, 4294901760
    %1629 = vmatpush1.msra.mxu0 %v1628
    %1630 = vmatprep.subr.mxu0 0.0
    %v1631 = vand.u32 %v84, 4294901760
    %1632 = vmatpush1.msra.mxu0 %v1631
    %1633 = vmatprep.subr.mxu0 0.0
    %v1634 = vand.u32 %v85, 4294901760
    %1635 = vmatpush1.msra.mxu0 %v1634
    %1636 = vmatprep.subr.mxu0 0.0
    %v1637 = vand.u32 %v86, 4294901760
    %1638 = vmatpush1.msra.mxu0 %v1637
    %1639 = vmatprep.subr.mxu0 0.0
    %v1640 = vand.u32 %v87, 4294901760
    %1641 = vmatpush1.msra.mxu0 %v1640
    %1642 = vmatprep.subr.mxu0 0.0
    %v1643 = vand.u32 %v88, 4294901760
    %1644 = vmatpush1.msra.mxu0 %v1643
    %1645 = vmatprep.subr.mxu0 0.0
    %v1646 = vand.u32 %v89, 4294901760
    %1647 = vmatpush1.msra.mxu0 %v1646
    %1648 = vmatprep.subr.mxu0 0.0
    %v1649 = vand.u32 %v90, 4294901760
    %1650 = vmatpush1.msra.mxu0 %v1649
    %1651 = vmatprep.subr.mxu0 0.0
    %v1652 = vand.u32 %v91, 4294901760
    %1653 = vmatpush1.msra.mxu0 %v1652
    %v1654 = vand.u32 %v122, 4294901760
    %v1655 = vsub.f32 %v122, %v1654
    %v1656 = vand.u32 %v1655, 4294901760
    %1657 = vmatprep.mubr.f32.mxu0 %v1656
    %v1658 = vand.u32 %v121, 4294901760
    %v1659 = vsub.f32 %v121, %v1658
    %v1660 = vand.u32 %v1659, 4294901760
    %1661 = vmatmul.mubr.f32.gmra.mrb[0].mxu0 %v1660
    %v1662 = vpop.f32.mrb[0].mxu0
    %v1663 = vadd.f32 %v1546, %v1662
    %v1664 = vpop.f32.mrb[0].mxu0
    %v1665 = vand.u32 %v126, 4294901760
    %v1666 = vsub.f32 %v126, %v1665
    %v1667 = vand.u32 %v1666, 4294901760
    %1668 = vmatprep.mubr.f32.mxu0 %v1667
    %v1669 = vand.u32 %v125, 4294901760
    %v1670 = vsub.f32 %v125, %v1669
    %v1671 = vand.u32 %v1670, 4294901760
    %1672 = vmatmul.mubr.f32.gmra.mrb[0].mxu0 %v1671
    %v1673 = vpop.f32.mrb[0].mxu0
    %v1674 = vadd.f32 %v1555, %v1673
    %v1675 = vpop.f32.mrb[0].mxu0
    %1676 = vdwg.mxu0
    %1677 = vmatprep.subr.mxu0 0.0
    %v1678 = vand.u32 %v60, 4294901760
    %v1679 = vsub.f32 %v60, %v1678
    %v1680 = vand.u32 %v1679, 4294901760
    %1681 = vmatpush1.msra.mxu0 %v1680
    %1682 = vmatprep.subr.mxu0 0.0
    %v1683 = vand.u32 %v61, 4294901760
    %v1684 = vsub.f32 %v61, %v1683
    %v1685 = vand.u32 %v1684, 4294901760
    %1686 = vmatpush1.msra.mxu0 %v1685
    %1687 = vmatprep.subr.mxu0 0.0
    %v1688 = vand.u32 %v62, 4294901760
    %v1689 = vsub.f32 %v62, %v1688
    %v1690 = vand.u32 %v1689, 4294901760
    %1691 = vmatpush1.msra.mxu0 %v1690
    %1692 = vmatprep.subr.mxu0 0.0
    %v1693 = vand.u32 %v63, 4294901760
    %v1694 = vsub.f32 %v63, %v1693
    %v1695 = vand.u32 %v1694, 4294901760
    %1696 = vmatpush1.msra.mxu0 %v1695
    %1697 = vmatprep.subr.mxu0 0.0
    %v1698 = vand.u32 %v64, 4294901760
    %v1699 = vsub.f32 %v64, %v1698
    %v1700 = vand.u32 %v1699, 4294901760
    %1701 = vmatpush1.msra.mxu0 %v1700
    %1702 = vmatprep.subr.mxu0 0.0
    %v1703 = vand.u32 %v65, 4294901760
    %v1704 = vsub.f32 %v65, %v1703
    %v1705 = vand.u32 %v1704, 4294901760
    %1706 = vmatpush1.msra.mxu0 %v1705
    %1707 = vmatprep.subr.mxu0 0.0
    %v1708 = vand.u32 %v66, 4294901760
    %v1709 = vsub.f32 %v66, %v1708
    %v1710 = vand.u32 %v1709, 4294901760
    %1711 = vmatpush1.msra.mxu0 %v1710
    %1712 = vmatprep.subr.mxu0 0.0
    %v1713 = vand.u32 %v67, 4294901760
    %v1714 = vsub.f32 %v67, %v1713
    %v1715 = vand.u32 %v1714, 4294901760
    %1716 = vmatpush1.msra.mxu0 %v1715
    %1717 = vmatprep.subr.mxu0 0.0
    %v1718 = vand.u32 %v68, 4294901760
    %v1719 = vsub.f32 %v68, %v1718
    %v1720 = vand.u32 %v1719, 4294901760
    %1721 = vmatpush1.msra.mxu0 %v1720
    %1722 = vmatprep.subr.mxu0 0.0
    %v1723 = vand.u32 %v69, 4294901760
    %v1724 = vsub.f32 %v69, %v1723
    %v1725 = vand.u32 %v1724, 4294901760
    %1726 = vmatpush1.msra.mxu0 %v1725
    %1727 = vmatprep.subr.mxu0 0.0
    %v1728 = vand.u32 %v70, 4294901760
    %v1729 = vsub.f32 %v70, %v1728
    %v1730 = vand.u32 %v1729, 4294901760
    %1731 = vmatpush1.msra.mxu0 %v1730
    %1732 = vmatprep.subr.mxu0 0.0
    %v1733 = vand.u32 %v71, 4294901760
    %v1734 = vsub.f32 %v71, %v1733
    %v1735 = vand.u32 %v1734, 4294901760
    %1736 = vmatpush1.msra.mxu0 %v1735
    %1737 = vmatprep.subr.mxu0 0.0
    %v1738 = vand.u32 %v72, 4294901760
    %v1739 = vsub.f32 %v72, %v1738
    %v1740 = vand.u32 %v1739, 4294901760
    %1741 = vmatpush1.msra.mxu0 %v1740
    %1742 = vmatprep.subr.mxu0 0.0
    %v1743 = vand.u32 %v73, 4294901760
    %v1744 = vsub.f32 %v73, %v1743
    %v1745 = vand.u32 %v1744, 4294901760
    %1746 = vmatpush1.msra.mxu0 %v1745
    %1747 = vmatprep.subr.mxu0 0.0
    %v1748 = vand.u32 %v74, 4294901760
    %v1749 = vsub.f32 %v74, %v1748
    %v1750 = vand.u32 %v1749, 4294901760
    %1751 = vmatpush1.msra.mxu0 %v1750
    %1752 = vmatprep.subr.mxu0 0.0
    %v1753 = vand.u32 %v75, 4294901760
    %v1754 = vsub.f32 %v75, %v1753
    %v1755 = vand.u32 %v1754, 4294901760
    %1756 = vmatpush1.msra.mxu0 %v1755
    %1757 = vmatprep.subr.mxu0 0.0
    %v1758 = vand.u32 %v76, 4294901760
    %v1759 = vsub.f32 %v76, %v1758
    %v1760 = vand.u32 %v1759, 4294901760
    %1761 = vmatpush1.msra.mxu0 %v1760
    %1762 = vmatprep.subr.mxu0 0.0
    %v1763 = vand.u32 %v77, 4294901760
    %v1764 = vsub.f32 %v77, %v1763
    %v1765 = vand.u32 %v1764, 4294901760
    %1766 = vmatpush1.msra.mxu0 %v1765
    %1767 = vmatprep.subr.mxu0 0.0
    %v1768 = vand.u32 %v78, 4294901760
    %v1769 = vsub.f32 %v78, %v1768
    %v1770 = vand.u32 %v1769, 4294901760
    %1771 = vmatpush1.msra.mxu0 %v1770
    %1772 = vmatprep.subr.mxu0 0.0
    %v1773 = vand.u32 %v79, 4294901760
    %v1774 = vsub.f32 %v79, %v1773
    %v1775 = vand.u32 %v1774, 4294901760
    %1776 = vmatpush1.msra.mxu0 %v1775
    %1777 = vmatprep.subr.mxu0 0.0
    %v1778 = vand.u32 %v80, 4294901760
    %v1779 = vsub.f32 %v80, %v1778
    %v1780 = vand.u32 %v1779, 4294901760
    %1781 = vmatpush1.msra.mxu0 %v1780
    %1782 = vmatprep.subr.mxu0 0.0
    %v1783 = vand.u32 %v81, 4294901760
    %v1784 = vsub.f32 %v81, %v1783
    %v1785 = vand.u32 %v1784, 4294901760
    %1786 = vmatpush1.msra.mxu0 %v1785
    %1787 = vmatprep.subr.mxu0 0.0
    %v1788 = vand.u32 %v82, 4294901760
    %v1789 = vsub.f32 %v82, %v1788
    %v1790 = vand.u32 %v1789, 4294901760
    %1791 = vmatpush1.msra.mxu0 %v1790
    %1792 = vmatprep.subr.mxu0 0.0
    %v1793 = vand.u32 %v83, 4294901760
    %v1794 = vsub.f32 %v83, %v1793
    %v1795 = vand.u32 %v1794, 4294901760
    %1796 = vmatpush1.msra.mxu0 %v1795
    %1797 = vmatprep.subr.mxu0 0.0
    %v1798 = vand.u32 %v84, 4294901760
    %v1799 = vsub.f32 %v84, %v1798
    %v1800 = vand.u32 %v1799, 4294901760
    %1801 = vmatpush1.msra.mxu0 %v1800
    %1802 = vmatprep.subr.mxu0 0.0
    %v1803 = vand.u32 %v85, 4294901760
    %v1804 = vsub.f32 %v85, %v1803
    %v1805 = vand.u32 %v1804, 4294901760
    %1806 = vmatpush1.msra.mxu0 %v1805
    %1807 = vmatprep.subr.mxu0 0.0
    %v1808 = vand.u32 %v86, 4294901760
    %v1809 = vsub.f32 %v86, %v1808
    %v1810 = vand.u32 %v1809, 4294901760
    %1811 = vmatpush1.msra.mxu0 %v1810
    %1812 = vmatprep.subr.mxu0 0.0
    %v1813 = vand.u32 %v87, 4294901760
    %v1814 = vsub.f32 %v87, %v1813
    %v1815 = vand.u32 %v1814, 4294901760
    %1816 = vmatpush1.msra.mxu0 %v1815
    %1817 = vmatprep.subr.mxu0 0.0
    %v1818 = vand.u32 %v88, 4294901760
    %v1819 = vsub.f32 %v88, %v1818
    %v1820 = vand.u32 %v1819, 4294901760
    %1821 = vmatpush1.msra.mxu0 %v1820
    %1822 = vmatprep.subr.mxu0 0.0
    %v1823 = vand.u32 %v89, 4294901760
    %v1824 = vsub.f32 %v89, %v1823
    %v1825 = vand.u32 %v1824, 4294901760
    %1826 = vmatpush1.msra.mxu0 %v1825
    %1827 = vmatprep.subr.mxu0 0.0
    %v1828 = vand.u32 %v90, 4294901760
    %v1829 = vsub.f32 %v90, %v1828
    %v1830 = vand.u32 %v1829, 4294901760
    %1831 = vmatpush1.msra.mxu0 %v1830
    %1832 = vmatprep.subr.mxu0 0.0
    %v1833 = vand.u32 %v91, 4294901760
    %v1834 = vsub.f32 %v91, %v1833
    %v1835 = vand.u32 %v1834, 4294901760
    %1836 = vmatpush1.msra.mxu0 %v1835
    %v1837 = vand.u32 %v122, 4294901760
    %1838 = vmatprep.mubr.f32.mxu0 %v1837
    %v1839 = vand.u32 %v121, 4294901760
    %1840 = vmatmul.mubr.f32.gmra.mrb[0].mxu0 %v1839
    %v1841 = vpop.f32.mrb[0].mxu0
    %v1842 = vadd.f32 %v1663, %v1841
    %v1843 = vpop.f32.mrb[0].mxu0
    %v1844 = vand.u32 %v126, 4294901760
    %1845 = vmatprep.mubr.f32.mxu0 %v1844
    %v1846 = vand.u32 %v125, 4294901760
    %1847 = vmatmul.mubr.f32.gmra.mrb[0].mxu0 %v1846
    %v1848 = vpop.f32.mrb[0].mxu0
    %v1849 = vadd.f32 %v1674, %v1848
    %v1850 = vpop.f32.mrb[0].mxu0
    %1851 = vdwg.mxu0
    %1852 = vmatprep.subr.mxu0 0.0
    %v1853 = vand.u32 %v60, 4294901760
    %1854 = vmatpush1.msra.mxu0 %v1853
    %1855 = vmatprep.subr.mxu0 0.0
    %v1856 = vand.u32 %v61, 4294901760
    %1857 = vmatpush1.msra.mxu0 %v1856
    %1858 = vmatprep.subr.mxu0 0.0
    %v1859 = vand.u32 %v62, 4294901760
    %1860 = vmatpush1.msra.mxu0 %v1859
    %1861 = vmatprep.subr.mxu0 0.0
    %v1862 = vand.u32 %v63, 4294901760
    %1863 = vmatpush1.msra.mxu0 %v1862
    %1864 = vmatprep.subr.mxu0 0.0
    %v1865 = vand.u32 %v64, 4294901760
    %1866 = vmatpush1.msra.mxu0 %v1865
    %1867 = vmatprep.subr.mxu0 0.0
    %v1868 = vand.u32 %v65, 4294901760
    %1869 = vmatpush1.msra.mxu0 %v1868
    %1870 = vmatprep.subr.mxu0 0.0
    %v1871 = vand.u32 %v66, 4294901760
    %1872 = vmatpush1.msra.mxu0 %v1871
    %1873 = vmatprep.subr.mxu0 0.0
    %v1874 = vand.u32 %v67, 4294901760
    %1875 = vmatpush1.msra.mxu0 %v1874
    %1876 = vmatprep.subr.mxu0 0.0
    %v1877 = vand.u32 %v68, 4294901760
    %1878 = vmatpush1.msra.mxu0 %v1877
    %1879 = vmatprep.subr.mxu0 0.0
    %v1880 = vand.u32 %v69, 4294901760
    %1881 = vmatpush1.msra.mxu0 %v1880
    %1882 = vmatprep.subr.mxu0 0.0
    %v1883 = vand.u32 %v70, 4294901760
    %1884 = vmatpush1.msra.mxu0 %v1883
    %1885 = vmatprep.subr.mxu0 0.0
    %v1886 = vand.u32 %v71, 4294901760
    %1887 = vmatpush1.msra.mxu0 %v1886
    %1888 = vmatprep.subr.mxu0 0.0
    %v1889 = vand.u32 %v72, 4294901760
    %1890 = vmatpush1.msra.mxu0 %v1889
    %1891 = vmatprep.subr.mxu0 0.0
    %v1892 = vand.u32 %v73, 4294901760
    %1893 = vmatpush1.msra.mxu0 %v1892
    %1894 = vmatprep.subr.mxu0 0.0
    %v1895 = vand.u32 %v74, 4294901760
    %1896 = vmatpush1.msra.mxu0 %v1895
    %1897 = vmatprep.subr.mxu0 0.0
    %v1898 = vand.u32 %v75, 4294901760
    %1899 = vmatpush1.msra.mxu0 %v1898
    %1900 = vmatprep.subr.mxu0 0.0
    %v1901 = vand.u32 %v76, 4294901760
    %1902 = vmatpush1.msra.mxu0 %v1901
    %1903 = vmatprep.subr.mxu0 0.0
    %v1904 = vand.u32 %v77, 4294901760
    %1905 = vmatpush1.msra.mxu0 %v1904
    %1906 = vmatprep.subr.mxu0 0.0
    %v1907 = vand.u32 %v78, 4294901760
    %1908 = vmatpush1.msra.mxu0 %v1907
    %1909 = vmatprep.subr.mxu0 0.0
    %v1910 = vand.u32 %v79, 4294901760
    %1911 = vmatpush1.msra.mxu0 %v1910
    %1912 = vmatprep.subr.mxu0 0.0
    %v1913 = vand.u32 %v80, 4294901760
    %1914 = vmatpush1.msra.mxu0 %v1913
    %1915 = vmatprep.subr.mxu0 0.0
    %v1916 = vand.u32 %v81, 4294901760
    %1917 = vmatpush1.msra.mxu0 %v1916
    %1918 = vmatprep.subr.mxu0 0.0
    %v1919 = vand.u32 %v82, 4294901760
    %1920 = vmatpush1.msra.mxu0 %v1919
    %1921 = vmatprep.subr.mxu0 0.0
    %v1922 = vand.u32 %v83, 4294901760
    %1923 = vmatpush1.msra.mxu0 %v1922
    %1924 = vmatprep.subr.mxu0 0.0
    %v1925 = vand.u32 %v84, 4294901760
    %1926 = vmatpush1.msra.mxu0 %v1925
    %1927 = vmatprep.subr.mxu0 0.0
    %v1928 = vand.u32 %v85, 4294901760
    %1929 = vmatpush1.msra.mxu0 %v1928
    %1930 = vmatprep.subr.mxu0 0.0
    %v1931 = vand.u32 %v86, 4294901760
    %1932 = vmatpush1.msra.mxu0 %v1931
    %1933 = vmatprep.subr.mxu0 0.0
    %v1934 = vand.u32 %v87, 4294901760
    %1935 = vmatpush1.msra.mxu0 %v1934
    %1936 = vmatprep.subr.mxu0 0.0
    %v1937 = vand.u32 %v88, 4294901760
    %1938 = vmatpush1.msra.mxu0 %v1937
    %1939 = vmatprep.subr.mxu0 0.0
    %v1940 = vand.u32 %v89, 4294901760
    %1941 = vmatpush1.msra.mxu0 %v1940
    %1942 = vmatprep.subr.mxu0 0.0
    %v1943 = vand.u32 %v90, 4294901760
    %1944 = vmatpush1.msra.mxu0 %v1943
    %1945 = vmatprep.subr.mxu0 0.0
    %v1946 = vand.u32 %v91, 4294901760
    %1947 = vmatpush1.msra.mxu0 %v1946
    %v1948 = vand.u32 %v122, 4294901760
    %1949 = vmatprep.mubr.f32.mxu0 %v1948
    %v1950 = vand.u32 %v121, 4294901760
    %1951 = vmatmul.mubr.f32.gmra.mrb[0].mxu0 %v1950
    %v1952 = vpop.f32.mrb[0].mxu0
    %v1953 = vadd.f32 %v1842, %v1952
    %v1954 = vpop.f32.mrb[0].mxu0
    %v1955 = vand.u32 %v126, 4294901760
    %1956 = vmatprep.mubr.f32.mxu0 %v1955
    %v1957 = vand.u32 %v125, 4294901760
    %1958 = vmatmul.mubr.f32.gmra.mrb[0].mxu0 %v1957
    %v1959 = vpop.f32.mrb[0].mxu0
    %v1960 = vadd.f32 %v1849, %v1959
    %v1961 = vpop.f32.mrb[0].mxu0
    %1962 = vdwg.mxu0
    %1963 = vst [vmem:[#allocation5] sm:$0xff] %v1953
    %1964 = vst [vmem:[#allocation5 + $0x8] sm:$0xff] %v1960
    // Predicated region
    $region14: #{tpu_custom_call.1} parent=1 // pred_check
      _
    $region15: #{tpu_custom_call.1} parent=1 // pred_check_branch
      %1966 = sbr.rel (0) target = $region17
    $region16: #{tpu_custom_call.1} parent=1 // pred_region
      %s1968 = ssub.s32 256, 256
      %1969 = vsyncadd [#allocation4], %s1968
      %s1970 = sshll.u32 [#allocation5], 4
      %s1971 = int_to_ptr.vmem [resolvable:$true] %s1970
      %1976 = dma.vmem_to_hbm [thread:$0]  %s1971, 256, %s2, [#allocation4], 128, 128, 8
    $region17: #{tpu_custom_call.1} parent=1 // pred_fallthru
      _
    // Predicated region
    $region18: #{tpu_custom_call.1} parent=1 // pred_check
      _
    $region19: #{tpu_custom_call.1} parent=1 // pred_check_branch
      %1978 = sbr.rel (0) target = $region21
    $region20: #{tpu_custom_call.1} parent=1 // pred_region
      %1979 = dma.done [#allocation4], 256
    $region21: #{tpu_custom_call.1} parent=1 // pred_fallthru
      _
    %1980 = vsyncpa [#allocation3], 1
    %1981 = vsyncpa [#allocation4], 1

// kernel: tpu_custom_call.1
$region0: #{tpu_custom_call.1}
  #allocation0 [shape = 'u32[]', space=smem, size = 0x4, offset = 0x4, fixed_abs, tag = 'smem constant byte address 0x4 - core index']
  #allocation1 [shape = 'u32[144,128]{1,0:T(1,128)}', space=vmem, size = 0x12000, scoped, tag = 'internal scratch']
  %s0 = inlined_call_operand.vmem [shape: s32[1,16,1], index: 0, kind: input, shape index: {}]
  %s1 = inlined_call_operand.hbm [shape: f32[512,128], index: 1, kind: input, shape index: {}]
  %s2 = inlined_call_operand.hbm [shape: f32[16,128], index: 2, kind: output, shape index: {}]
  %s3 = sld [smem:[#allocation0]]
  $region22: #{tpu_custom_call.1} parent=0
    _
  %s5 = ssub.s32 1, %s3
  %s6 = scalar_select 0, %s5, %s3
  $region1: #{tpu_custom_call.1} parent=0
    #allocation2 [shape = 'u8[262144]{0}', space=vmem, size = 0x40000, scoped, tag = 'input window, operand 1, single buffered']
    #allocation3 [shape = 's32[1]{0}', space=sflag, size = 0x4, scoped, tag = 'scoped memory for tpu_custom_call.1']
    #allocation4 [shape = 's32[1]{0}', space=sflag, size = 0x4, scoped, tag = 'scoped memory for tpu_custom_call.1']
    #allocation5 [shape = 'u8[8192]{0}', space=vmem, size = 0x2000, scoped, tag = 'output window, operand 0, single buffered']
    %7 = vsyncpa [#allocation3], 0
    %8 = vsyncpa [#allocation4], 0
    // Predicated region
    $region2: #{tpu_custom_call.1} parent=1 // pred_check
      _
    $region3: #{tpu_custom_call.1} parent=1 // pred_check_branch
      %10 = sbr.rel (0) target = $region5
    $region4: #{tpu_custom_call.1} parent=1 // pred_region
      _
    $region5: #{tpu_custom_call.1} parent=1 // pred_fallthru
      _
    // Predicated region
    $region6: #{tpu_custom_call.1} parent=1 // pred_check
      _
    $region7: #{tpu_custom_call.1} parent=1 // pred_check_branch
      %12 = sbr.rel (0) target = $region9
    $region8: #{tpu_custom_call.1} parent=1 // pred_region
      %s14 = ssub.s32 8192, 8192
      %15 = vsyncadd [#allocation3], %s14
      %s16 = sshll.u32 [#allocation2], 4
      %s17 = int_to_ptr.vmem [resolvable:$true] %s16
      %22 = dma.hbm_to_vmem [thread:$0]  %s1, 8192, %s17, [#allocation3], 128, 128, 8
    $region9: #{tpu_custom_call.1} parent=1 // pred_fallthru
      _
    // Predicated region
    $region10: #{tpu_custom_call.1} parent=1 // pred_check
      _
    $region11: #{tpu_custom_call.1} parent=1 // pred_check_branch
      %24 = sbr.rel (0) target = $region13
    $region12: #{tpu_custom_call.1} parent=1 // pred_region
      %25 = dma.done [#allocation3], 8192
    $region13: #{tpu_custom_call.1} parent=1 // pred_fallthru
      _
    %v26 = vld [vmem:[%s0] sm:$0xff]
    %v27 = vld [vmem:[%s0 + $0x8] sm:$0xff]
    %v28 = vld [vmem:[#allocation2] sm:$0xff]
    %v29 = vld [vmem:[#allocation2 + $0x8] sm:$0xff]
    %v30 = vld [vmem:[#allocation2 + $0x10] sm:$0xff]
    %v31 = vld [vmem:[#allocation2 + $0x18] sm:$0xff]
    %v32 = vld [vmem:[#allocation2 + $0x20] sm:$0xff]
    %v33 = vld [vmem:[#allocation2 + $0x28] sm:$0xff]
    %v34 = vld [vmem:[#allocation2 + $0x30] sm:$0xff]
    %v35 = vld [vmem:[#allocation2 + $0x38] sm:$0xff]
    %v36 = vld [vmem:[#allocation2 + $0x40] sm:$0xff]
    %v37 = vld [vmem:[#allocation2 + $0x48] sm:$0xff]
    %v38 = vld [vmem:[#allocation2 + $0x50] sm:$0xff]
    %v39 = vld [vmem:[#allocation2 + $0x58] sm:$0xff]
    %v40 = vld [vmem:[#allocation2 + $0x60] sm:$0xff]
    %v41 = vld [vmem:[#allocation2 + $0x68] sm:$0xff]
    %v42 = vld [vmem:[#allocation2 + $0x70] sm:$0xff]
    %v43 = vld [vmem:[#allocation2 + $0x78] sm:$0xff]
    %v44 = vld [vmem:[#allocation2 + $0x80] sm:$0xff]
    %v45 = vld [vmem:[#allocation2 + $0x88] sm:$0xff]
    %v46 = vld [vmem:[#allocation2 + $0x90] sm:$0xff]
    %v47 = vld [vmem:[#allocation2 + $0x98] sm:$0xff]
    %v48 = vld [vmem:[#allocation2 + $0xa0] sm:$0xff]
    %v49 = vld [vmem:[#allocation2 + $0xa8] sm:$0xff]
    %v50 = vld [vmem:[#allocation2 + $0xb0] sm:$0xff]
    %v51 = vld [vmem:[#allocation2 + $0xb8] sm:$0xff]
    %v52 = vld [vmem:[#allocation2 + $0xc0] sm:$0xff]
    %v53 = vld [vmem:[#allocation2 + $0xc8] sm:$0xff]
    %v54 = vld [vmem:[#allocation2 + $0xd0] sm:$0xff]
    %v55 = vld [vmem:[#allocation2 + $0xd8] sm:$0xff]
    %v56 = vld [vmem:[#allocation2 + $0xe0] sm:$0xff]
    %v57 = vld [vmem:[#allocation2 + $0xe8] sm:$0xff]
    %v58 = vld [vmem:[#allocation2 + $0xf0] sm:$0xff]
    %v59 = vld [vmem:[#allocation2 + $0xf8] sm:$0xff]
    %v60 = vld [vmem:[#allocation2 + $0x100] sm:$0xff]
    %v61 = vld [vmem:[#allocation2 + $0x108] sm:$0xff]
    %v62 = vld [vmem:[#allocation2 + $0x110] sm:$0xff]
    %v63 = vld [vmem:[#allocation2 + $0x118] sm:$0xff]
    %v64 = vld [vmem:[#allocation2 + $0x120] sm:$0xff]
    %v65 = vld [vmem:[#allocation2 + $0x128] sm:$0xff]
    %v66 = vld [vmem:[#allocation2 + $0x130] sm:$0xff]
    %v67 = vld [vmem:[#allocation2 + $0x138] sm:$0xff]
    %v68 = vld [vmem:[#allocation2 + $0x140] sm:$0xff]
    %v69 = vld [vmem:[#allocation2 + $0x148] sm:$0xff]
    %v70 = vld [vmem:[#allocation2 + $0x150] sm:$0xff]
    %v71 = vld [vmem:[#allocation2 + $0x158] sm:$0xff]
    %v72 = vld [vmem:[#allocation2 + $0x160] sm:$0xff]
    %v73 = vld [vmem:[#allocation2 + $0x168] sm:$0xff]
    %v74 = vld [vmem:[#allocation2 + $0x170] sm:$0xff]
    %v75 = vld [vmem:[#allocation2 + $0x178] sm:$0xff]
    %v76 = vld [vmem:[#allocation2 + $0x180] sm:$0xff]
    %v77 = vld [vmem:[#allocation2 + $0x188] sm:$0xff]
    %v78 = vld [vmem:[#allocation2 + $0x190] sm:$0xff]
    %v79 = vld [vmem:[#allocation2 + $0x198] sm:$0xff]
    %v80 = vld [vmem:[#allocation2 + $0x1a0] sm:$0xff]
    %v81 = vld [vmem:[#allocation2 + $0x1a8] sm:$0xff]
    %v82 = vld [vmem:[#allocation2 + $0x1b0] sm:$0xff]
    %v83 = vld [vmem:[#allocation2 + $0x1b8] sm:$0xff]
    %v84 = vld [vmem:[#allocation2 + $0x1c0] sm:$0xff]
    %v85 = vld [vmem:[#allocation2 + $0x1c8] sm:$0xff]
    %v86 = vld [vmem:[#allocation2 + $0x1d0] sm:$0xff]
    %v87 = vld [vmem:[#allocation2 + $0x1d8] sm:$0xff]
    %v88 = vld [vmem:[#allocation2 + $0x1e0] sm:$0xff]
    %v89 = vld [vmem:[#allocation2 + $0x1e8] sm:$0xff]
    %v90 = vld [vmem:[#allocation2 + $0x1f0] sm:$0xff]
    %v91 = vld [vmem:[#allocation2 + $0x1f8] sm:$0xff]
    %v92 = vlaneseq
    %v93 = vand.u32 %v92, 127
    %v94 = vadd.s32 %v93, 128
    %v95 = vadd.s32 %v93, 256
    %v96 = vadd.s32 %v93, 384
    %97 = vset.pattern.permute.xlu0 0
    %98 = vperm.xlu0 %97, %v26
    %v99 = vpop.permute.xlu0 %98
    %100 = vset.pattern.permute.xlu0 0
    %101 = vperm.xlu0 %100, %v27
    %v102 = vpop.permute.xlu0 %101
    %vm103 = vcmp.eq.s32.totalorder %v93, %v99
    %vm104 = vcmp.eq.s32.totalorder %v94, %v99
    %vm105 = vcmp.eq.s32.totalorder %v95, %v99
    %vm106 = vcmp.eq.s32.totalorder %v96, %v99
    %vm107 = vcmp.eq.s32.totalorder %v93, %v102
    %vm108 = vcmp.eq.s32.totalorder %v94, %v102
    %vm109 = vcmp.eq.s32.totalorder %v95, %v102
    %vm110 = vcmp.eq.s32.totalorder %v96, %v102
    %v111 = vsel %vm103, 1, 0
    %v112 = vsel %vm104, 1, 0
    %v113 = vsel %vm105, 1, 0
    %v114 = vsel %vm106, 1, 0
    %v115 = vsel %vm107, 1, 0
    %v116 = vsel %vm108, 1, 0
    %v117 = vsel %vm109, 1, 0
    %v118 = vsel %vm110, 1, 0
    %v119 = vcvt.s32.f32 %v111
    %v120 = vcvt.s32.f32 %v112
    %v121 = vcvt.s32.f32 %v113
    %v122 = vcvt.s32.f32 %v114
    %v123 = vcvt.s32.f32 %v115
    %v124 = vcvt.s32.f32 %v116
    %v125 = vcvt.s32.f32 %v117
    %v126 = vcvt.s32.f32 %v118
    %127 = vmatprep.subr.mxu0 0.0
    %v128 = vand.u32 %v28, 4294901760
    %129 = vmatpush1.msra.mxu0 %v128
    %130 = vmatprep.subr.mxu0 0.0
    %v131 = vand.u32 %v29, 4294901760
    %132 = vmatpush1.msra.mxu0 %v131
    %133 = vmatprep.subr.mxu0 0.0
    %v134 = vand.u32 %v30, 4294901760
    %135 = vmatpush1.msra.mxu0 %v134
    %136 = vmatprep.subr.mxu0 0.0
    %v137 = vand.u32 %v31, 4294901760
    %138 = vmatpush1.msra.mxu0 %v137
    %139 = vmatprep.subr.mxu0 0.0
    %v140 = vand.u32 %v32, 4294901760
    %141 = vmatpush1.msra.mxu0 %v140
    %142 = vmatprep.subr.mxu0 0.0
    %v143 = vand.u32 %v33, 4294901760
    %144 = vmatpush1.msra.mxu0 %v143
    %145 = vmatprep.subr.mxu0 0.0
    %v146 = vand.u32 %v34, 4294901760
    %147 = vmatpush1.msra.mxu0 %v146
    %148 = vmatprep.subr.mxu0 0.0
    %v149 = vand.u32 %v35, 4294901760
    %150 = vmatpush1.msra.mxu0 %v149
    %151 = vmatprep.subr.mxu0 0.0
    %v152 = vand.u32 %v36, 4294901760
    %153 = vmatpush1.msra.mxu0 %v152
    %154 = vmatprep.subr.mxu0 0.0
    %v155 = vand.u32 %v37, 4294901760
    %156 = vmatpush1.msra.mxu0 %v155
    %157 = vmatprep.subr.mxu0 0.0
    %v158 = vand.u32 %v38, 4294901760
    %159 = vmatpush1.msra.mxu0 %v158
    %160 = vmatprep.subr.mxu0 0.0
    %v161 = vand.u32 %v39, 4294901760
    %162 = vmatpush1.msra.mxu0 %v161
    %163 = vmatprep.subr.mxu0 0.0
    %v164 = vand.u32 %v40, 4294901760
    %165 = vmatpush1.msra.mxu0 %v164
    %166 = vmatprep.subr.mxu0 0.0
    %v167 = vand.u32 %v41, 4294901760
    %168 = vmatpush1.msra.mxu0 %v167
    %169 = vmatprep.subr.mxu0 0.0
    %v170 = vand.u32 %v42, 4294901760
    %171 = vmatpush1.msra.mxu0 %v170
    %172 = vmatprep.subr.mxu0 0.0
    %v173 = vand.u32 %v43, 4294901760
    %174 = vmatpush1.msra.mxu0 %v173
    %175 = vmatprep.subr.mxu0 0.0
    %v176 = vand.u32 %v44, 4294901760
    %177 = vmatpush1.msra.mxu0 %v176
    %178 = vmatprep.subr.mxu0 0.0
    %v179 = vand.u32 %v45, 4294901760
    %180 = vmatpush1.msra.mxu0 %v179
    %181 = vmatprep.subr.mxu0 0.0
    %v182 = vand.u32 %v46, 4294901760
    %183 = vmatpush1.msra.mxu0 %v182
    %184 = vmatprep.subr.mxu0 0.0
    %v185 = vand.u32 %v47, 4294901760
    %186 = vmatpush1.msra.mxu0 %v185
    %187 = vmatprep.subr.mxu0 0.0
    %v188 = vand.u32 %v48, 4294901760
    %189 = vmatpush1.msra.mxu0 %v188
    %190 = vmatprep.subr.mxu0 0.0
    %v191 = vand.u32 %v49, 4294901760
    %192 = vmatpush1.msra.mxu0 %v191
    %193 = vmatprep.subr.mxu0 0.0
    %v194 = vand.u32 %v50, 4294901760
    %195 = vmatpush1.msra.mxu0 %v194
    %196 = vmatprep.subr.mxu0 0.0
    %v197 = vand.u32 %v51, 4294901760
    %198 = vmatpush1.msra.mxu0 %v197
    %199 = vmatprep.subr.mxu0 0.0
    %v200 = vand.u32 %v52, 4294901760
    %201 = vmatpush1.msra.mxu0 %v200
    %202 = vmatprep.subr.mxu0 0.0
    %v203 = vand.u32 %v53, 4294901760
    %204 = vmatpush1.msra.mxu0 %v203
    %205 = vmatprep.subr.mxu0 0.0
    %v206 = vand.u32 %v54, 4294901760
    %207 = vmatpush1.msra.mxu0 %v206
    %208 = vmatprep.subr.mxu0 0.0
    %v209 = vand.u32 %v55, 4294901760
    %210 = vmatpush1.msra.mxu0 %v209
    %211 = vmatprep.subr.mxu0 0.0
    %v212 = vand.u32 %v56, 4294901760
    %213 = vmatpush1.msra.mxu0 %v212
    %214 = vmatprep.subr.mxu0 0.0
    %v215 = vand.u32 %v57, 4294901760
    %216 = vmatpush1.msra.mxu0 %v215
    %217 = vmatprep.subr.mxu0 0.0
    %v218 = vand.u32 %v58, 4294901760
    %219 = vmatpush1.msra.mxu0 %v218
    %220 = vmatprep.subr.mxu0 0.0
    %v221 = vand.u32 %v59, 4294901760
    %222 = vmatpush1.msra.mxu0 %v221
    %v223 = vand.u32 %v120, 4294901760
    %v224 = vsub.f32 %v120, %v223
    %v225 = vand.u32 %v224, 4294901760
    %v226 = vsub.f32 %v224, %v225
    %v227 = vand.u32 %v226, 4294901760
    %228 = vmatprep.mubr.f32.mxu0 %v227
    %v229 = vand.u32 %v119, 4294901760
    %v230 = vsub.f32 %v119, %v229
    %v231 = vand.u32 %v230, 4294901760
    %v232 = vsub.f32 %v230, %v231
    %v233 = vand.u32 %v232, 4294901760
    %234 = vmatmul.mubr.f32.gmra.mrb[0].mxu0 %v233
    %v235 = vpop.f32.mrb[0].mxu0
    %v236 = vadd.f32 0.0, %v235
    %v237 = vpop.f32.mrb[0].mxu0
    %v238 = vand.u32 %v124, 4294901760
    %v239 = vsub.f32 %v124, %v238
    %v240 = vand.u32 %v239, 4294901760
    %v241 = vsub.f32 %v239, %v240
    %v242 = vand.u32 %v241, 4294901760
    %243 = vmatprep.mubr.f32.mxu0 %v242
    %v244 = vand.u32 %v123, 4294901760
    %v245 = vsub.f32 %v123, %v244
    %v246 = vand.u32 %v245, 4294901760
    %v247 = vsub.f32 %v245, %v246
    %v248 = vand.u32 %v247, 4294901760
    %249 = vmatmul.mubr.f32.gmra.mrb[0].mxu0 %v248
    %v250 = vpop.f32.mrb[0].mxu0
    %v251 = vadd.f32 0.0, %v250
    %v252 = vpop.f32.mrb[0].mxu0
    %253 = vdwg.mxu0
    %254 = vmatprep.subr.mxu0 0.0
    %v255 = vand.u32 %v28, 4294901760
    %v256 = vsub.f32 %v28, %v255
    %v257 = vand.u32 %v256, 4294901760
    %v258 = vsub.f32 %v256, %v257
    %v259 = vand.u32 %v258, 4294901760
    %260 = vmatpush1.msra.mxu0 %v259
    %261 = vmatprep.subr.mxu0 0.0
    %v262 = vand.u32 %v29, 4294901760
    %v263 = vsub.f32 %v29, %v262
    %v264 = vand.u32 %v263, 4294901760
    %v265 = vsub.f32 %v263, %v264
    %v266 = vand.u32 %v265, 4294901760
    %267 = vmatpush1.msra.mxu0 %v266
    %268 = vmatprep.subr.mxu0 0.0
    %v269 = vand.u32 %v30, 4294901760
    %v270 = vsub.f32 %v30, %v269
    %v271 = vand.u32 %v270, 4294901760
    %v272 = vsub.f32 %v270, %v271
    %v273 = vand.u32 %v272, 4294901760
    %274 = vmatpush1.msra.mxu0 %v273
    %275 = vmatprep.subr.mxu0 0.0
    %v276 = vand.u32 %v31, 4294901760
    %v277 = vsub.f32 %v31, %v276
    %v278 = vand.u32 %v277, 4294901760
    %v279 = vsub.f32 %v277, %v278
    %v280 = vand.u32 %v279, 4294901760
    %281 = vmatpush1.msra.mxu0 %v280
    %282 = vmatprep.subr.mxu0 0.0
    %v283 = vand.u32 %v32, 4294901760
    %v284 = vsub.f32 %v32, %v283
    %v285 = vand.u32 %v284, 4294901760
    %v286 = vsub.f32 %v284, %v285
    %v287 = vand.u32 %v286, 4294901760
    %288 = vmatpush1.msra.mxu0 %v287
    %289 = vmatprep.subr.mxu0 0.0
    %v290 = vand.u32 %v33, 4294901760
    %v291 = vsub.f32 %v33, %v290
    %v292 = vand.u32 %v291, 4294901760
    %v293 = vsub.f32 %v291, %v292
    %v294 = vand.u32 %v293, 4294901760
    %295 = vmatpush1.msra.mxu0 %v294
    %296 = vmatprep.subr.mxu0 0.0
    %v297 = vand.u32 %v34, 4294901760
    %v298 = vsub.f32 %v34, %v297
    %v299 = vand.u32 %v298, 4294901760
    %v300 = vsub.f32 %v298, %v299
    %v301 = vand.u32 %v300, 4294901760
    %302 = vmatpush1.msra.mxu0 %v301
    %303 = vmatprep.subr.mxu0 0.0
    %v304 = vand.u32 %v35, 4294901760
    %v305 = vsub.f32 %v35, %v304
    %v306 = vand.u32 %v305, 4294901760
    %v307 = vsub.f32 %v305, %v306
    %v308 = vand.u32 %v307, 4294901760
    %309 = vmatpush1.msra.mxu0 %v308
    %310 = vmatprep.subr.mxu0 0.0
    %v311 = vand.u32 %v36, 4294901760
    %v312 = vsub.f32 %v36, %v311
    %v313 = vand.u32 %v312, 4294901760
    %v314 = vsub.f32 %v312, %v313
    %v315 = vand.u32 %v314, 4294901760
    %316 = vmatpush1.msra.mxu0 %v315
    %317 = vmatprep.subr.mxu0 0.0
    %v318 = vand.u32 %v37, 4294901760
    %v319 = vsub.f32 %v37, %v318
    %v320 = vand.u32 %v319, 4294901760
    %v321 = vsub.f32 %v319, %v320
    %v322 = vand.u32 %v321, 4294901760
    %323 = vmatpush1.msra.mxu0 %v322
    %324 = vmatprep.subr.mxu0 0.0
    %v325 = vand.u32 %v38, 4294901760
    %v326 = vsub.f32 %v38, %v325
    %v327 = vand.u32 %v326, 4294901760
    %v328 = vsub.f32 %v326, %v327
    %v329 = vand.u32 %v328, 4294901760
    %330 = vmatpush1.msra.mxu0 %v329
    %331 = vmatprep.subr.mxu0 0.0
    %v332 = vand.u32 %v39, 4294901760
    %v333 = vsub.f32 %v39, %v332
    %v334 = vand.u32 %v333, 4294901760
    %v335 = vsub.f32 %v333, %v334
    %v336 = vand.u32 %v335, 4294901760
    %337 = vmatpush1.msra.mxu0 %v336
    %338 = vmatprep.subr.mxu0 0.0
    %v339 = vand.u32 %v40, 4294901760
    %v340 = vsub.f32 %v40, %v339
    %v341 = vand.u32 %v340, 4294901760
    %v342 = vsub.f32 %v340, %v341
    %v343 = vand.u32 %v342, 4294901760
    %344 = vmatpush1.msra.mxu0 %v343
    %345 = vmatprep.subr.mxu0 0.0
    %v346 = vand.u32 %v41, 4294901760
    %v347 = vsub.f32 %v41, %v346
    %v348 = vand.u32 %v347, 4294901760
    %v349 = vsub.f32 %v347, %v348
    %v350 = vand.u32 %v349, 4294901760
    %351 = vmatpush1.msra.mxu0 %v350
    %352 = vmatprep.subr.mxu0 0.0
    %v353 = vand.u32 %v42, 4294901760
    %v354 = vsub.f32 %v42, %v353
    %v355 = vand.u32 %v354, 4294901760
    %v356 = vsub.f32 %v354, %v355
    %v357 = vand.u32 %v356, 4294901760
    %358 = vmatpush1.msra.mxu0 %v357
    %359 = vmatprep.subr.mxu0 0.0
    %v360 = vand.u32 %v43, 4294901760
    %v361 = vsub.f32 %v43, %v360
    %v362 = vand.u32 %v361, 4294901760
    %v363 = vsub.f32 %v361, %v362
    %v364 = vand.u32 %v363, 4294901760
    %365 = vmatpush1.msra.mxu0 %v364
    %366 = vmatprep.subr.mxu0 0.0
    %v367 = vand.u32 %v44, 4294901760
    %v368 = vsub.f32 %v44, %v367
    %v369 = vand.u32 %v368, 4294901760
    %v370 = vsub.f32 %v368, %v369
    %v371 = vand.u32 %v370, 4294901760
    %372 = vmatpush1.msra.mxu0 %v371
    %373 = vmatprep.subr.mxu0 0.0
    %v374 = vand.u32 %v45, 4294901760
    %v375 = vsub.f32 %v45, %v374
    %v376 = vand.u32 %v375, 4294901760
    %v377 = vsub.f32 %v375, %v376
    %v378 = vand.u32 %v377, 4294901760
    %379 = vmatpush1.msra.mxu0 %v378
    %380 = vmatprep.subr.mxu0 0.0
    %v381 = vand.u32 %v46, 4294901760
    %v382 = vsub.f32 %v46, %v381
    %v383 = vand.u32 %v382, 4294901760
    %v384 = vsub.f32 %v382, %v383
    %v385 = vand.u32 %v384, 4294901760
    %386 = vmatpush1.msra.mxu0 %v385
    %387 = vmatprep.subr.mxu0 0.0
    %v388 = vand.u32 %v47, 4294901760
    %v389 = vsub.f32 %v47, %v388
    %v390 = vand.u32 %v389, 4294901760
    %v391 = vsub.f32 %v389, %v390
    %v392 = vand.u32 %v391, 4294901760
    %393 = vmatpush1.msra.mxu0 %v392
    %394 = vmatprep.subr.mxu0 0.0
    %v395 = vand.u32 %v48, 4294901760
    %v396 = vsub.f32 %v48, %v395
    %v397 = vand.u32 %v396, 4294901760
    %v398 = vsub.f32 %v396, %v397
    %v399 = vand.u32 %v398, 4294901760
    %400 = vmatpush1.msra.mxu0 %v399
    %401 = vmatprep.subr.mxu0 0.0
    %v402 = vand.u32 %v49, 4294901760
    %v403 = vsub.f32 %v49, %v402
    %v404 = vand.u32 %v403, 4294901760
    %v405 = vsub.f32 %v403, %v404
    %v406 = vand.u32 %v405, 4294901760
    %407 = vmatpush1.msra.mxu0 %v406
    %408 = vmatprep.subr.mxu0 0.0
    %v409 = vand.u32 %v50, 4294901760
    %v410 = vsub.f32 %v50, %v409
    %v411 = vand.u32 %v410, 4294901760
    %v412 = vsub.f32 %v410, %v411
    %v413 = vand.u32 %v412, 4294901760
    %414 = vmatpush1.msra.mxu0 %v413
    %415 = vmatprep.subr.mxu0 0.0
    %v416 = vand.u32 %v51, 4294901760
    %v417 = vsub.f32 %v51, %v416
    %v418 = vand.u32 %v417, 4294901760
    %v419 = vsub.f32 %v417, %v418
    %v420 = vand.u32 %v419, 4294901760
    %421 = vmatpush1.msra.mxu0 %v420
    %422 = vmatprep.subr.mxu0 0.0
    %v423 = vand.u32 %v52, 4294901760
    %v424 = vsub.f32 %v52, %v423
    %v425 = vand.u32 %v424, 4294901760
    %v426 = vsub.f32 %v424, %v425
    %v427 = vand.u32 %v426, 4294901760
    %428 = vmatpush1.msra.mxu0 %v427
    %429 = vmatprep.subr.mxu0 0.0
    %v430 = vand.u32 %v53, 4294901760
    %v431 = vsub.f32 %v53, %v430
    %v432 = vand.u32 %v431, 4294901760
    %v433 = vsub.f32 %v431, %v432
    %v434 = vand.u32 %v433, 4294901760
    %435 = vmatpush1.msra.mxu0 %v434
    %436 = vmatprep.subr.mxu0 0.0
    %v437 = vand.u32 %v54, 4294901760
    %v438 = vsub.f32 %v54, %v437
    %v439 = vand.u32 %v438, 4294901760
    %v440 = vsub.f32 %v438, %v439
    %v441 = vand.u32 %v440, 4294901760
    %442 = vmatpush1.msra.mxu0 %v441
    %443 = vmatprep.subr.mxu0 0.0
    %v444 = vand.u32 %v55, 4294901760
    %v445 = vsub.f32 %v55, %v444
    %v446 = vand.u32 %v445, 4294901760
    %v447 = vsub.f32 %v445, %v446
    %v448 = vand.u32 %v447, 4294901760
    %449 = vmatpush1.msra.mxu0 %v448
    %450 = vmatprep.subr.mxu0 0.0
    %v451 = vand.u32 %v56, 4294901760
    %v452 = vsub.f32 %v56, %v451
    %v453 = vand.u32 %v452, 4294901760
    %v454 = vsub.f32 %v452, %v453
    %v455 = vand.u32 %v454, 4294901760
    %456 = vmatpush1.msra.mxu0 %v455
    %457 = vmatprep.subr.mxu0 0.0
    %v458 = vand.u32 %v57, 4294901760
    %v459 = vsub.f32 %v57, %v458
    %v460 = vand.u32 %v459, 4294901760
    %v461 = vsub.f32 %v459, %v460
    %v462 = vand.u32 %v461, 4294901760
    %463 = vmatpush1.msra.mxu0 %v462
    %464 = vmatprep.subr.mxu0 0.0
    %v465 = vand.u32 %v58, 4294901760
    %v466 = vsub.f32 %v58, %v465
    %v467 = vand.u32 %v466, 4294901760
    %v468 = vsub.f32 %v466, %v467
    %v469 = vand.u32 %v468, 4294901760
    %470 = vmatpush1.msra.mxu0 %v469
    %471 = vmatprep.subr.mxu0 0.0
    %v472 = vand.u32 %v59, 4294901760
    %v473 = vsub.f32 %v59, %v472
    %v474 = vand.u32 %v473, 4294901760
    %v475 = vsub.f32 %v473, %v474
    %v476 = vand.u32 %v475, 4294901760
    %477 = vmatpush1.msra.mxu0 %v476
    %v478 = vand.u32 %v120, 4294901760
    %479 = vmatprep.mubr.f32.mxu0 %v478
    %v480 = vand.u32 %v119, 4294901760
    %481 = vmatmul.mubr.f32.gmra.mrb[0].mxu0 %v480
    %v482 = vpop.f32.mrb[0].mxu0
    %v483 = vadd.f32 %v236, %v482
    %v484 = vpop.f32.mrb[0].mxu0
    %v485 = vand.u32 %v124, 4294901760
    %486 = vmatprep.mubr.f32.mxu0 %v485
    %v487 = vand.u32 %v123, 4294901760
    %488 = vmatmul.mubr.f32.gmra.mrb[0].mxu0 %v487
    %v489 = vpop.f32.mrb[0].mxu0
    %v490 = vadd.f32 %v251, %v489
    %v491 = vpop.f32.mrb[0].mxu0
    %492 = vdwg.mxu0
    %493 = vmatprep.subr.mxu0 0.0
    %v494 = vand.u32 %v28, 4294901760
    %v495 = vsub.f32 %v28, %v494
    %496 = vmatpush1.msra.mxu0 %v495
    %497 = vmatprep.subr.mxu0 0.0
    %v498 = vand.u32 %v29, 4294901760
    %v499 = vsub.f32 %v29, %v498
    %500 = vmatpush1.msra.mxu0 %v499
    %501 = vmatprep.subr.mxu0 0.0
    %v502 = vand.u32 %v30, 4294901760
    %v503 = vsub.f32 %v30, %v502
    %504 = vmatpush1.msra.mxu0 %v503
    %505 = vmatprep.subr.mxu0 0.0
    %v506 = vand.u32 %v31, 4294901760
    %v507 = vsub.f32 %v31, %v506
    %508 = vmatpush1.msra.mxu0 %v507
    %509 = vmatprep.subr.mxu0 0.0
    %v510 = vand.u32 %v32, 4294901760
    %v511 = vsub.f32 %v32, %v510
    %512 = vmatpush1.msra.mxu0 %v511
    %513 = vmatprep.subr.mxu0 0.0
    %v514 = vand.u32 %v33, 4294901760
    %v515 = vsub.f32 %v33, %v514
    %516 = vmatpush1.msra.mxu0 %v515
    %517 = vmatprep.subr.mxu0 0.0
    %v518 = vand.u32 %v34, 4294901760
    %v519 = vsub.f32 %v34, %v518
    %520 = vmatpush1.msra.mxu0 %v519
    %521 = vmatprep.subr.mxu0 0.0
    %v522 = vand.u32 %v35, 4294901760
    %v523 = vsub.f32 %v35, %v522
    %524 = vmatpush1.msra.mxu0 %v523
    %525 = vmatprep.subr.mxu0 0.0
    %v526 = vand.u32 %v36, 4294901760
    %v527 = vsub.f32 %v36, %v526
    %528 = vmatpush1.msra.mxu0 %v527
    %529 = vmatprep.subr.mxu0 0.0
    %v530 = vand.u32 %v37, 4294901760
    %v531 = vsub.f32 %v37, %v530
    %532 = vmatpush1.msra.mxu0 %v531
    %533 = vmatprep.subr.mxu0 0.0
    %v534 = vand.u32 %v38, 4294901760
    %v535 = vsub.f32 %v38, %v534
    %536 = vmatpush1.msra.mxu0 %v535
    %537 = vmatprep.subr.mxu0 0.0
    %v538 = vand.u32 %v39, 4294901760
    %v539 = vsub.f32 %v39, %v538
    %540 = vmatpush1.msra.mxu0 %v539
    %541 = vmatprep.subr.mxu0 0.0
    %v542 = vand.u32 %v40, 4294901760
    %v543 = vsub.f32 %v40, %v542
    %544 = vmatpush1.msra.mxu0 %v543
    %545 = vmatprep.subr.mxu0 0.0
    %v546 = vand.u32 %v41, 4294901760
    %v547 = vsub.f32 %v41, %v546
    %548 = vmatpush1.msra.mxu0 %v547
    %549 = vmatprep.subr.mxu0 0.0
    %v550 = vand.u32 %v42, 4294901760
    %v551 = vsub.f32 %v42, %v550
    %552 = vmatpush1.msra.mxu0 %v551
    %553 = vmatprep.subr.mxu0 0.0
    %v554 = vand.u32 %v43, 4294901760
    %v555 = vsub.f32 %v43, %v554
    %556 = vmatpush1.msra.mxu0 %v555
    %557 = vmatprep.subr.mxu0 0.0
    %v558 = vand.u32 %v44, 4294901760
    %v559 = vsub.f32 %v44, %v558
    %560 = vmatpush1.msra.mxu0 %v559
    %561 = vmatprep.subr.mxu0 0.0
    %v562 = vand.u32 %v45, 4294901760
    %v563 = vsub.f32 %v45, %v562
    %564 = vmatpush1.msra.mxu0 %v563
    %565 = vmatprep.subr.mxu0 0.0
    %v566 = vand.u32 %v46, 4294901760
    %v567 = vsub.f32 %v46, %v566
    %568 = vmatpush1.msra.mxu0 %v567
    %569 = vmatprep.subr.mxu0 0.0
    %v570 = vand.u32 %v47, 4294901760
    %v571 = vsub.f32 %v47, %v570
    %572 = vmatpush1.msra.mxu0 %v571
    %573 = vmatprep.subr.mxu0 0.0
    %v574 = vand.u32 %v48, 4294901760
    %v575 = vsub.f32 %v48, %v574
    %576 = vmatpush1.msra.mxu0 %v575
    %577 = vmatprep.subr.mxu0 0.0
    %v578 = vand.u32 %v49, 4294901760
    %v579 = vsub.f32 %v49, %v578
    %580 = vmatpush1.msra.mxu0 %v579
    %581 = vmatprep.subr.mxu0 0.0
    %v582 = vand.u32 %v50, 4294901760
    %v583 = vsub.f32 %v50, %v582
    %584 = vmatpush1.msra.mxu0 %v583
    %585 = vmatprep.subr.mxu0 0.0
    %v586 = vand.u32 %v51, 4294901760
    %v587 = vsub.f32 %v51, %v586
    %588 = vmatpush1.msra.mxu0 %v587
    %589 = vmatprep.subr.mxu0 0.0
    %v590 = vand.u32 %v52, 4294901760
    %v591 = vsub.f32 %v52, %v590
    %592 = vmatpush1.msra.mxu0 %v591
    %593 = vmatprep.subr.mxu0 0.0
    %v594 = vand.u32 %v53, 4294901760
    %v595 = vsub.f32 %v53, %v594
    %596 = vmatpush1.msra.mxu0 %v595
    %597 = vmatprep.subr.mxu0 0.0
    %v598 = vand.u32 %v54, 4294901760
    %v599 = vsub.f32 %v54, %v598
    %600 = vmatpush1.msra.mxu0 %v599
    %601 = vmatprep.subr.mxu0 0.0
    %v602 = vand.u32 %v55, 4294901760
    %v603 = vsub.f32 %v55, %v602
    %604 = vmatpush1.msra.mxu0 %v603
    %605 = vmatprep.subr.mxu0 0.0
    %v606 = vand.u32 %v56, 4294901760
    %v607 = vsub.f32 %v56, %v606
    %608 = vmatpush1.msra.mxu0 %v607
    %609 = vmatprep.subr.mxu0 0.0
    %v610 = vand.u32 %v57, 4294901760
    %v611 = vsub.f32 %v57, %v610
    %612 = vmatpush1.msra.mxu0 %v611
    %613 = vmatprep.subr.mxu0 0.0
    %v614 = vand.u32 %v58, 4294901760
    %v615 = vsub.f32 %v58, %v614
    %616 = vmatpush1.msra.mxu0 %v615
    %617 = vmatprep.subr.mxu0 0.0
    %v618 = vand.u32 %v59, 4294901760
    %v619 = vsub.f32 %v59, %v618
    %620 = vmatpush1.msra.mxu0 %v619
    %v621 = vand.u32 %v120, 4294901760
    %v622 = vsub.f32 %v120, %v621
    %623 = vmatprep.mubr.f32.mxu0 %v622
    %v624 = vand.u32 %v119, 4294901760
    %v625 = vsub.f32 %v119, %v624
    %626 = vmatmul.mubr.f32.gmra.mrb[0].mxu0 %v625
    %v627 = vpop.f32.mrb[0].mxu0
    %v628 = vadd.f32 %v483, %v627
    %v629 = vpop.f32.mrb[0].mxu0
    %v630 = vand.u32 %v124, 4294901760
    %v631 = vsub.f32 %v124, %v630
    %632 = vmatprep.mubr.f32.mxu0 %v631
    %v633 = vand.u32 %v123, 4294901760
    %v634 = vsub.f32 %v123, %v633
    %635 = vmatmul.mubr.f32.gmra.mrb[0].mxu0 %v634
    %v636 = vpop.f32.mrb[0].mxu0
    %v637 = vadd.f32 %v490, %v636
    %v638 = vpop.f32.mrb[0].mxu0
    %639 = vdwg.mxu0
    %640 = vmatprep.subr.mxu0 0.0
    %v641 = vand.u32 %v28, 4294901760
    %642 = vmatpush1.msra.mxu0 %v641
    %643 = vmatprep.subr.mxu0 0.0
    %v644 = vand.u32 %v29, 4294901760
    %645 = vmatpush1.msra.mxu0 %v644
    %646 = vmatprep.subr.mxu0 0.0
    %v647 = vand.u32 %v30, 4294901760
    %648 = vmatpush1.msra.mxu0 %v647
    %649 = vmatprep.subr.mxu0 0.0
    %v650 = vand.u32 %v31, 4294901760
    %651 = vmatpush1.msra.mxu0 %v650
    %652 = vmatprep.subr.mxu0 0.0
    %v653 = vand.u32 %v32, 4294901760
    %654 = vmatpush1.msra.mxu0 %v653
    %655 = vmatprep.subr.mxu0 0.0
    %v656 = vand.u32 %v33, 4294901760
    %657 = vmatpush1.msra.mxu0 %v656
    %658 = vmatprep.subr.mxu0 0.0
    %v659 = vand.u32 %v34, 4294901760
    %660 = vmatpush1.msra.mxu0 %v659
    %661 = vmatprep.subr.mxu0 0.0
    %v662 = vand.u32 %v35, 4294901760
    %663 = vmatpush1.msra.mxu0 %v662
    %664 = vmatprep.subr.mxu0 0.0
    %v665 = vand.u32 %v36, 4294901760
    %666 = vmatpush1.msra.mxu0 %v665
    %667 = vmatprep.subr.mxu0 0.0
    %v668 = vand.u32 %v37, 4294901760
    %669 = vmatpush1.msra.mxu0 %v668
    %670 = vmatprep.subr.mxu0 0.0
    %v671 = vand.u32 %v38, 4294901760
    %672 = vmatpush1.msra.mxu0 %v671
    %673 = vmatprep.subr.mxu0 0.0
    %v674 = vand.u32 %v39, 4294901760
    %675 = vmatpush1.msra.mxu0 %v674
    %676 = vmatprep.subr.mxu0 0.0
    %v677 = vand.u32 %v40, 4294901760
    %678 = vmatpush1.msra.mxu0 %v677
    %679 = vmatprep.subr.mxu0 0.0
    %v680 = vand.u32 %v41, 4294901760
    %681 = vmatpush1.msra.mxu0 %v680
    %682 = vmatprep.subr.mxu0 0.0
    %v683 = vand.u32 %v42, 4294901760
    %684 = vmatpush1.msra.mxu0 %v683
    %685 = vmatprep.subr.mxu0 0.0
    %v686 = vand.u32 %v43, 4294901760
    %687 = vmatpush1.msra.mxu0 %v686
    %688 = vmatprep.subr.mxu0 0.0
    %v689 = vand.u32 %v44, 4294901760
    %690 = vmatpush1.msra.mxu0 %v689
    %691 = vmatprep.subr.mxu0 0.0
    %v692 = vand.u32 %v45, 4294901760
    %693 = vmatpush1.msra.mxu0 %v692
    %694 = vmatprep.subr.mxu0 0.0
    %v695 = vand.u32 %v46, 4294901760
    %696 = vmatpush1.msra.mxu0 %v695
    %697 = vmatprep.subr.mxu0 0.0
    %v698 = vand.u32 %v47, 4294901760
    %699 = vmatpush1.msra.mxu0 %v698
    %700 = vmatprep.subr.mxu0 0.0
    %v701 = vand.u32 %v48, 4294901760
    %702 = vmatpush1.msra.mxu0 %v701
    %703 = vmatprep.subr.mxu0 0.0
    %v704 = vand.u32 %v49, 4294901760
    %705 = vmatpush1.msra.mxu0 %v704
    %706 = vmatprep.subr.mxu0 0.0
    %v707 = vand.u32 %v50, 4294901760
    %708 = vmatpush1.msra.mxu0 %v707
    %709 = vmatprep.subr.mxu0 0.0
    %v710 = vand.u32 %v51, 4294901760
    %711 = vmatpush1.msra.mxu0 %v710
    %712 = vmatprep.subr.mxu0 0.0
    %v713 = vand.u32 %v52, 4294901760
    %714 = vmatpush1.msra.mxu0 %v713
    %715 = vmatprep.subr.mxu0 0.0
    %v716 = vand.u32 %v53, 4294901760
    %717 = vmatpush1.msra.mxu0 %v716
    %718 = vmatprep.subr.mxu0 0.0
    %v719 = vand.u32 %v54, 4294901760
    %720 = vmatpush1.msra.mxu0 %v719
    %721 = vmatprep.subr.mxu0 0.0
    %v722 = vand.u32 %v55, 4294901760
    %723 = vmatpush1.msra.mxu0 %v722
    %724 = vmatprep.subr.mxu0 0.0
    %v725 = vand.u32 %v56, 4294901760
    %726 = vmatpush1.msra.mxu0 %v725
    %727 = vmatprep.subr.mxu0 0.0
    %v728 = vand.u32 %v57, 4294901760
    %729 = vmatpush1.msra.mxu0 %v728
    %730 = vmatprep.subr.mxu0 0.0
    %v731 = vand.u32 %v58, 4294901760
    %732 = vmatpush1.msra.mxu0 %v731
    %733 = vmatprep.subr.mxu0 0.0
    %v734 = vand.u32 %v59, 4294901760
    %735 = vmatpush1.msra.mxu0 %v734
    %v736 = vand.u32 %v120, 4294901760
    %v737 = vsub.f32 %v120, %v736
    %v738 = vand.u32 %v737, 4294901760
    %739 = vmatprep.mubr.f32.mxu0 %v738
    %v740 = vand.u32 %v119, 4294901760
    %v741 = vsub.f32 %v119, %v740
    %v742 = vand.u32 %v741, 4294901760
    %743 = vmatmul.mubr.f32.gmra.mrb[0].mxu0 %v742
    %v744 = vpop.f32.mrb[0].mxu0
    %v745 = vadd.f32 %v628, %v744
    %v746 = vpop.f32.mrb[0].mxu0
    %v747 = vand.u32 %v124, 4294901760
    %v748 = vsub.f32 %v124, %v747
    %v749 = vand.u32 %v748, 4294901760
    %750 = vmatprep.mubr.f32.mxu0 %v749
    %v751 = vand.u32 %v123, 4294901760
    %v752 = vsub.f32 %v123, %v751
    %v753 = vand.u32 %v752, 4294901760
    %754 = vmatmul.mubr.f32.gmra.mrb[0].mxu0 %v753
    %v755 = vpop.f32.mrb[0].mxu0
    %v756 = vadd.f32 %v637, %v755
    %v757 = vpop.f32.mrb[0].mxu0
    %758 = vdwg.mxu0
    %759 = vmatprep.subr.mxu0 0.0
    %v760 = vand.u32 %v28, 4294901760
    %v761 = vsub.f32 %v28, %v760
    %v762 = vand.u32 %v761, 4294901760
    %763 = vmatpush1.msra.mxu0 %v762
    %764 = vmatprep.subr.mxu0 0.0
    %v765 = vand.u32 %v29, 4294901760
    %v766 = vsub.f32 %v29, %v765
    %v767 = vand.u32 %v766, 4294901760
    %768 = vmatpush1.msra.mxu0 %v767
    %769 = vmatprep.subr.mxu0 0.0
    %v770 = vand.u32 %v30, 4294901760
    %v771 = vsub.f32 %v30, %v770
    %v772 = vand.u32 %v771, 4294901760
    %773 = vmatpush1.msra.mxu0 %v772
    %774 = vmatprep.subr.mxu0 0.0
    %v775 = vand.u32 %v31, 4294901760
    %v776 = vsub.f32 %v31, %v775
    %v777 = vand.u32 %v776, 4294901760
    %778 = vmatpush1.msra.mxu0 %v777
    %779 = vmatprep.subr.mxu0 0.0
    %v780 = vand.u32 %v32, 4294901760
    %v781 = vsub.f32 %v32, %v780
    %v782 = vand.u32 %v781, 4294901760
    %783 = vmatpush1.msra.mxu0 %v782
    %784 = vmatprep.subr.mxu0 0.0
    %v785 = vand.u32 %v33, 4294901760
    %v786 = vsub.f32 %v33, %v785
    %v787 = vand.u32 %v786, 4294901760
    %788 = vmatpush1.msra.mxu0 %v787
    %789 = vmatprep.subr.mxu0 0.0
    %v790 = vand.u32 %v34, 4294901760
    %v791 = vsub.f32 %v34, %v790
    %v792 = vand.u32 %v791, 4294901760
    %793 = vmatpush1.msra.mxu0 %v792
    %794 = vmatprep.subr.mxu0 0.0
    %v795 = vand.u32 %v35, 4294901760
    %v796 = vsub.f32 %v35, %v795
    %v797 = vand.u32 %v796, 4294901760
    %798 = vmatpush1.msra.mxu0 %v797
    %799 = vmatprep.subr.mxu0 0.0
    %v800 = vand.u32 %v36, 4294901760
    %v801 = vsub.f32 %v36, %v800
    %v802 = vand.u32 %v801, 4294901760
    %803 = vmatpush1.msra.mxu0 %v802
    %804 = vmatprep.subr.mxu0 0.0
    %v805 = vand.u32 %v37, 4294901760
    %v806 = vsub.f32 %v37, %v805
    %v807 = vand.u32 %v806, 4294901760
    %808 = vmatpush1.msra.mxu0 %v807
    %809 = vmatprep.subr.mxu0 0.0
    %v810 = vand.u32 %v38, 4294901760
    %v811 = vsub.f32 %v38, %v810
    %v812 = vand.u32 %v811, 4294901760
    %813 = vmatpush1.msra.mxu0 %v812
    %814 = vmatprep.subr.mxu0 0.0
    %v815 = vand.u32 %v39, 4294901760
    %v816 = vsub.f32 %v39, %v815
    %v817 = vand.u32 %v816, 4294901760
    %818 = vmatpush1.msra.mxu0 %v817
    %819 = vmatprep.subr.mxu0 0.0
    %v820 = vand.u32 %v40, 4294901760
    %v821 = vsub.f32 %v40, %v820
    %v822 = vand.u32 %v821, 4294901760
    %823 = vmatpush1.msra.mxu0 %v822
    %824 = vmatprep.subr.mxu0 0.0
    %v825 = vand.u32 %v41, 4294901760
    %v826 = vsub.f32 %v41, %v825
    %v827 = vand.u32 %v826, 4294901760
    %828 = vmatpush1.msra.mxu0 %v827
    %829 = vmatprep.subr.mxu0 0.0
    %v830 = vand.u32 %v42, 4294901760
    %v831 = vsub.f32 %v42, %v830
    %v832 = vand.u32 %v831, 4294901760
    %833 = vmatpush1.msra.mxu0 %v832
    %834 = vmatprep.subr.mxu0 0.0
    %v835 = vand.u32 %v43, 4294901760
    %v836 = vsub.f32 %v43, %v835
    %v837 = vand.u32 %v836, 4294901760
    %838 = vmatpush1.msra.mxu0 %v837
    %839 = vmatprep.subr.mxu0 0.0
    %v840 = vand.u32 %v44, 4294901760
    %v841 = vsub.f32 %v44, %v840
    %v842 = vand.u32 %v841, 4294901760
    %843 = vmatpush1.msra.mxu0 %v842
    %844 = vmatprep.subr.mxu0 0.0
    %v845 = vand.u32 %v45, 4294901760
    %v846 = vsub.f32 %v45, %v845
    %v847 = vand.u32 %v846, 4294901760
    %848 = vmatpush1.msra.mxu0 %v847
    %849 = vmatprep.subr.mxu0 0.0
    %v850 = vand.u32 %v46, 4294901760
    %v851 = vsub.f32 %v46, %v850
    %v852 = vand.u32 %v851, 4294901760
    %853 = vmatpush1.msra.mxu0 %v852
    %854 = vmatprep.subr.mxu0 0.0
    %v855 = vand.u32 %v47, 4294901760
    %v856 = vsub.f32 %v47, %v855
    %v857 = vand.u32 %v856, 4294901760
    %858 = vmatpush1.msra.mxu0 %v857
    %859 = vmatprep.subr.mxu0 0.0
    %v860 = vand.u32 %v48, 4294901760
    %v861 = vsub.f32 %v48, %v860
    %v862 = vand.u32 %v861, 4294901760
    %863 = vmatpush1.msra.mxu0 %v862
    %864 = vmatprep.subr.mxu0 0.0
    %v865 = vand.u32 %v49, 4294901760
    %v866 = vsub.f32 %v49, %v865
    %v867 = vand.u32 %v866, 4294901760
    %868 = vmatpush1.msra.mxu0 %v867
    %869 = vmatprep.subr.mxu0 0.0
    %v870 = vand.u32 %v50, 4294901760
    %v871 = vsub.f32 %v50, %v870
    %v872 = vand.u32 %v871, 4294901760
    %873 = vmatpush1.msra.mxu0 %v872
    %874 = vmatprep.subr.mxu0 0.0
    %v875 = vand.u32 %v51, 4294901760
    %v876 = vsub.f32 %v51, %v875
    %v877 = vand.u32 %v876, 4294901760
    %878 = vmatpush1.msra.mxu0 %v877
    %879 = vmatprep.subr.mxu0 0.0
    %v880 = vand.u32 %v52, 4294901760
    %v881 = vsub.f32 %v52, %v880
    %v882 = vand.u32 %v881, 4294901760
    %883 = vmatpush1.msra.mxu0 %v882
    %884 = vmatprep.subr.mxu0 0.0
    %v885 = vand.u32 %v53, 4294901760
    %v886 = vsub.f32 %v53, %v885
    %v887 = vand.u32 %v886, 4294901760
    %888 = vmatpush1.msra.mxu0 %v887
    %889 = vmatprep.subr.mxu0 0.0
    %v890 = vand.u32 %v54, 4294901760
    %v891 = vsub.f32 %v54, %v890
    %v892 = vand.u32 %v891, 4294901760
    %893 = vmatpush1.msra.mxu0 %v892
    %894 = vmatprep.subr.mxu0 0.0
    %v895 = vand.u32 %v55, 4294901760
    %v896 = vsub.f32 %v55, %v895
    %v897 = vand.u32 %v896, 4294901760
    %898 = vmatpush1.msra.mxu0 %v897
    %899 = vmatprep.subr.mxu0 0.0
    %v900 = vand.u32 %v56, 4294901760
    %v901 = vsub.f32 %v56, %v900
    %v902 = vand.u32 %v901, 4294901760
    %903 = vmatpush1.msra.mxu0 %v902
    %904 = vmatprep.subr.mxu0 0.0
    %v905 = vand.u32 %v57, 4294901760
    %v906 = vsub.f32 %v57, %v905
    %v907 = vand.u32 %v906, 4294901760
    %908 = vmatpush1.msra.mxu0 %v907
    %909 = vmatprep.subr.mxu0 0.0
    %v910 = vand.u32 %v58, 4294901760
    %v911 = vsub.f32 %v58, %v910
    %v912 = vand.u32 %v911, 4294901760
    %913 = vmatpush1.msra.mxu0 %v912
    %914 = vmatprep.subr.mxu0 0.0
    %v915 = vand.u32 %v59, 4294901760
    %v916 = vsub.f32 %v59, %v915
    %v917 = vand.u32 %v916, 4294901760
    %918 = vmatpush1.msra.mxu0 %v917
    %v919 = vand.u32 %v120, 4294901760
    %920 = vmatprep.mubr.f32.mxu0 %v919
    %v921 = vand.u32 %v119, 4294901760
    %922 = vmatmul.mubr.f32.gmra.mrb[0].mxu0 %v921
    %v923 = vpop.f32.mrb[0].mxu0
    %v924 = vadd.f32 %v745, %v923
    %v925 = vpop.f32.mrb[0].mxu0
    %v926 = vand.u32 %v124, 4294901760
    %927 = vmatprep.mubr.f32.mxu0 %v926
    %v928 = vand.u32 %v123, 4294901760
    %929 = vmatmul.mubr.f32.gmra.mrb[0].mxu0 %v928
    %v930 = vpop.f32.mrb[0].mxu0
    %v931 = vadd.f32 %v756, %v930
    %v932 = vpop.f32.mrb[0].mxu0
    %933 = vdwg.mxu0
    %934 = vmatprep.subr.mxu0 0.0
    %v935 = vand.u32 %v28, 4294901760
    %936 = vmatpush1.msra.mxu0 %v935
    %937 = vmatprep.subr.mxu0 0.0
    %v938 = vand.u32 %v29, 4294901760
    %939 = vmatpush1.msra.mxu0 %v938
    %940 = vmatprep.subr.mxu0 0.0
    %v941 = vand.u32 %v30, 4294901760
    %942 = vmatpush1.msra.mxu0 %v941
    %943 = vmatprep.subr.mxu0 0.0
    %v944 = vand.u32 %v31, 4294901760
    %945 = vmatpush1.msra.mxu0 %v944
    %946 = vmatprep.subr.mxu0 0.0
    %v947 = vand.u32 %v32, 4294901760
    %948 = vmatpush1.msra.mxu0 %v947
    %949 = vmatprep.subr.mxu0 0.0
    %v950 = vand.u32 %v33, 4294901760
    %951 = vmatpush1.msra.mxu0 %v950
    %952 = vmatprep.subr.mxu0 0.0
    %v953 = vand.u32 %v34, 4294901760
    %954 = vmatpush1.msra.mxu0 %v953
    %955 = vmatprep.subr.mxu0 0.0
    %v956 = vand.u32 %v35, 4294901760
    %957 = vmatpush1.msra.mxu0 %v956
    %958 = vmatprep.subr.mxu0 0.0
    %v959 = vand.u32 %v36, 4294901760
    %960 = vmatpush1.msra.mxu0 %v959
    %961 = vmatprep.subr.mxu0 0.0
    %v962 = vand.u32 %v37, 4294901760
    %963 = vmatpush1.msra.mxu0 %v962
    %964 = vmatprep.subr.mxu0 0.0
    %v965 = vand.u32 %v38, 4294901760
    %966 = vmatpush1.msra.mxu0 %v965
    %967 = vmatprep.subr.mxu0 0.0
    %v968 = vand.u32 %v39, 4294901760
    %969 = vmatpush1.msra.mxu0 %v968
    %970 = vmatprep.subr.mxu0 0.0
    %v971 = vand.u32 %v40, 4294901760
    %972 = vmatpush1.msra.mxu0 %v971
    %973 = vmatprep.subr.mxu0 0.0
    %v974 = vand.u32 %v41, 4294901760
    %975 = vmatpush1.msra.mxu0 %v974
    %976 = vmatprep.subr.mxu0 0.0
    %v977 = vand.u32 %v42, 4294901760
    %978 = vmatpush1.msra.mxu0 %v977
    %979 = vmatprep.subr.mxu0 0.0
    %v980 = vand.u32 %v43, 4294901760
    %981 = vmatpush1.msra.mxu0 %v980
    %982 = vmatprep.subr.mxu0 0.0
    %v983 = vand.u32 %v44, 4294901760
    %984 = vmatpush1.msra.mxu0 %v983
    %985 = vmatprep.subr.mxu0 0.0
    %v986 = vand.u32 %v45, 4294901760
    %987 = vmatpush1.msra.mxu0 %v986
    %988 = vmatprep.subr.mxu0 0.0
    %v989 = vand.u32 %v46, 4294901760
    %990 = vmatpush1.msra.mxu0 %v989
    %991 = vmatprep.subr.mxu0 0.0
    %v992 = vand.u32 %v47, 4294901760
    %993 = vmatpush1.msra.mxu0 %v992
    %994 = vmatprep.subr.mxu0 0.0
    %v995 = vand.u32 %v48, 4294901760
    %996 = vmatpush1.msra.mxu0 %v995
    %997 = vmatprep.subr.mxu0 0.0
    %v998 = vand.u32 %v49, 4294901760
    %999 = vmatpush1.msra.mxu0 %v998
    %1000 = vmatprep.subr.mxu0 0.0
    %v1001 = vand.u32 %v50, 4294901760
    %1002 = vmatpush1.msra.mxu0 %v1001
    %1003 = vmatprep.subr.mxu0 0.0
    %v1004 = vand.u32 %v51, 4294901760
    %1005 = vmatpush1.msra.mxu0 %v1004
    %1006 = vmatprep.subr.mxu0 0.0
    %v1007 = vand.u32 %v52, 4294901760
    %1008 = vmatpush1.msra.mxu0 %v1007
    %1009 = vmatprep.subr.mxu0 0.0
    %v1010 = vand.u32 %v53, 4294901760
    %1011 = vmatpush1.msra.mxu0 %v1010
    %1012 = vmatprep.subr.mxu0 0.0
    %v1013 = vand.u32 %v54, 4294901760
    %1014 = vmatpush1.msra.mxu0 %v1013
    %1015 = vmatprep.subr.mxu0 0.0
    %v1016 = vand.u32 %v55, 4294901760
    %1017 = vmatpush1.msra.mxu0 %v1016
    %1018 = vmatprep.subr.mxu0 0.0
    %v1019 = vand.u32 %v56, 4294901760
    %1020 = vmatpush1.msra.mxu0 %v1019
    %1021 = vmatprep.subr.mxu0 0.0
    %v1022 = vand.u32 %v57, 4294901760
    %1023 = vmatpush1.msra.mxu0 %v1022
    %1024 = vmatprep.subr.mxu0 0.0
    %v1025 = vand.u32 %v58, 4294901760
    %1026 = vmatpush1.msra.mxu0 %v1025
    %1027 = vmatprep.subr.mxu0 0.0
    %v1028 = vand.u32 %v59, 4294901760
    %1029 = vmatpush1.msra.mxu0 %v1028
    %v1030 = vand.u32 %v120, 4294901760
    %1031 = vmatprep.mubr.f32.mxu0 %v1030
    %v1032 = vand.u32 %v119, 4294901760
    %1033 = vmatmul.mubr.f32.gmra.mrb[0].mxu0 %v1032
    %v1034 = vpop.f32.mrb[0].mxu0
    %v1035 = vadd.f32 %v924, %v1034
    %v1036 = vpop.f32.mrb[0].mxu0
    %v1037 = vand.u32 %v124, 4294901760
    %1038 = vmatprep.mubr.f32.mxu0 %v1037
    %v1039 = vand.u32 %v123, 4294901760
    %1040 = vmatmul.mubr.f32.gmra.mrb[0].mxu0 %v1039
    %v1041 = vpop.f32.mrb[0].mxu0
    %v1042 = vadd.f32 %v931, %v1041
    %v1043 = vpop.f32.mrb[0].mxu0
    %1044 = vdwg.mxu0
    %1045 = vmatprep.subr.mxu0 0.0
    %v1046 = vand.u32 %v60, 4294901760
    %1047 = vmatpush1.msra.mxu0 %v1046
    %1048 = vmatprep.subr.mxu0 0.0
    %v1049 = vand.u32 %v61, 4294901760
    %1050 = vmatpush1.msra.mxu0 %v1049
    %1051 = vmatprep.subr.mxu0 0.0
    %v1052 = vand.u32 %v62, 4294901760
    %1053 = vmatpush1.msra.mxu0 %v1052
    %1054 = vmatprep.subr.mxu0 0.0
    %v1055 = vand.u32 %v63, 4294901760
    %1056 = vmatpush1.msra.mxu0 %v1055
    %1057 = vmatprep.subr.mxu0 0.0
    %v1058 = vand.u32 %v64, 4294901760
    %1059 = vmatpush1.msra.mxu0 %v1058
    %1060 = vmatprep.subr.mxu0 0.0
    %v1061 = vand.u32 %v65, 4294901760
    %1062 = vmatpush1.msra.mxu0 %v1061
    %1063 = vmatprep.subr.mxu0 0.0
    %v1064 = vand.u32 %v66, 4294901760
    %1065 = vmatpush1.msra.mxu0 %v1064
    %1066 = vmatprep.subr.mxu0 0.0
    %v1067 = vand.u32 %v67, 4294901760
    %1068 = vmatpush1.msra.mxu0 %v1067
    %1069 = vmatprep.subr.mxu0 0.0
    %v1070 = vand.u32 %v68, 4294901760
    %1071 = vmatpush1.msra.mxu0 %v1070
    %1072 = vmatprep.subr.mxu0 0.0
    %v1073 = vand.u32 %v69, 4294901760
    %1074 = vmatpush1.msra.mxu0 %v1073
    %1075 = vmatprep.subr.mxu0 0.0
    %v1076 = vand.u32 %v70, 4294901760
    %1077 = vmatpush1.msra.mxu0 %v1076
    %1078 = vmatprep.subr.mxu0 0.0
    %v1079 = vand.u32 %v71, 4294901760
    %1080 = vmatpush1.msra.mxu0 %v1079
    %1081 = vmatprep.subr.mxu0 0.0
    %v1082 = vand.u32 %v72, 4294901760
    %1083 = vmatpush1.msra.mxu0 %v1082
    %1084 = vmatprep.subr.mxu0 0.0
    %v1085 = vand.u32 %v73, 4294901760
    %1086 = vmatpush1.msra.mxu0 %v1085
    %1087 = vmatprep.subr.mxu0 0.0
    %v1088 = vand.u32 %v74, 4294901760
    %1089 = vmatpush1.msra.mxu0 %v1088
    %1090 = vmatprep.subr.mxu0 0.0
    %v1091 = vand.u32 %v75, 4294901760
    %1092 = vmatpush1.msra.mxu0 %v1091
    %1093 = vmatprep.subr.mxu0 0.0
    %v1094 = vand.u32 %v76, 4294901760
    %1095 = vmatpush1.msra.mxu0 %v1094
    %1096 = vmatprep.subr.mxu0 0.0
    %v1097 = vand.u32 %v77, 4294901760
    %1098 = vmatpush1.msra.mxu0 %v1097
    %1099 = vmatprep.subr.mxu0 0.0
    %v1100 = vand.u32 %v78, 4294901760
    %1101 = vmatpush1.msra.mxu0 %v1100
    %1102 = vmatprep.subr.mxu0 0.0
    %v1103 = vand.u32 %v79, 4294901760
    %1104 = vmatpush1.msra.mxu0 %v1103
    %1105 = vmatprep.subr.mxu0 0.0
    %v1106 = vand.u32 %v80, 4294901760
    %1107 = vmatpush1.msra.mxu0 %v1106
    %1108 = vmatprep.subr.mxu0 0.0
    %v1109 = vand.u32 %v81, 4294901760
    %1110 = vmatpush1.msra.mxu0 %v1109
    %1111 = vmatprep.subr.mxu0 0.0
    %v1112 = vand.u32 %v82, 4294901760
    %1113 = vmatpush1.msra.mxu0 %v1112
    %1114 = vmatprep.subr.mxu0 0.0
    %v1115 = vand.u32 %v83, 4294901760
    %1116 = vmatpush1.msra.mxu0 %v1115
    %1117 = vmatprep.subr.mxu0 0.0
    %v1118 = vand.u32 %v84, 4294901760
    %1119 = vmatpush1.msra.mxu0 %v1118
    %1120 = vmatprep.subr.mxu0 0.0
    %v1121 = vand.u32 %v85, 4294901760
    %1122 = vmatpush1.msra.mxu0 %v1121
    %1123 = vmatprep.subr.mxu0 0.0
    %v1124 = vand.u32 %v86, 4294901760
    %1125 = vmatpush1.msra.mxu0 %v1124
    %1126 = vmatprep.subr.mxu0 0.0
    %v1127 = vand.u32 %v87, 4294901760
    %1128 = vmatpush1.msra.mxu0 %v1127
    %1129 = vmatprep.subr.mxu0 0.0
    %v1130 = vand.u32 %v88, 4294901760
    %1131 = vmatpush1.msra.mxu0 %v1130
    %1132 = vmatprep.subr.mxu0 0.0
    %v1133 = vand.u32 %v89, 4294901760
    %1134 = vmatpush1.msra.mxu0 %v1133
    %1135 = vmatprep.subr.mxu0 0.0
    %v1136 = vand.u32 %v90, 4294901760
    %1137 = vmatpush1.msra.mxu0 %v1136
    %1138 = vmatprep.subr.mxu0 0.0
    %v1139 = vand.u32 %v91, 4294901760
    %1140 = vmatpush1.msra.mxu0 %v1139
    %v1141 = vand.u32 %v122, 4294901760
    %v1142 = vsub.f32 %v122, %v1141
    %v1143 = vand.u32 %v1142, 4294901760
    %v1144 = vsub.f32 %v1142, %v1143
    %v1145 = vand.u32 %v1144, 4294901760
    %1146 = vmatprep.mubr.f32.mxu0 %v1145
    %v1147 = vand.u32 %v121, 4294901760
    %v1148 = vsub.f32 %v121, %v1147
    %v1149 = vand.u32 %v1148, 4294901760
    %v1150 = vsub.f32 %v1148, %v1149
    %v1151 = vand.u32 %v1150, 4294901760
    %1152 = vmatmul.mubr.f32.gmra.mrb[0].mxu0 %v1151
    %v1153 = vpop.f32.mrb[0].mxu0
    %v1154 = vadd.f32 %v1035, %v1153
    %v1155 = vpop.f32.mrb[0].mxu0
    %v1156 = vand.u32 %v126, 4294901760
    %v1157 = vsub.f32 %v126, %v1156
    %v1158 = vand.u32 %v1157, 4294901760
    %v1159 = vsub.f32 %v1157, %v1158
    %v1160 = vand.u32 %v1159, 4294901760
    %1161 = vmatprep.mubr.f32.mxu0 %v1160
    %v1162 = vand.u32 %v125, 4294901760
    %v1163 = vsub.f32 %v125, %v1162
    %v1164 = vand.u32 %v1163, 4294901760
    %v1165 = vsub.f32 %v1163, %v1164
    %v1166 = vand.u32 %v1165, 4294901760
    %1167 = vmatmul.mubr.f32.gmra.mrb[0].mxu0 %v1166
    %v1168 = vpop.f32.mrb[0].mxu0
    %v1169 = vadd.f32 %v1042, %v1168
    %v1170 = vpop.f32.mrb[0].mxu0
    %1171 = vdwg.mxu0
    %1172 = vmatprep.subr.mxu0 0.0
    %v1173 = vand.u32 %v60, 4294901760
    %v1174 = vsub.f32 %v60, %v1173
    %v1175 = vand.u32 %v1174, 4294901760
    %v1176 = vsub.f32 %v1174, %v1175
    %v1177 = vand.u32 %v1176, 4294901760
    %1178 = vmatpush1.msra.mxu0 %v1177
    %1179 = vmatprep.subr.mxu0 0.0
    %v1180 = vand.u32 %v61, 4294901760
    %v1181 = vsub.f32 %v61, %v1180
    %v1182 = vand.u32 %v1181, 4294901760
    %v1183 = vsub.f32 %v1181, %v1182
    %v1184 = vand.u32 %v1183, 4294901760
    %1185 = vmatpush1.msra.mxu0 %v1184
    %1186 = vmatprep.subr.mxu0 0.0
    %v1187 = vand.u32 %v62, 4294901760
    %v1188 = vsub.f32 %v62, %v1187
    %v1189 = vand.u32 %v1188, 4294901760
    %v1190 = vsub.f32 %v1188, %v1189
    %v1191 = vand.u32 %v1190, 4294901760
    %1192 = vmatpush1.msra.mxu0 %v1191
    %1193 = vmatprep.subr.mxu0 0.0
    %v1194 = vand.u32 %v63, 4294901760
    %v1195 = vsub.f32 %v63, %v1194
    %v1196 = vand.u32 %v1195, 4294901760
    %v1197 = vsub.f32 %v1195, %v1196
    %v1198 = vand.u32 %v1197, 4294901760
    %1199 = vmatpush1.msra.mxu0 %v1198
    %1200 = vmatprep.subr.mxu0 0.0
    %v1201 = vand.u32 %v64, 4294901760
    %v1202 = vsub.f32 %v64, %v1201
    %v1203 = vand.u32 %v1202, 4294901760
    %v1204 = vsub.f32 %v1202, %v1203
    %v1205 = vand.u32 %v1204, 4294901760
    %1206 = vmatpush1.msra.mxu0 %v1205
    %1207 = vmatprep.subr.mxu0 0.0
    %v1208 = vand.u32 %v65, 4294901760
    %v1209 = vsub.f32 %v65, %v1208
    %v1210 = vand.u32 %v1209, 4294901760
    %v1211 = vsub.f32 %v1209, %v1210
    %v1212 = vand.u32 %v1211, 4294901760
    %1213 = vmatpush1.msra.mxu0 %v1212
    %1214 = vmatprep.subr.mxu0 0.0
    %v1215 = vand.u32 %v66, 4294901760
    %v1216 = vsub.f32 %v66, %v1215
    %v1217 = vand.u32 %v1216, 4294901760
    %v1218 = vsub.f32 %v1216, %v1217
    %v1219 = vand.u32 %v1218, 4294901760
    %1220 = vmatpush1.msra.mxu0 %v1219
    %1221 = vmatprep.subr.mxu0 0.0
    %v1222 = vand.u32 %v67, 4294901760
    %v1223 = vsub.f32 %v67, %v1222
    %v1224 = vand.u32 %v1223, 4294901760
    %v1225 = vsub.f32 %v1223, %v1224
    %v1226 = vand.u32 %v1225, 4294901760
    %1227 = vmatpush1.msra.mxu0 %v1226
    %1228 = vmatprep.subr.mxu0 0.0
    %v1229 = vand.u32 %v68, 4294901760
    %v1230 = vsub.f32 %v68, %v1229
    %v1231 = vand.u32 %v1230, 4294901760
    %v1232 = vsub.f32 %v1230, %v1231
    %v1233 = vand.u32 %v1232, 4294901760
    %1234 = vmatpush1.msra.mxu0 %v1233
    %1235 = vmatprep.subr.mxu0 0.0
    %v1236 = vand.u32 %v69, 4294901760
    %v1237 = vsub.f32 %v69, %v1236
    %v1238 = vand.u32 %v1237, 4294901760
    %v1239 = vsub.f32 %v1237, %v1238
    %v1240 = vand.u32 %v1239, 4294901760
    %1241 = vmatpush1.msra.mxu0 %v1240
    %1242 = vmatprep.subr.mxu0 0.0
    %v1243 = vand.u32 %v70, 4294901760
    %v1244 = vsub.f32 %v70, %v1243
    %v1245 = vand.u32 %v1244, 4294901760
    %v1246 = vsub.f32 %v1244, %v1245
    %v1247 = vand.u32 %v1246, 4294901760
    %1248 = vmatpush1.msra.mxu0 %v1247
    %1249 = vmatprep.subr.mxu0 0.0
    %v1250 = vand.u32 %v71, 4294901760
    %v1251 = vsub.f32 %v71, %v1250
    %v1252 = vand.u32 %v1251, 4294901760
    %v1253 = vsub.f32 %v1251, %v1252
    %v1254 = vand.u32 %v1253, 4294901760
    %1255 = vmatpush1.msra.mxu0 %v1254
    %1256 = vmatprep.subr.mxu0 0.0
    %v1257 = vand.u32 %v72, 4294901760
    %v1258 = vsub.f32 %v72, %v1257
    %v1259 = vand.u32 %v1258, 4294901760
    %v1260 = vsub.f32 %v1258, %v1259
    %v1261 = vand.u32 %v1260, 4294901760
    %1262 = vmatpush1.msra.mxu0 %v1261
    %1263 = vmatprep.subr.mxu0 0.0
    %v1264 = vand.u32 %v73, 4294901760
    %v1265 = vsub.f32 %v73, %v1264
    %v1266 = vand.u32 %v1265, 4294901760
    %v1267 = vsub.f32 %v1265, %v1266
    %v1268 = vand.u32 %v1267, 4294901760
    %1269 = vmatpush1.msra.mxu0 %v1268
    %1270 = vmatprep.subr.mxu0 0.0
    %v1271 = vand.u32 %v74, 4294901760
    %v1272 = vsub.f32 %v74, %v1271
    %v1273 = vand.u32 %v1272, 4294901760
    %v1274 = vsub.f32 %v1272, %v1273
    %v1275 = vand.u32 %v1274, 4294901760
    %1276 = vmatpush1.msra.mxu0 %v1275
    %1277 = vmatprep.subr.mxu0 0.0
    %v1278 = vand.u32 %v75, 4294901760
    %v1279 = vsub.f32 %v75, %v1278
    %v1280 = vand.u32 %v1279, 4294901760
    %v1281 = vsub.f32 %v1279, %v1280
    %v1282 = vand.u32 %v1281, 4294901760
    %1283 = vmatpush1.msra.mxu0 %v1282
    %1284 = vmatprep.subr.mxu0 0.0
    %v1285 = vand.u32 %v76, 4294901760
    %v1286 = vsub.f32 %v76, %v1285
    %v1287 = vand.u32 %v1286, 4294901760
    %v1288 = vsub.f32 %v1286, %v1287
    %v1289 = vand.u32 %v1288, 4294901760
    %1290 = vmatpush1.msra.mxu0 %v1289
    %1291 = vmatprep.subr.mxu0 0.0
    %v1292 = vand.u32 %v77, 4294901760
    %v1293 = vsub.f32 %v77, %v1292
    %v1294 = vand.u32 %v1293, 4294901760
    %v1295 = vsub.f32 %v1293, %v1294
    %v1296 = vand.u32 %v1295, 4294901760
    %1297 = vmatpush1.msra.mxu0 %v1296
    %1298 = vmatprep.subr.mxu0 0.0
    %v1299 = vand.u32 %v78, 4294901760
    %v1300 = vsub.f32 %v78, %v1299
    %v1301 = vand.u32 %v1300, 4294901760
    %v1302 = vsub.f32 %v1300, %v1301
    %v1303 = vand.u32 %v1302, 4294901760
    %1304 = vmatpush1.msra.mxu0 %v1303
    %1305 = vmatprep.subr.mxu0 0.0
    %v1306 = vand.u32 %v79, 4294901760
    %v1307 = vsub.f32 %v79, %v1306
    %v1308 = vand.u32 %v1307, 4294901760
    %v1309 = vsub.f32 %v1307, %v1308
    %v1310 = vand.u32 %v1309, 4294901760
    %1311 = vmatpush1.msra.mxu0 %v1310
    %1312 = vmatprep.subr.mxu0 0.0
    %v1313 = vand.u32 %v80, 4294901760
    %v1314 = vsub.f32 %v80, %v1313
    %v1315 = vand.u32 %v1314, 4294901760
    %v1316 = vsub.f32 %v1314, %v1315
    %v1317 = vand.u32 %v1316, 4294901760
    %1318 = vmatpush1.msra.mxu0 %v1317
    %1319 = vmatprep.subr.mxu0 0.0
    %v1320 = vand.u32 %v81, 4294901760
    %v1321 = vsub.f32 %v81, %v1320
    %v1322 = vand.u32 %v1321, 4294901760
    %v1323 = vsub.f32 %v1321, %v1322
    %v1324 = vand.u32 %v1323, 4294901760
    %1325 = vmatpush1.msra.mxu0 %v1324
    %1326 = vmatprep.subr.mxu0 0.0
    %v1327 = vand.u32 %v82, 4294901760
    %v1328 = vsub.f32 %v82, %v1327
    %v1329 = vand.u32 %v1328, 4294901760
    %v1330 = vsub.f32 %v1328, %v1329
    %v1331 = vand.u32 %v1330, 4294901760
    %1332 = vmatpush1.msra.mxu0 %v1331
    %1333 = vmatprep.subr.mxu0 0.0
    %v1334 = vand.u32 %v83, 4294901760
    %v1335 = vsub.f32 %v83, %v1334
    %v1336 = vand.u32 %v1335, 4294901760
    %v1337 = vsub.f32 %v1335, %v1336
    %v1338 = vand.u32 %v1337, 4294901760
    %1339 = vmatpush1.msra.mxu0 %v1338
    %1340 = vmatprep.subr.mxu0 0.0
    %v1341 = vand.u32 %v84, 4294901760
    %v1342 = vsub.f32 %v84, %v1341
    %v1343 = vand.u32 %v1342, 4294901760
    %v1344 = vsub.f32 %v1342, %v1343
    %v1345 = vand.u32 %v1344, 4294901760
    %1346 = vmatpush1.msra.mxu0 %v1345
    %1347 = vmatprep.subr.mxu0 0.0
    %v1348 = vand.u32 %v85, 4294901760
    %v1349 = vsub.f32 %v85, %v1348
    %v1350 = vand.u32 %v1349, 4294901760
    %v1351 = vsub.f32 %v1349, %v1350
    %v1352 = vand.u32 %v1351, 4294901760
    %1353 = vmatpush1.msra.mxu0 %v1352
    %1354 = vmatprep.subr.mxu0 0.0
    %v1355 = vand.u32 %v86, 4294901760
    %v1356 = vsub.f32 %v86, %v1355
    %v1357 = vand.u32 %v1356, 4294901760
    %v1358 = vsub.f32 %v1356, %v1357
    %v1359 = vand.u32 %v1358, 4294901760
    %1360 = vmatpush1.msra.mxu0 %v1359
    %1361 = vmatprep.subr.mxu0 0.0
    %v1362 = vand.u32 %v87, 4294901760
    %v1363 = vsub.f32 %v87, %v1362
    %v1364 = vand.u32 %v1363, 4294901760
    %v1365 = vsub.f32 %v1363, %v1364
    %v1366 = vand.u32 %v1365, 4294901760
    %1367 = vmatpush1.msra.mxu0 %v1366
    %1368 = vmatprep.subr.mxu0 0.0
    %v1369 = vand.u32 %v88, 4294901760
    %v1370 = vsub.f32 %v88, %v1369
    %v1371 = vand.u32 %v1370, 4294901760
    %v1372 = vsub.f32 %v1370, %v1371
    %v1373 = vand.u32 %v1372, 4294901760
    %1374 = vmatpush1.msra.mxu0 %v1373
    %1375 = vmatprep.subr.mxu0 0.0
    %v1376 = vand.u32 %v89, 4294901760
    %v1377 = vsub.f32 %v89, %v1376
    %v1378 = vand.u32 %v1377, 4294901760
    %v1379 = vsub.f32 %v1377, %v1378
    %v1380 = vand.u32 %v1379, 4294901760
    %1381 = vmatpush1.msra.mxu0 %v1380
    %1382 = vmatprep.subr.mxu0 0.0
    %v1383 = vand.u32 %v90, 4294901760
    %v1384 = vsub.f32 %v90, %v1383
    %v1385 = vand.u32 %v1384, 4294901760
    %v1386 = vsub.f32 %v1384, %v1385
    %v1387 = vand.u32 %v1386, 4294901760
    %1388 = vmatpush1.msra.mxu0 %v1387
    %1389 = vmatprep.subr.mxu0 0.0
    %v1390 = vand.u32 %v91, 4294901760
    %v1391 = vsub.f32 %v91, %v1390
    %v1392 = vand.u32 %v1391, 4294901760
    %v1393 = vsub.f32 %v1391, %v1392
    %v1394 = vand.u32 %v1393, 4294901760
    %1395 = vmatpush1.msra.mxu0 %v1394
    %v1396 = vand.u32 %v122, 4294901760
    %1397 = vmatprep.mubr.f32.mxu0 %v1396
    %v1398 = vand.u32 %v121, 4294901760
    %1399 = vmatmul.mubr.f32.gmra.mrb[0].mxu0 %v1398
    %v1400 = vpop.f32.mrb[0].mxu0
    %v1401 = vadd.f32 %v1154, %v1400
    %v1402 = vpop.f32.mrb[0].mxu0
    %v1403 = vand.u32 %v126, 4294901760
    %1404 = vmatprep.mubr.f32.mxu0 %v1403
    %v1405 = vand.u32 %v125, 4294901760
    %1406 = vmatmul.mubr.f32.gmra.mrb[0].mxu0 %v1405
    %v1407 = vpop.f32.mrb[0].mxu0
    %v1408 = vadd.f32 %v1169, %v1407
    %v1409 = vpop.f32.mrb[0].mxu0
    %1410 = vdwg.mxu0
    %1411 = vmatprep.subr.mxu0 0.0
    %v1412 = vand.u32 %v60, 4294901760
    %v1413 = vsub.f32 %v60, %v1412
    %1414 = vmatpush1.msra.mxu0 %v1413
    %1415 = vmatprep.subr.mxu0 0.0
    %v1416 = vand.u32 %v61, 4294901760
    %v1417 = vsub.f32 %v61, %v1416
    %1418 = vmatpush1.msra.mxu0 %v1417
    %1419 = vmatprep.subr.mxu0 0.0
    %v1420 = vand.u32 %v62, 4294901760
    %v1421 = vsub.f32 %v62, %v1420
    %1422 = vmatpush1.msra.mxu0 %v1421
    %1423 = vmatprep.subr.mxu0 0.0
    %v1424 = vand.u32 %v63, 4294901760
    %v1425 = vsub.f32 %v63, %v1424
    %1426 = vmatpush1.msra.mxu0 %v1425
    %1427 = vmatprep.subr.mxu0 0.0
    %v1428 = vand.u32 %v64, 4294901760
    %v1429 = vsub.f32 %v64, %v1428
    %1430 = vmatpush1.msra.mxu0 %v1429
    %1431 = vmatprep.subr.mxu0 0.0
    %v1432 = vand.u32 %v65, 4294901760
    %v1433 = vsub.f32 %v65, %v1432
    %1434 = vmatpush1.msra.mxu0 %v1433
    %1435 = vmatprep.subr.mxu0 0.0
    %v1436 = vand.u32 %v66, 4294901760
    %v1437 = vsub.f32 %v66, %v1436
    %1438 = vmatpush1.msra.mxu0 %v1437
    %1439 = vmatprep.subr.mxu0 0.0
    %v1440 = vand.u32 %v67, 4294901760
    %v1441 = vsub.f32 %v67, %v1440
    %1442 = vmatpush1.msra.mxu0 %v1441
    %1443 = vmatprep.subr.mxu0 0.0
    %v1444 = vand.u32 %v68, 4294901760
    %v1445 = vsub.f32 %v68, %v1444
    %1446 = vmatpush1.msra.mxu0 %v1445
    %1447 = vmatprep.subr.mxu0 0.0
    %v1448 = vand.u32 %v69, 4294901760
    %v1449 = vsub.f32 %v69, %v1448
    %1450 = vmatpush1.msra.mxu0 %v1449
    %1451 = vmatprep.subr.mxu0 0.0
    %v1452 = vand.u32 %v70, 4294901760
    %v1453 = vsub.f32 %v70, %v1452
    %1454 = vmatpush1.msra.mxu0 %v1453
    %1455 = vmatprep.subr.mxu0 0.0
    %v1456 = vand.u32 %v71, 4294901760
    %v1457 = vsub.f32 %v71, %v1456
    %1458 = vmatpush1.msra.mxu0 %v1457
    %1459 = vmatprep.subr.mxu0 0.0
    %v1460 = vand.u32 %v72, 4294901760
    %v1461 = vsub.f32 %v72, %v1460
    %1462 = vmatpush1.msra.mxu0 %v1461
    %1463 = vmatprep.subr.mxu0 0.0
    %v1464 = vand.u32 %v73, 4294901760
    %v1465 = vsub.f32 %v73, %v1464
    %1466 = vmatpush1.msra.mxu0 %v1465
    %1467 = vmatprep.subr.mxu0 0.0
    %v1468 = vand.u32 %v74, 4294901760
    %v1469 = vsub.f32 %v74, %v1468
    %1470 = vmatpush1.msra.mxu0 %v1469
    %1471 = vmatprep.subr.mxu0 0.0
    %v1472 = vand.u32 %v75, 4294901760
    %v1473 = vsub.f32 %v75, %v1472
    %1474 = vmatpush1.msra.mxu0 %v1473
    %1475 = vmatprep.subr.mxu0 0.0
    %v1476 = vand.u32 %v76, 4294901760
    %v1477 = vsub.f32 %v76, %v1476
    %1478 = vmatpush1.msra.mxu0 %v1477
    %1479 = vmatprep.subr.mxu0 0.0
    %v1480 = vand.u32 %v77, 4294901760
    %v1481 = vsub.f32 %v77, %v1480
    %1482 = vmatpush1.msra.mxu0 %v1481
    %1483 = vmatprep.subr.mxu0 0.0
    %v1484 = vand.u32 %v78, 4294901760
    %v1485 = vsub.f32 %v78, %v1484
    %1486 = vmatpush1.msra.mxu0 %v1485
    %1487 = vmatprep.subr.mxu0 0.0
    %v1488 = vand.u32 %v79, 4294901760
    %v1489 = vsub.f32 %v79, %v1488
    %1490 = vmatpush1.msra.mxu0 %v1489
    %1491 = vmatprep.subr.mxu0 0.0
    %v1492 = vand.u32 %v80, 4294901760
    %v1493 = vsub.f32 %v80, %v1492
    %1494 = vmatpush1.msra.mxu0 %v1493
    %1495 = vmatprep.subr.mxu0 0.0
    %v1496 = vand.u32 %v81, 4294901760
    %v1497 = vsub.f32 %v81, %v1496
    %1498 = vmatpush1.msra.mxu0 %v1497
    %1499 = vmatprep.subr.mxu0 0.0
    %v1500 = vand.u32 %v82, 4294901760
    %v1501 = vsub.f32 %v82, %v1500
    %1502 = vmatpush1.msra.mxu0 %v1501
    %1503 = vmatprep.subr.mxu0 0.0
    %v1504 = vand.u32 %v83, 4294901760
    %v1505 = vsub.f32 %v83, %v1504
    %1506 = vmatpush1.msra.mxu0 %v1505
    %1507 = vmatprep.subr.mxu0 0.0
    %v1508 = vand.u32 %v84, 4294901760
    %v1509 = vsub.f32 %v84, %v1508
    %1510 = vmatpush1.msra.mxu0 %v1509
    %1511 = vmatprep.subr.mxu0 0.0
    %v1512 = vand.u32 %v85, 4294901760
    %v1513 = vsub.f32 %v85, %v1512
    %1514 = vmatpush1.msra.mxu0 %v1513
    %1515 = vmatprep.subr.mxu0 0.0
    %v1516 = vand.u32 %v86, 4294901760
    %v1517 = vsub.f32 %v86, %v1516
    %1518 = vmatpush1.msra.mxu0 %v1517
    %1519 = vmatprep.subr.mxu0 0.0
    %v1520 = vand.u32 %v87, 4294901760
    %v1521 = vsub.f32 %v87, %v1520
    %1522 = vmatpush1.msra.mxu0 %v1521
    %1523 = vmatprep.subr.mxu0 0.0
    %v1524 = vand.u32 %v88, 4294901760
    %v1525 = vsub.f32 %v88, %v1524
    %1526 = vmatpush1.msra.mxu0 %v1525
    %1527 = vmatprep.subr.mxu0 0.0
    %v1528 = vand.u32 %v89, 4294901760
    %v1529 = vsub.f32 %v89, %v1528
    %1530 = vmatpush1.msra.mxu0 %v1529
    %1531 = vmatprep.subr.mxu0 0.0
    %v1532 = vand.u32 %v90, 4294901760
    %v1533 = vsub.f32 %v90, %v1532
    %1534 = vmatpush1.msra.mxu0 %v1533
    %1535 = vmatprep.subr.mxu0 0.0
    %v1536 = vand.u32 %v91, 4294901760
    %v1537 = vsub.f32 %v91, %v1536
    %1538 = vmatpush1.msra.mxu0 %v1537
    %v1539 = vand.u32 %v122, 4294901760
    %v1540 = vsub.f32 %v122, %v1539
    %1541 = vmatprep.mubr.f32.mxu0 %v1540
    %v1542 = vand.u32 %v121, 4294901760
    %v1543 = vsub.f32 %v121, %v1542
    %1544 = vmatmul.mubr.f32.gmra.mrb[0].mxu0 %v1543
    %v1545 = vpop.f32.mrb[0].mxu0
    %v1546 = vadd.f32 %v1401, %v1545
    %v1547 = vpop.f32.mrb[0].mxu0
    %v1548 = vand.u32 %v126, 4294901760
    %v1549 = vsub.f32 %v126, %v1548
    %1550 = vmatprep.mubr.f32.mxu0 %v1549
    %v1551 = vand.u32 %v125, 4294901760
    %v1552 = vsub.f32 %v125, %v1551
    %1553 = vmatmul.mubr.f32.gmra.mrb[0].mxu0 %v1552
    %v1554 = vpop.f32.mrb[0].mxu0
    %v1555 = vadd.f32 %v1408, %v1554
    %v1556 = vpop.f32.mrb[0].mxu0
    %1557 = vdwg.mxu0
    %1558 = vmatprep.subr.mxu0 0.0
    %v1559 = vand.u32 %v60, 4294901760
    %1560 = vmatpush1.msra.mxu0 %v1559
    %1561 = vmatprep.subr.mxu0 0.0
    %v1562 = vand.u32 %v61, 4294901760
    %1563 = vmatpush1.msra.mxu0 %v1562
    %1564 = vmatprep.subr.mxu0 0.0
    %v1565 = vand.u32 %v62, 4294901760
    %1566 = vmatpush1.msra.mxu0 %v1565
    %1567 = vmatprep.subr.mxu0 0.0
    %v1568 = vand.u32 %v63, 4294901760
    %1569 = vmatpush1.msra.mxu0 %v1568
    %1570 = vmatprep.subr.mxu0 0.0
    %v1571 = vand.u32 %v64, 4294901760
    %1572 = vmatpush1.msra.mxu0 %v1571
    %1573 = vmatprep.subr.mxu0 0.0
    %v1574 = vand.u32 %v65, 4294901760
    %1575 = vmatpush1.msra.mxu0 %v1574
    %1576 = vmatprep.subr.mxu0 0.0
    %v1577 = vand.u32 %v66, 4294901760
    %1578 = vmatpush1.msra.mxu0 %v1577
    %1579 = vmatprep.subr.mxu0 0.0
    %v1580 = vand.u32 %v67, 4294901760
    %1581 = vmatpush1.msra.mxu0 %v1580
    %1582 = vmatprep.subr.mxu0 0.0
    %v1583 = vand.u32 %v68, 4294901760
    %1584 = vmatpush1.msra.mxu0 %v1583
    %1585 = vmatprep.subr.mxu0 0.0
    %v1586 = vand.u32 %v69, 4294901760
    %1587 = vmatpush1.msra.mxu0 %v1586
    %1588 = vmatprep.subr.mxu0 0.0
    %v1589 = vand.u32 %v70, 4294901760
    %1590 = vmatpush1.msra.mxu0 %v1589
    %1591 = vmatprep.subr.mxu0 0.0
    %v1592 = vand.u32 %v71, 4294901760
    %1593 = vmatpush1.msra.mxu0 %v1592
    %1594 = vmatprep.subr.mxu0 0.0
    %v1595 = vand.u32 %v72, 4294901760
    %1596 = vmatpush1.msra.mxu0 %v1595
    %1597 = vmatprep.subr.mxu0 0.0
    %v1598 = vand.u32 %v73, 4294901760
    %1599 = vmatpush1.msra.mxu0 %v1598
    %1600 = vmatprep.subr.mxu0 0.0
    %v1601 = vand.u32 %v74, 4294901760
    %1602 = vmatpush1.msra.mxu0 %v1601
    %1603 = vmatprep.subr.mxu0 0.0
    %v1604 = vand.u32 %v75, 4294901760
    %1605 = vmatpush1.msra.mxu0 %v1604
    %1606 = vmatprep.subr.mxu0 0.0
    %v1607 = vand.u32 %v76, 4294901760
    %1608 = vmatpush1.msra.mxu0 %v1607
    %1609 = vmatprep.subr.mxu0 0.0
    %v1610 = vand.u32 %v77, 4294901760
    %1611 = vmatpush1.msra.mxu0 %v1610
    %1612 = vmatprep.subr.mxu0 0.0
    %v1613 = vand.u32 %v78, 4294901760
    %1614 = vmatpush1.msra.mxu0 %v1613
    %1615 = vmatprep.subr.mxu0 0.0
    %v1616 = vand.u32 %v79, 4294901760
    %1617 = vmatpush1.msra.mxu0 %v1616
    %1618 = vmatprep.subr.mxu0 0.0
    %v1619 = vand.u32 %v80, 4294901760
    %1620 = vmatpush1.msra.mxu0 %v1619
    %1621 = vmatprep.subr.mxu0 0.0
    %v1622 = vand.u32 %v81, 4294901760
    %1623 = vmatpush1.msra.mxu0 %v1622
    %1624 = vmatprep.subr.mxu0 0.0
    %v1625 = vand.u32 %v82, 4294901760
    %1626 = vmatpush1.msra.mxu0 %v1625
    %1627 = vmatprep.subr.mxu0 0.0
    %v1628 = vand.u32 %v83, 4294901760
    %1629 = vmatpush1.msra.mxu0 %v1628
    %1630 = vmatprep.subr.mxu0 0.0
    %v1631 = vand.u32 %v84, 4294901760
    %1632 = vmatpush1.msra.mxu0 %v1631
    %1633 = vmatprep.subr.mxu0 0.0
    %v1634 = vand.u32 %v85, 4294901760
    %1635 = vmatpush1.msra.mxu0 %v1634
    %1636 = vmatprep.subr.mxu0 0.0
    %v1637 = vand.u32 %v86, 4294901760
    %1638 = vmatpush1.msra.mxu0 %v1637
    %1639 = vmatprep.subr.mxu0 0.0
    %v1640 = vand.u32 %v87, 4294901760
    %1641 = vmatpush1.msra.mxu0 %v1640
    %1642 = vmatprep.subr.mxu0 0.0
    %v1643 = vand.u32 %v88, 4294901760
    %1644 = vmatpush1.msra.mxu0 %v1643
    %1645 = vmatprep.subr.mxu0 0.0
    %v1646 = vand.u32 %v89, 4294901760
    %1647 = vmatpush1.msra.mxu0 %v1646
    %1648 = vmatprep.subr.mxu0 0.0
    %v1649 = vand.u32 %v90, 4294901760
    %1650 = vmatpush1.msra.mxu0 %v1649
    %1651 = vmatprep.subr.mxu0 0.0
    %v1652 = vand.u32 %v91, 4294901760
    %1653 = vmatpush1.msra.mxu0 %v1652
    %v1654 = vand.u32 %v122, 4294901760
    %v1655 = vsub.f32 %v122, %v1654
    %v1656 = vand.u32 %v1655, 4294901760
    %1657 = vmatprep.mubr.f32.mxu0 %v1656
    %v1658 = vand.u32 %v121, 4294901760
    %v1659 = vsub.f32 %v121, %v1658
    %v1660 = vand.u32 %v1659, 4294901760
    %1661 = vmatmul.mubr.f32.gmra.mrb[0].mxu0 %v1660
    %v1662 = vpop.f32.mrb[0].mxu0
    %v1663 = vadd.f32 %v1546, %v1662
    %v1664 = vpop.f32.mrb[0].mxu0
    %v1665 = vand.u32 %v126, 4294901760
    %v1666 = vsub.f32 %v126, %v1665
    %v1667 = vand.u32 %v1666, 4294901760
    %1668 = vmatprep.mubr.f32.mxu0 %v1667
    %v1669 = vand.u32 %v125, 4294901760
    %v1670 = vsub.f32 %v125, %v1669
    %v1671 = vand.u32 %v1670, 4294901760
    %1672 = vmatmul.mubr.f32.gmra.mrb[0].mxu0 %v1671
    %v1673 = vpop.f32.mrb[0].mxu0
    %v1674 = vadd.f32 %v1555, %v1673
    %v1675 = vpop.f32.mrb[0].mxu0
    %1676 = vdwg.mxu0
    %1677 = vmatprep.subr.mxu0 0.0
    %v1678 = vand.u32 %v60, 4294901760
    %v1679 = vsub.f32 %v60, %v1678
    %v1680 = vand.u32 %v1679, 4294901760
    %1681 = vmatpush1.msra.mxu0 %v1680
    %1682 = vmatprep.subr.mxu0 0.0
    %v1683 = vand.u32 %v61, 4294901760
    %v1684 = vsub.f32 %v61, %v1683
    %v1685 = vand.u32 %v1684, 4294901760
    %1686 = vmatpush1.msra.mxu0 %v1685
    %1687 = vmatprep.subr.mxu0 0.0
    %v1688 = vand.u32 %v62, 4294901760
    %v1689 = vsub.f32 %v62, %v1688
    %v1690 = vand.u32 %v1689, 4294901760
    %1691 = vmatpush1.msra.mxu0 %v1690
    %1692 = vmatprep.subr.mxu0 0.0
    %v1693 = vand.u32 %v63, 4294901760
    %v1694 = vsub.f32 %v63, %v1693
    %v1695 = vand.u32 %v1694, 4294901760
    %1696 = vmatpush1.msra.mxu0 %v1695
    %1697 = vmatprep.subr.mxu0 0.0
    %v1698 = vand.u32 %v64, 4294901760
    %v1699 = vsub.f32 %v64, %v1698
    %v1700 = vand.u32 %v1699, 4294901760
    %1701 = vmatpush1.msra.mxu0 %v1700
    %1702 = vmatprep.subr.mxu0 0.0
    %v1703 = vand.u32 %v65, 4294901760
    %v1704 = vsub.f32 %v65, %v1703
    %v1705 = vand.u32 %v1704, 4294901760
    %1706 = vmatpush1.msra.mxu0 %v1705
    %1707 = vmatprep.subr.mxu0 0.0
    %v1708 = vand.u32 %v66, 4294901760
    %v1709 = vsub.f32 %v66, %v1708
    %v1710 = vand.u32 %v1709, 4294901760
    %1711 = vmatpush1.msra.mxu0 %v1710
    %1712 = vmatprep.subr.mxu0 0.0
    %v1713 = vand.u32 %v67, 4294901760
    %v1714 = vsub.f32 %v67, %v1713
    %v1715 = vand.u32 %v1714, 4294901760
    %1716 = vmatpush1.msra.mxu0 %v1715
    %1717 = vmatprep.subr.mxu0 0.0
    %v1718 = vand.u32 %v68, 4294901760
    %v1719 = vsub.f32 %v68, %v1718
    %v1720 = vand.u32 %v1719, 4294901760
    %1721 = vmatpush1.msra.mxu0 %v1720
    %1722 = vmatprep.subr.mxu0 0.0
    %v1723 = vand.u32 %v69, 4294901760
    %v1724 = vsub.f32 %v69, %v1723
    %v1725 = vand.u32 %v1724, 4294901760
    %1726 = vmatpush1.msra.mxu0 %v1725
    %1727 = vmatprep.subr.mxu0 0.0
    %v1728 = vand.u32 %v70, 4294901760
    %v1729 = vsub.f32 %v70, %v1728
    %v1730 = vand.u32 %v1729, 4294901760
    %1731 = vmatpush1.msra.mxu0 %v1730
    %1732 = vmatprep.subr.mxu0 0.0
    %v1733 = vand.u32 %v71, 4294901760
    %v1734 = vsub.f32 %v71, %v1733
    %v1735 = vand.u32 %v1734, 4294901760
    %1736 = vmatpush1.msra.mxu0 %v1735
    %1737 = vmatprep.subr.mxu0 0.0
    %v1738 = vand.u32 %v72, 4294901760
    %v1739 = vsub.f32 %v72, %v1738
    %v1740 = vand.u32 %v1739, 4294901760
    %1741 = vmatpush1.msra.mxu0 %v1740
    %1742 = vmatprep.subr.mxu0 0.0
    %v1743 = vand.u32 %v73, 4294901760
    %v1744 = vsub.f32 %v73, %v1743
    %v1745 = vand.u32 %v1744, 4294901760
    %1746 = vmatpush1.msra.mxu0 %v1745
    %1747 = vmatprep.subr.mxu0 0.0
    %v1748 = vand.u32 %v74, 4294901760
    %v1749 = vsub.f32 %v74, %v1748
    %v1750 = vand.u32 %v1749, 4294901760
    %1751 = vmatpush1.msra.mxu0 %v1750
    %1752 = vmatprep.subr.mxu0 0.0
    %v1753 = vand.u32 %v75, 4294901760
    %v1754 = vsub.f32 %v75, %v1753
    %v1755 = vand.u32 %v1754, 4294901760
    %1756 = vmatpush1.msra.mxu0 %v1755
    %1757 = vmatprep.subr.mxu0 0.0
    %v1758 = vand.u32 %v76, 4294901760
    %v1759 = vsub.f32 %v76, %v1758
    %v1760 = vand.u32 %v1759, 4294901760
    %1761 = vmatpush1.msra.mxu0 %v1760
    %1762 = vmatprep.subr.mxu0 0.0
    %v1763 = vand.u32 %v77, 4294901760
    %v1764 = vsub.f32 %v77, %v1763
    %v1765 = vand.u32 %v1764, 4294901760
    %1766 = vmatpush1.msra.mxu0 %v1765
    %1767 = vmatprep.subr.mxu0 0.0
    %v1768 = vand.u32 %v78, 4294901760
    %v1769 = vsub.f32 %v78, %v1768
    %v1770 = vand.u32 %v1769, 4294901760
    %1771 = vmatpush1.msra.mxu0 %v1770
    %1772 = vmatprep.subr.mxu0 0.0
    %v1773 = vand.u32 %v79, 4294901760
    %v1774 = vsub.f32 %v79, %v1773
    %v1775 = vand.u32 %v1774, 4294901760
    %1776 = vmatpush1.msra.mxu0 %v1775
    %1777 = vmatprep.subr.mxu0 0.0
    %v1778 = vand.u32 %v80, 4294901760
    %v1779 = vsub.f32 %v80, %v1778
    %v1780 = vand.u32 %v1779, 4294901760
    %1781 = vmatpush1.msra.mxu0 %v1780
    %1782 = vmatprep.subr.mxu0 0.0
    %v1783 = vand.u32 %v81, 4294901760
    %v1784 = vsub.f32 %v81, %v1783
    %v1785 = vand.u32 %v1784, 4294901760
    %1786 = vmatpush1.msra.mxu0 %v1785
    %1787 = vmatprep.subr.mxu0 0.0
    %v1788 = vand.u32 %v82, 4294901760
    %v1789 = vsub.f32 %v82, %v1788
    %v1790 = vand.u32 %v1789, 4294901760
    %1791 = vmatpush1.msra.mxu0 %v1790
    %1792 = vmatprep.subr.mxu0 0.0
    %v1793 = vand.u32 %v83, 4294901760
    %v1794 = vsub.f32 %v83, %v1793
    %v1795 = vand.u32 %v1794, 4294901760
    %1796 = vmatpush1.msra.mxu0 %v1795
    %1797 = vmatprep.subr.mxu0 0.0
    %v1798 = vand.u32 %v84, 4294901760
    %v1799 = vsub.f32 %v84, %v1798
    %v1800 = vand.u32 %v1799, 4294901760
    %1801 = vmatpush1.msra.mxu0 %v1800
    %1802 = vmatprep.subr.mxu0 0.0
    %v1803 = vand.u32 %v85, 4294901760
    %v1804 = vsub.f32 %v85, %v1803
    %v1805 = vand.u32 %v1804, 4294901760
    %1806 = vmatpush1.msra.mxu0 %v1805
    %1807 = vmatprep.subr.mxu0 0.0
    %v1808 = vand.u32 %v86, 4294901760
    %v1809 = vsub.f32 %v86, %v1808
    %v1810 = vand.u32 %v1809, 4294901760
    %1811 = vmatpush1.msra.mxu0 %v1810
    %1812 = vmatprep.subr.mxu0 0.0
    %v1813 = vand.u32 %v87, 4294901760
    %v1814 = vsub.f32 %v87, %v1813
    %v1815 = vand.u32 %v1814, 4294901760
    %1816 = vmatpush1.msra.mxu0 %v1815
    %1817 = vmatprep.subr.mxu0 0.0
    %v1818 = vand.u32 %v88, 4294901760
    %v1819 = vsub.f32 %v88, %v1818
    %v1820 = vand.u32 %v1819, 4294901760
    %1821 = vmatpush1.msra.mxu0 %v1820
    %1822 = vmatprep.subr.mxu0 0.0
    %v1823 = vand.u32 %v89, 4294901760
    %v1824 = vsub.f32 %v89, %v1823
    %v1825 = vand.u32 %v1824, 4294901760
    %1826 = vmatpush1.msra.mxu0 %v1825
    %1827 = vmatprep.subr.mxu0 0.0
    %v1828 = vand.u32 %v90, 4294901760
    %v1829 = vsub.f32 %v90, %v1828
    %v1830 = vand.u32 %v1829, 4294901760
    %1831 = vmatpush1.msra.mxu0 %v1830
    %1832 = vmatprep.subr.mxu0 0.0
    %v1833 = vand.u32 %v91, 4294901760
    %v1834 = vsub.f32 %v91, %v1833
    %v1835 = vand.u32 %v1834, 4294901760
    %1836 = vmatpush1.msra.mxu0 %v1835
    %v1837 = vand.u32 %v122, 4294901760
    %1838 = vmatprep.mubr.f32.mxu0 %v1837
    %v1839 = vand.u32 %v121, 4294901760
    %1840 = vmatmul.mubr.f32.gmra.mrb[0].mxu0 %v1839
    %v1841 = vpop.f32.mrb[0].mxu0
    %v1842 = vadd.f32 %v1663, %v1841
    %v1843 = vpop.f32.mrb[0].mxu0
    %v1844 = vand.u32 %v126, 4294901760
    %1845 = vmatprep.mubr.f32.mxu0 %v1844
    %v1846 = vand.u32 %v125, 4294901760
    %1847 = vmatmul.mubr.f32.gmra.mrb[0].mxu0 %v1846
    %v1848 = vpop.f32.mrb[0].mxu0
    %v1849 = vadd.f32 %v1674, %v1848
    %v1850 = vpop.f32.mrb[0].mxu0
    %1851 = vdwg.mxu0
    %1852 = vmatprep.subr.mxu0 0.0
    %v1853 = vand.u32 %v60, 4294901760
    %1854 = vmatpush1.msra.mxu0 %v1853
    %1855 = vmatprep.subr.mxu0 0.0
    %v1856 = vand.u32 %v61, 4294901760
    %1857 = vmatpush1.msra.mxu0 %v1856
    %1858 = vmatprep.subr.mxu0 0.0
    %v1859 = vand.u32 %v62, 4294901760
    %1860 = vmatpush1.msra.mxu0 %v1859
    %1861 = vmatprep.subr.mxu0 0.0
    %v1862 = vand.u32 %v63, 4294901760
    %1863 = vmatpush1.msra.mxu0 %v1862
    %1864 = vmatprep.subr.mxu0 0.0
    %v1865 = vand.u32 %v64, 4294901760
    %1866 = vmatpush1.msra.mxu0 %v1865
    %1867 = vmatprep.subr.mxu0 0.0
    %v1868 = vand.u32 %v65, 4294901760
    %1869 = vmatpush1.msra.mxu0 %v1868
    %1870 = vmatprep.subr.mxu0 0.0
    %v1871 = vand.u32 %v66, 4294901760
    %1872 = vmatpush1.msra.mxu0 %v1871
    %1873 = vmatprep.subr.mxu0 0.0
    %v1874 = vand.u32 %v67, 4294901760
    %1875 = vmatpush1.msra.mxu0 %v1874
    %1876 = vmatprep.subr.mxu0 0.0
    %v1877 = vand.u32 %v68, 4294901760
    %1878 = vmatpush1.msra.mxu0 %v1877
    %1879 = vmatprep.subr.mxu0 0.0
    %v1880 = vand.u32 %v69, 4294901760
    %1881 = vmatpush1.msra.mxu0 %v1880
    %1882 = vmatprep.subr.mxu0 0.0
    %v1883 = vand.u32 %v70, 4294901760
    %1884 = vmatpush1.msra.mxu0 %v1883
    %1885 = vmatprep.subr.mxu0 0.0
    %v1886 = vand.u32 %v71, 4294901760
    %1887 = vmatpush1.msra.mxu0 %v1886
    %1888 = vmatprep.subr.mxu0 0.0
    %v1889 = vand.u32 %v72, 4294901760
    %1890 = vmatpush1.msra.mxu0 %v1889
    %1891 = vmatprep.subr.mxu0 0.0
    %v1892 = vand.u32 %v73, 4294901760
    %1893 = vmatpush1.msra.mxu0 %v1892
    %1894 = vmatprep.subr.mxu0 0.0
    %v1895 = vand.u32 %v74, 4294901760
    %1896 = vmatpush1.msra.mxu0 %v1895
    %1897 = vmatprep.subr.mxu0 0.0
    %v1898 = vand.u32 %v75, 4294901760
    %1899 = vmatpush1.msra.mxu0 %v1898
    %1900 = vmatprep.subr.mxu0 0.0
    %v1901 = vand.u32 %v76, 4294901760
    %1902 = vmatpush1.msra.mxu0 %v1901
    %1903 = vmatprep.subr.mxu0 0.0
    %v1904 = vand.u32 %v77, 4294901760
    %1905 = vmatpush1.msra.mxu0 %v1904
    %1906 = vmatprep.subr.mxu0 0.0
    %v1907 = vand.u32 %v78, 4294901760
    %1908 = vmatpush1.msra.mxu0 %v1907
    %1909 = vmatprep.subr.mxu0 0.0
    %v1910 = vand.u32 %v79, 4294901760
    %1911 = vmatpush1.msra.mxu0 %v1910
    %1912 = vmatprep.subr.mxu0 0.0
    %v1913 = vand.u32 %v80, 4294901760
    %1914 = vmatpush1.msra.mxu0 %v1913
    %1915 = vmatprep.subr.mxu0 0.0
    %v1916 = vand.u32 %v81, 4294901760
    %1917 = vmatpush1.msra.mxu0 %v1916
    %1918 = vmatprep.subr.mxu0 0.0
    %v1919 = vand.u32 %v82, 4294901760
    %1920 = vmatpush1.msra.mxu0 %v1919
    %1921 = vmatprep.subr.mxu0 0.0
    %v1922 = vand.u32 %v83, 4294901760
    %1923 = vmatpush1.msra.mxu0 %v1922
    %1924 = vmatprep.subr.mxu0 0.0
    %v1925 = vand.u32 %v84, 4294901760
    %1926 = vmatpush1.msra.mxu0 %v1925
    %1927 = vmatprep.subr.mxu0 0.0
    %v1928 = vand.u32 %v85, 4294901760
    %1929 = vmatpush1.msra.mxu0 %v1928
    %1930 = vmatprep.subr.mxu0 0.0
    %v1931 = vand.u32 %v86, 4294901760
    %1932 = vmatpush1.msra.mxu0 %v1931
    %1933 = vmatprep.subr.mxu0 0.0
    %v1934 = vand.u32 %v87, 4294901760
    %1935 = vmatpush1.msra.mxu0 %v1934
    %1936 = vmatprep.subr.mxu0 0.0
    %v1937 = vand.u32 %v88, 4294901760
    %1938 = vmatpush1.msra.mxu0 %v1937
    %1939 = vmatprep.subr.mxu0 0.0
    %v1940 = vand.u32 %v89, 4294901760
    %1941 = vmatpush1.msra.mxu0 %v1940
    %1942 = vmatprep.subr.mxu0 0.0
    %v1943 = vand.u32 %v90, 4294901760
    %1944 = vmatpush1.msra.mxu0 %v1943
    %1945 = vmatprep.subr.mxu0 0.0
    %v1946 = vand.u32 %v91, 4294901760
    %1947 = vmatpush1.msra.mxu0 %v1946
    %v1948 = vand.u32 %v122, 4294901760
    %1949 = vmatprep.mubr.f32.mxu0 %v1948
    %v1950 = vand.u32 %v121, 4294901760
    %1951 = vmatmul.mubr.f32.gmra.mrb[0].mxu0 %v1950
    %v1952 = vpop.f32.mrb[0].mxu0
    %v1953 = vadd.f32 %v1842, %v1952
    %v1954 = vpop.f32.mrb[0].mxu0
    %v1955 = vand.u32 %v126, 4294901760
    %1956 = vmatprep.mubr.f32.mxu0 %v1955
    %v1957 = vand.u32 %v125, 4294901760
    %1958 = vmatmul.mubr.f32.gmra.mrb[0].mxu0 %v1957
    %v1959 = vpop.f32.mrb[0].mxu0
    %v1960 = vadd.f32 %v1849, %v1959
    %v1961 = vpop.f32.mrb[0].mxu0
    %1962 = vdwg.mxu0
    %1963 = vst [vmem:[#allocation5] sm:$0xff] %v1953
    %1964 = vst [vmem:[#allocation5 + $0x8] sm:$0xff] %v1960
    // Predicated region
    $region14: #{tpu_custom_call.1} parent=1 // pred_check
      _
    $region15: #{tpu_custom_call.1} parent=1 // pred_check_branch
      %1966 = sbr.rel (0) target = $region17
    $region16: #{tpu_custom_call.1} parent=1 // pred_region
      %s1968 = ssub.s32 256, 256
      %1969 = vsyncadd [#allocation4], %s1968
      %s1970 = sshll.u32 [#allocation5], 4
      %s1971 = int_to_ptr.vmem [resolvable:$true] %s1970
      %1976 = dma.vmem_to_hbm [thread:$0]  %s1971, 256, %s2, [#allocation4], 128, 128, 8
    $region17: #{tpu_custom_call.1} parent=1 // pred_fallthru
      _
    // Predicated region
    $region18: #{tpu_custom_call.1} parent=1 // pred_check
      _
    $region19: #{tpu_custom_call.1} parent=1 // pred_check_branch
      %1978 = sbr.rel (0) target = $region21
    $region20: #{tpu_custom_call.1} parent=1 // pred_region
      %1979 = dma.done [#allocation4], 256
    $region21: #{tpu_custom_call.1} parent=1 // pred_fallthru
      _
    %1980 = vsyncpa [#allocation3], 1
    %1981 = vsyncpa [#allocation4], 1

</llo_original>
